<compile_context>
chip_gen: v6e
topology: v6e:2x2x1
jax: 0.10.0
libtpu: 0.0.40
codegen_flags: <defaults>
</compile_context>

<pallas_src>
import functools

import numpy as np

import jax
import jax.numpy as jnp
from jax import lax
from jax.experimental import pallas as pl
from jax.experimental.pallas import tpu as pltpu  # noqa: F401  (kept for larger configs)


# ----------------------------------------------------------------------------
# Single fused kernel: GAT (both passes, all heads) + gather + all losses.
# ----------------------------------------------------------------------------
def mgta_fused_kernel(x_ref, adj_ref, w_ref, a_ref, wc_ref, bc_ref, sel_ref,
                      task_ref, trip_ref, adv_ref, diff_ref,
                      *, nheads, nhid, alpha, n_sel, n_trip, p_pad, t_pad):
    x = x_ref[...]                                    # (N, F)   f32
    adj_pos = adj_ref[...] > 0                        # (N, N)   bool (adj stored bf16)
    sel = sel_ref[...]                                # (p_pad + 3*t_pad, N) f32
    a_all = a_ref[...]                                # (2, 2H*nhid)
    Wc = wc_ref[...]                                  # (H*nhid, ntask)
    ntask = Wc.shape[1]
    neg_big = jnp.float32(-9e15)
    leaky = jnp.float32(alpha)

    # One wide MXU projection for all 2*H heads: columns = [private heads | share heads].
    Wh_all = jnp.dot(x, w_ref[...], preferred_element_type=jnp.float32)    # (N, 2H*nhid)

    # Accumulators.  Every returned quantity decomposes over the disjoint per-head
    # feature blocks, so the concatenated feature matrices are never materialized.
    logits = jnp.zeros((p_pad, ntask), jnp.float32)   # share_feature @ Wc
    gs = jnp.zeros((p_pad, p_pad), jnp.float32)       # share_feature Gram
    gp = jnp.zeros((p_pad, p_pad), jnp.float32)       # private_feature Gram
    # Triplet partial products (elementwise across heads; reduced once after the loop).
    s11 = jnp.zeros((t_pad, nhid), jnp.float32)       # x1*x1 partials
    s22 = jnp.zeros((t_pad, nhid), jnp.float32)       # x2*x2
    s33 = jnp.zeros((t_pad, nhid), jnp.float32)       # x3*x3
    s12 = jnp.zeros((t_pad, nhid), jnp.float32)       # x1*x2
    s13 = jnp.zeros((t_pad, nhid), jnp.float32)       # x1*x3

    for h in range(2 * nheads):                       # statically unrolled, heads tiny
        lo = h * nhid
        Wh = Wh_all[:, lo:lo + nhid]                  # (N, nhid)  static lane slice
        a1 = a_all[0:1, lo:lo + nhid]                 # (1, nhid)
        a2 = a_all[1:2, lo:lo + nhid]                 # (1, nhid)

        # e = LeakyReLU(Wh@a1 + (Wh@a2)^T), adjacency-masked, numerically-stable
        # row softmax with the normalization deferred past the N^2 matmul.
        f1 = lax.dot_general(Wh, a1, (((1,), (1,)), ((), ())),
                             preferred_element_type=jnp.float32)           # (N, 1)
        f2 = lax.dot_general(a2, Wh, (((1,), (1,)), ((), ())),
                             preferred_element_type=jnp.float32)           # (1, N)
        e = f1 + f2
        e = jnp.where(e > 0, e, leaky * e)            # LeakyReLU(alpha)
        e = jnp.where(adj_pos, e, neg_big)            # mask by adjacency
        m = jnp.max(e, axis=1, keepdims=True)
        p = jnp.exp(e - m)                            # (N, N) unnormalized weights
        inv_rowsum = 1.0 / jnp.sum(p, axis=1, keepdims=True)               # (N, 1)
        hout = jnp.dot(p, Wh, preferred_element_type=jnp.float32) * inv_rowsum  # (N, nhid)
        hout = jnp.where(hout > 0, hout, jnp.exp(jnp.minimum(hout, 0.0)) - 1.0)  # safe ELU

        # Fused gather: selected-node rows + the three triplet row groups, one matmul.
        g = jnp.dot(sel, hout, preferred_element_type=jnp.float32)          # (p_pad+3*t_pad, nhid)
        gnode = g[:p_pad]
        g1 = g[p_pad:p_pad + t_pad]
        g2 = g[p_pad + t_pad:p_pad + 2 * t_pad]
        g3 = g[p_pad + 2 * t_pad:p_pad + 3 * t_pad]

        # Triplet cosine pieces (x_k = [share_feature | private_feature] -> sums over
        # all 2H head blocks).  VPU elementwise accumulate only; XLU reduce after loop.
        s11 = s11 + g1 * g1
        s22 = s22 + g2 * g2
        s33 = s33 + g3 * g3
        s12 = s12 + g1 * g2
        s13 = s13 + g1 * g3

        gram = lax.dot_general(gnode, gnode, (((1,), (1,)), ((), ())),
                               preferred_element_type=jnp.float32)          # (p_pad, p_pad)
        if h < nheads:                                # private-pass heads
            gp = gp + gram
        else:                                         # share-pass heads
            gs = gs + gram
            c0 = (h - nheads) * nhid
            logits = logits + jnp.dot(gnode, Wc[c0:c0 + nhid, :],
                                      preferred_element_type=jnp.float32)

    # ---- adversarial loss: F.cross_entropy(softmax(sigmoid(logits)), task) ----
    logits = logits + bc_ref[...]
    s = jax.nn.sigmoid(logits)
    ms = jnp.max(s, axis=1, keepdims=True)
    ex = jnp.exp(s - ms)
    nt = ex / jnp.sum(ex, axis=1, keepdims=True)                            # softmax(sigmoid)
    lse = jnp.log(jnp.sum(jnp.exp(nt), axis=1, keepdims=True))              # CE's 2nd log-softmax (nt in (0,1))
    onehot = (lax.broadcasted_iota(jnp.int32, (p_pad, ntask), 1)
              == task_ref[...]).astype(jnp.float32)
    picked = jnp.sum(onehot * nt, axis=1, keepdims=True)
    row_mask = (lax.broadcasted_iota(jnp.int32, (p_pad, 1), 0)
                < n_sel).astype(jnp.float32)                                # drop padded rows
    adv_ref[...] = (jnp.sum((lse - picked) * row_mask, axis=0, keepdims=True)
                    * jnp.float32(1.0 / n_sel))

    # ---- diff loss: ||share^T @ private||_F^2 = sum((S S^T) * (P P^T)) ----
    diff_ref[...] = jnp.sum(jnp.sum(gs * gp, axis=1, keepdims=True),
                            axis=0, keepdims=True)

    # ---- triplet: cosine(x1,x2) - cosine(x1,x3), torch norm sqrt(sum(x^2)+1e-5) ----
    n1 = jnp.sum(s11, axis=1, keepdims=True)
    n2 = jnp.sum(s22, axis=1, keepdims=True)
    n3 = jnp.sum(s33, axis=1, keepdims=True)
    d12 = jnp.sum(s12, axis=1, keepdims=True)
    d13 = jnp.sum(s13, axis=1, keepdims=True)
    r1 = jnp.sqrt(n1 + 1e-5)
    r2 = jnp.sqrt(n2 + 1e-5)
    r3 = jnp.sqrt(n3 + 1e-5)
    trip = d12 / (r1 * r2) - d13 / (r1 * r3)
    trip_ref[...] = trip[:n_trip]


# ----------------------------------------------------------------------------
# Wrapper
# ----------------------------------------------------------------------------
def pack_gat_params(params):
    """Stack per-head GAT weights lane-major: columns = [private heads | share heads]."""
    H, F_in, nhid = params["W_priv"].shape

    def stack_w(w):     # (H, F, nhid) -> (F, H*nhid), head-major column blocks
        return jnp.transpose(w, (1, 0, 2)).reshape(F_in, H * nhid)

    def stack_a(a):     # (H, 2, nhid) -> (2, H*nhid)
        return jnp.transpose(a, (1, 0, 2)).reshape(2, H * nhid)

    w_all = jnp.concatenate([stack_w(params["W_priv"]), stack_w(params["W_shr"])], axis=1)
    a_all = jnp.concatenate([stack_a(params["a_priv"]), stack_a(params["a_shr"])], axis=1)
    return w_all, a_all


def _round_up(v, m):
    return -(-v // m) * m


def mgta_forward(params, features, adj, path, task, *, alpha):
    """Eval-mode MGTA forward. Returns (cos(x1,x2)-cos(x1,x3), adv_loss, diff_loss)."""
    nodes = [int(n) for p in path for n in p]
    n_sel = len(nodes)
    assert n_sel % 3 == 0, "path must select a multiple of 3 nodes"
    n_trip = n_sel // 3
    N, _ = features.shape
    nheads, _, nhid = params["W_priv"].shape

    # sublane-aligned padded row counts (padding rows are zero / masked in-kernel)
    p_pad = _round_up(n_sel, 8)
    t_pad = _round_up(n_trip, 8)

    # Trace-time-constant selection matrix: rows = [node gather | x1 | x2 | x3].
    # Replaces XLA gather + concat + reshape glue with one MXU matmul in-kernel.
    sel = np.zeros((p_pad + 3 * t_pad, N), np.float32)
    for r, n in enumerate(nodes):
        sel[r, n] = 1.0
    for t in range(n_trip):
        sel[p_pad + t, nodes[3 * t + 0]] = 1.0
        sel[p_pad + t_pad + t, nodes[3 * t + 1]] = 1.0
        sel[p_pad + 2 * t_pad + t, nodes[3 * t + 2]] = 1.0
    sel = jnp.asarray(sel)

    w_all, a_all = pack_gat_params(params)             # tiny, one-time weight packing
    adj_bf16 = adj.astype(jnp.bfloat16)                # adjacency only used as a >0 mask
    task_col = jnp.zeros((p_pad, 1), jnp.int32).at[:n_sel, 0].set(task.astype(jnp.int32))

    kernel = functools.partial(
        mgta_fused_kernel, nheads=nheads, nhid=nhid, alpha=alpha,
        n_sel=n_sel, n_trip=n_trip, p_pad=p_pad, t_pad=t_pad)

    trip, adv, diff = pl.pallas_call(
        kernel,
        out_shape=(
            jax.ShapeDtypeStruct((n_trip, 1), jnp.float32),   # cos(x1,x2) - cos(x1,x3)
            jax.ShapeDtypeStruct((1, 1), jnp.float32),        # adv_loss
            jax.ShapeDtypeStruct((1, 1), jnp.float32),        # diff_loss
        ),
    )(features, adj_bf16, w_all, a_all, params["Wc"], params["bc"], sel, task_col)
    return trip, adv[0, 0], diff[0, 0]


# ----------------------------------------------------------------------------
# Pure-JAX reference (mirrors the torch module, eval mode) for a correctness check
# ----------------------------------------------------------------------------
def mgta_reference(params, features, adj, path, task, *, alpha):
    nodes = jnp.asarray([n for p in path for n in p], dtype=jnp.int32)

    def gat_pass(W, a):
        outs = []
        for h in range(W.shape[0]):
            Wh = features @ W[h]
            e = Wh @ a[h, 0][:, None] + (Wh @ a[h, 1][:, None]).T
            e = jnp.where(e > 0, e, alpha * e)
            e = jnp.where(adj > 0, e, -9e15)
            attn = jax.nn.softmax(e, axis=1)
            outs.append(jax.nn.elu(attn @ Wh))
        return jnp.concatenate(outs, axis=1)

    priv = gat_pass(params["W_priv"], params["a_priv"])
    shr = gat_pass(params["W_shr"], params["a_shr"])
    sf, pf = shr[nodes], priv[nodes]

    logits = sf @ params["Wc"] + params["bc"]
    nt = jax.nn.softmax(jax.nn.sigmoid(logits), axis=1)
    lse = jax.scipy.special.logsumexp(nt, axis=1)
    adv = jnp.mean(lse - nt[jnp.arange(nt.shape[0]), task])
    diff = jnp.sum((sf.T @ pf) ** 2)

    xcat = jnp.concatenate([sf, pf], axis=1).reshape(-1, 3, 2 * sf.shape[1])
    x1, x2, x3 = xcat[:, 0, :], xcat[:, 1, :], xcat[:, 2, :]

    def norm(v):
        return jnp.sqrt(jnp.sum(v * v, axis=1, keepdims=True) + 1e-5)

    def cos(u, v):
        return jnp.sum(u * v, axis=1, keepdims=True) / (norm(u) * norm(v))

    return cos(x1, x2) - cos(x1, x3), adv, diff


# ----------------------------------------------------------------------------
# Deterministic parameter init + example run
# ----------------------------------------------------------------------------
def init_params(key, nfeat, nhid, nheads, ntask):
    ks = jax.random.split(key, 6)
    scale_w = 1.0 / jnp.sqrt(jnp.float32(nfeat))
    scale_a = 1.0 / jnp.sqrt(jnp.float32(nhid))
    scale_c = 1.0 / jnp.sqrt(jnp.float32(nhid * nheads))
    return {
        "W_priv": jax.random.normal(ks[0], (nheads, nfeat, nhid), jnp.float32) * scale_w,
        "a_priv": jax.random.normal(ks[1], (nheads, 2, nhid), jnp.float32) * scale_a,
        "W_shr": jax.random.normal(ks[2], (nheads, nfeat, nhid), jnp.float32) * scale_w,
        "a_shr": jax.random.normal(ks[3], (nheads, 2, nhid), jnp.float32) * scale_a,
        "Wc": jax.random.normal(ks[4], (nhid * nheads, ntask), jnp.float32) * scale_c,
        "bc": jax.random.normal(ks[5], (1, ntask), jnp.float32) * 0.01,
    }


if __name__ == "__main__":
    N, nfeat, nhid, nheads, ntask = 16, 32, 8, 4, 3
    alpha = 0.2  # LeakyReLU negative slope
    key = jax.random.PRNGKey(0)
    k_feat, k_adj, k_task, k_par = jax.random.split(key, 4)

    features = jax.random.normal(k_feat, (N, nfeat), jnp.float32)
    # random symmetric adjacency with self-loops
    a_rand = (jax.random.uniform(k_adj, (N, N)) > 0.6).astype(jnp.float32)
    adj = jnp.clip(a_rand + a_rand.T + jnp.eye(N, dtype=jnp.float32), 0.0, 1.0)

    # two length-3 paths -> 6 selected nodes -> 2 (x1, x2, x3) triples
    path = [[0, 1, 2], [3, 4, 5]]
    n_sel = sum(len(p) for p in path)
    task = jax.random.randint(k_task, (n_sel,), 0, ntask, dtype=jnp.int32)

    params = init_params(k_par, nfeat, nhid, nheads, ntask)

    trip, adv_loss, diff_loss = mgta_forward(params, features, adj, path, task, alpha=alpha)
    jax.block_until_ready((trip, adv_loss, diff_loss))

    # correctness check against the pure-JAX reference (same eval-mode semantics)
    trip_r, adv_r, diff_r = mgta_reference(params, features, adj, path, task, alpha=alpha)
    assert jnp.allclose(trip, trip_r, rtol=1e-3, atol=1e-5), (trip, trip_r)
    assert jnp.allclose(adv_loss, adv_r, rtol=1e-3, atol=1e-5), (adv_loss, adv_r)
    assert jnp.allclose(diff_loss, diff_r, rtol=1e-3, atol=1e-4), (diff_loss, diff_r)

    print("KERNEL_OK")
</pallas_src>

<mosaic_0001>
module attributes {stable_mosaic.version = 11 : i64} {
  func.func @mgta_fused_kernel(%arg0: memref<16x32xf32, #tpu.memory_space<vmem>>, %arg1: memref<16x16xbf16, #tpu.memory_space<vmem>>, %arg2: memref<32x64xf32, #tpu.memory_space<vmem>>, %arg3: memref<2x64xf32, #tpu.memory_space<vmem>>, %arg4: memref<32x3xf32, #tpu.memory_space<vmem>>, %arg5: memref<1x3xf32, #tpu.memory_space<vmem>>, %arg6: memref<32x16xf32, #tpu.memory_space<vmem>>, %arg7: memref<8x1xi32, #tpu.memory_space<vmem>>, %arg8: memref<2x1xf32, #tpu.memory_space<vmem>>, %arg9: memref<1x1xf32, #tpu.memory_space<vmem>>, %arg10: memref<1x1xf32, #tpu.memory_space<vmem>>) attributes {dimension_semantics = [], scalar_prefetch = 0 : i64, scratch_operands = 0 : i64, tpu.core_type = #tpu.core_type<tc>} {
    %c0 = arith.constant 0 : index
    %c0_0 = arith.constant 0 : index
    %0 = vector.load %arg0[%c0, %c0_0] : memref<16x32xf32, #tpu.memory_space<vmem>>, vector<16x32xf32>
    %c0_1 = arith.constant 0 : index
    %c0_2 = arith.constant 0 : index
    %1 = vector.load %arg1[%c0_1, %c0_2] : memref<16x16xbf16, #tpu.memory_space<vmem>>, vector<16x16xbf16>
    %cst = arith.constant 0.000000e+00 : bf16
    %2 = vector.broadcast %cst : bf16 to vector<16x16xbf16>
    %3 = arith.cmpf ogt, %1, %2 : vector<16x16xbf16>
    %c0_3 = arith.constant 0 : index
    %c0_4 = arith.constant 0 : index
    %4 = vector.load %arg6[%c0_3, %c0_4] : memref<32x16xf32, #tpu.memory_space<vmem>>, vector<32x16xf32>
    %c0_5 = arith.constant 0 : index
    %c0_6 = arith.constant 0 : index
    %5 = vector.load %arg3[%c0_5, %c0_6] : memref<2x64xf32, #tpu.memory_space<vmem>>, vector<2x64xf32>
    %c0_7 = arith.constant 0 : index
    %c0_8 = arith.constant 0 : index
    %6 = vector.load %arg4[%c0_7, %c0_8] : memref<32x3xf32, #tpu.memory_space<vmem>>, vector<32x3xf32>
    %c0_9 = arith.constant 0 : index
    %c0_10 = arith.constant 0 : index
    %7 = vector.load %arg2[%c0_9, %c0_10] : memref<32x64xf32, #tpu.memory_space<vmem>>, vector<32x64xf32>
    %cst_11 = arith.constant dense<0.000000e+00> : vector<16x64xf32>
    %8 = tpu.matmul %0, %7, %cst_11 {dimension_numbers = #tpu.dot_dimension_numbers<[1], [0], [0], [1], [0, 0, 1, 1], [], []>} : vector<16x32xf32>, vector<32x64xf32>, vector<16x64xf32> -> vector<16x64xf32>
    %cst_12 = arith.constant 0.000000e+00 : f32
    %9 = vector.broadcast %cst_12 : f32 to vector<8x3xf32>
    %cst_13 = arith.constant 0.000000e+00 : f32
    %10 = vector.broadcast %cst_13 : f32 to vector<8x8xf32>
    %cst_14 = arith.constant 0.000000e+00 : f32
    %11 = vector.broadcast %cst_14 : f32 to vector<8x8xf32>
    %cst_15 = arith.constant 0.000000e+00 : f32
    %12 = vector.broadcast %cst_15 : f32 to vector<8x8xf32>
    %cst_16 = arith.constant 0.000000e+00 : f32
    %13 = vector.broadcast %cst_16 : f32 to vector<8x8xf32>
    %cst_17 = arith.constant 0.000000e+00 : f32
    %14 = vector.broadcast %cst_17 : f32 to vector<8x8xf32>
    %cst_18 = arith.constant 0.000000e+00 : f32
    %15 = vector.broadcast %cst_18 : f32 to vector<8x8xf32>
    %cst_19 = arith.constant 0.000000e+00 : f32
    %16 = vector.broadcast %cst_19 : f32 to vector<8x8xf32>
    %17 = vector.extract_strided_slice %8 {offsets = [0, 0], sizes = [16, 8], strides = [1, 1]} : vector<16x64xf32> to vector<16x8xf32>
    %18 = vector.extract_strided_slice %5 {offsets = [0, 0], sizes = [1, 8], strides = [1, 1]} : vector<2x64xf32> to vector<1x8xf32>
    %19 = vector.extract_strided_slice %5 {offsets = [1, 0], sizes = [1, 8], strides = [1, 1]} : vector<2x64xf32> to vector<1x8xf32>
    %cst_20 = arith.constant dense<0.000000e+00> : vector<16x1xf32>
    %20 = tpu.matmul %17, %18, %cst_20 {dimension_numbers = #tpu.dot_dimension_numbers<[1], [1], [0], [0], [0, 0, 1, 0], [], []>} : vector<16x8xf32>, vector<1x8xf32>, vector<16x1xf32> -> vector<16x1xf32>
    %cst_21 = arith.constant dense<0.000000e+00> : vector<1x16xf32>
    %21 = tpu.matmul %19, %17, %cst_21 {dimension_numbers = #tpu.dot_dimension_numbers<[1], [1], [0], [0], [0, 0, 1, 0], [], []>} : vector<1x8xf32>, vector<16x8xf32>, vector<1x16xf32> -> vector<1x16xf32>
    %22 = vector.broadcast %20 : vector<16x1xf32> to vector<16x16xf32>
    %23 = vector.broadcast %21 : vector<1x16xf32> to vector<16x16xf32>
    %24 = arith.addf %22, %23 : vector<16x16xf32>
    %cst_22 = arith.constant 0.000000e+00 : f32
    %25 = vector.broadcast %cst_22 : f32 to vector<16x16xf32>
    %26 = arith.cmpf ogt, %24, %25 : vector<16x16xf32>
    %cst_23 = arith.constant 2.000000e-01 : f32
    %27 = vector.broadcast %cst_23 : f32 to vector<16x16xf32>
    %28 = arith.mulf %27, %24 : vector<16x16xf32>
    %29 = arith.select %26, %24, %28 : vector<16x16xi1>, vector<16x16xf32>
    %cst_24 = arith.constant -9.000000e+15 : f32
    %30 = vector.broadcast %cst_24 : f32 to vector<16x16xf32>
    %31 = arith.select %3, %29, %30 : vector<16x16xi1>, vector<16x16xf32>
    %cst_25 = arith.constant dense<0xFF800000> : vector<16xf32>
    %32 = vector.multi_reduction <maximumf>, %31, %cst_25 [1] : vector<16x16xf32> to vector<16xf32>
    %33 = vector.shape_cast %32 : vector<16xf32> to vector<16x1xf32>
    %34 = vector.broadcast %33 : vector<16x1xf32> to vector<16x16xf32>
    %35 = arith.subf %31, %34 : vector<16x16xf32>
    %36 = math.exp %35 : vector<16x16xf32>
    %cst_26 = arith.constant dense<0.000000e+00> : vector<16xf32>
    %37 = vector.multi_reduction <add>, %36, %cst_26 [1] : vector<16x16xf32> to vector<16xf32>
    %38 = vector.shape_cast %37 : vector<16xf32> to vector<16x1xf32>
    %cst_27 = arith.constant 1.000000e+00 : f32
    %39 = vector.broadcast %cst_27 : f32 to vector<16x1xf32>
    %40 = arith.divf %39, %38 : vector<16x1xf32>
    %cst_28 = arith.constant dense<0.000000e+00> : vector<16x8xf32>
    %41 = tpu.matmul %36, %17, %cst_28 {dimension_numbers = #tpu.dot_dimension_numbers<[1], [0], [0], [1], [0, 0, 1, 1], [], []>} : vector<16x16xf32>, vector<16x8xf32>, vector<16x8xf32> -> vector<16x8xf32>
    %42 = vector.broadcast %40 : vector<16x1xf32> to vector<16x8xf32>
    %43 = arith.mulf %41, %42 : vector<16x8xf32>
    %cst_29 = arith.constant 0.000000e+00 : f32
    %44 = vector.broadcast %cst_29 : f32 to vector<16x8xf32>
    %45 = arith.cmpf ogt, %43, %44 : vector<16x8xf32>
    %cst_30 = arith.constant 0.000000e+00 : f32
    %46 = vector.broadcast %cst_30 : f32 to vector<16x8xf32>
    %47 = arith.minimumf %43, %46 : vector<16x8xf32>
    %48 = math.exp %47 : vector<16x8xf32>
    %cst_31 = arith.constant 1.000000e+00 : f32
    %49 = vector.broadcast %cst_31 : f32 to vector<16x8xf32>
    %50 = arith.subf %48, %49 : vector<16x8xf32>
    %51 = arith.select %45, %43, %50 : vector<16x8xi1>, vector<16x8xf32>
    %cst_32 = arith.constant dense<0.000000e+00> : vector<32x8xf32>
    %52 = tpu.matmul %4, %51, %cst_32 {dimension_numbers = #tpu.dot_dimension_numbers<[1], [0], [0], [1], [0, 0, 1, 1], [], []>} : vector<32x16xf32>, vector<16x8xf32>, vector<32x8xf32> -> vector<32x8xf32>
    %53 = vector.extract_strided_slice %52 {offsets = [0, 0], sizes = [8, 8], strides = [1, 1]} : vector<32x8xf32> to vector<8x8xf32>
    %54 = vector.extract_strided_slice %52 {offsets = [8, 0], sizes = [8, 8], strides = [1, 1]} : vector<32x8xf32> to vector<8x8xf32>
    %55 = vector.extract_strided_slice %52 {offsets = [16, 0], sizes = [8, 8], strides = [1, 1]} : vector<32x8xf32> to vector<8x8xf32>
    %56 = vector.extract_strided_slice %52 {offsets = [24, 0], sizes = [8, 8], strides = [1, 1]} : vector<32x8xf32> to vector<8x8xf32>
    %57 = arith.mulf %54, %54 : vector<8x8xf32>
    %58 = arith.addf %12, %57 : vector<8x8xf32>
    %59 = arith.mulf %55, %55 : vector<8x8xf32>
    %60 = arith.addf %13, %59 : vector<8x8xf32>
    %61 = arith.mulf %56, %56 : vector<8x8xf32>
    %62 = arith.addf %14, %61 : vector<8x8xf32>
    %63 = arith.mulf %54, %55 : vector<8x8xf32>
    %64 = arith.addf %15, %63 : vector<8x8xf32>
    %65 = arith.mulf %54, %56 : vector<8x8xf32>
    %66 = arith.addf %16, %65 : vector<8x8xf32>
    %cst_33 = arith.constant dense<0.000000e+00> : vector<8x8xf32>
    %67 = tpu.matmul %53, %53, %cst_33 {dimension_numbers = #tpu.dot_dimension_numbers<[1], [1], [0], [0], [0, 0, 1, 0], [], []>} : vector<8x8xf32>, vector<8x8xf32>, vector<8x8xf32> -> vector<8x8xf32>
    %68 = arith.addf %11, %67 : vector<8x8xf32>
    %69 = vector.extract_strided_slice %8 {offsets = [0, 8], sizes = [16, 8], strides = [1, 1]} : vector<16x64xf32> to vector<16x8xf32>
    %70 = vector.extract_strided_slice %5 {offsets = [0, 8], sizes = [1, 8], strides = [1, 1]} : vector<2x64xf32> to vector<1x8xf32>
    %71 = vector.extract_strided_slice %5 {offsets = [1, 8], sizes = [1, 8], strides = [1, 1]} : vector<2x64xf32> to vector<1x8xf32>
    %cst_34 = arith.constant dense<0.000000e+00> : vector<16x1xf32>
    %72 = tpu.matmul %69, %70, %cst_34 {dimension_numbers = #tpu.dot_dimension_numbers<[1], [1], [0], [0], [0, 0, 1, 0], [], []>} : vector<16x8xf32>, vector<1x8xf32>, vector<16x1xf32> -> vector<16x1xf32>
    %cst_35 = arith.constant dense<0.000000e+00> : vector<1x16xf32>
    %73 = tpu.matmul %71, %69, %cst_35 {dimension_numbers = #tpu.dot_dimension_numbers<[1], [1], [0], [0], [0, 0, 1, 0], [], []>} : vector<1x8xf32>, vector<16x8xf32>, vector<1x16xf32> -> vector<1x16xf32>
    %74 = vector.broadcast %72 : vector<16x1xf32> to vector<16x16xf32>
    %75 = vector.broadcast %73 : vector<1x16xf32> to vector<16x16xf32>
    %76 = arith.addf %74, %75 : vector<16x16xf32>
    %cst_36 = arith.constant 0.000000e+00 : f32
    %77 = vector.broadcast %cst_36 : f32 to vector<16x16xf32>
    %78 = arith.cmpf ogt, %76, %77 : vector<16x16xf32>
    %cst_37 = arith.constant 2.000000e-01 : f32
    %79 = vector.broadcast %cst_37 : f32 to vector<16x16xf32>
    %80 = arith.mulf %79, %76 : vector<16x16xf32>
    %81 = arith.select %78, %76, %80 : vector<16x16xi1>, vector<16x16xf32>
    %cst_38 = arith.constant -9.000000e+15 : f32
    %82 = vector.broadcast %cst_38 : f32 to vector<16x16xf32>
    %83 = arith.select %3, %81, %82 : vector<16x16xi1>, vector<16x16xf32>
    %cst_39 = arith.constant dense<0xFF800000> : vector<16xf32>
    %84 = vector.multi_reduction <maximumf>, %83, %cst_39 [1] : vector<16x16xf32> to vector<16xf32>
    %85 = vector.shape_cast %84 : vector<16xf32> to vector<16x1xf32>
    %86 = vector.broadcast %85 : vector<16x1xf32> to vector<16x16xf32>
    %87 = arith.subf %83, %86 : vector<16x16xf32>
    %88 = math.exp %87 : vector<16x16xf32>
    %cst_40 = arith.constant dense<0.000000e+00> : vector<16xf32>
    %89 = vector.multi_reduction <add>, %88, %cst_40 [1] : vector<16x16xf32> to vector<16xf32>
    %90 = vector.shape_cast %89 : vector<16xf32> to vector<16x1xf32>
    %cst_41 = arith.constant 1.000000e+00 : f32
    %91 = vector.broadcast %cst_41 : f32 to vector<16x1xf32>
    %92 = arith.divf %91, %90 : vector<16x1xf32>
    %cst_42 = arith.constant dense<0.000000e+00> : vector<16x8xf32>
    %93 = tpu.matmul %88, %69, %cst_42 {dimension_numbers = #tpu.dot_dimension_numbers<[1], [0], [0], [1], [0, 0, 1, 1], [], []>} : vector<16x16xf32>, vector<16x8xf32>, vector<16x8xf32> -> vector<16x8xf32>
    %94 = vector.broadcast %92 : vector<16x1xf32> to vector<16x8xf32>
    %95 = arith.mulf %93, %94 : vector<16x8xf32>
    %cst_43 = arith.constant 0.000000e+00 : f32
    %96 = vector.broadcast %cst_43 : f32 to vector<16x8xf32>
    %97 = arith.cmpf ogt, %95, %96 : vector<16x8xf32>
    %cst_44 = arith.constant 0.000000e+00 : f32
    %98 = vector.broadcast %cst_44 : f32 to vector<16x8xf32>
    %99 = arith.minimumf %95, %98 : vector<16x8xf32>
    %100 = math.exp %99 : vector<16x8xf32>
    %cst_45 = arith.constant 1.000000e+00 : f32
    %101 = vector.broadcast %cst_45 : f32 to vector<16x8xf32>
    %102 = arith.subf %100, %101 : vector<16x8xf32>
    %103 = arith.select %97, %95, %102 : vector<16x8xi1>, vector<16x8xf32>
    %cst_46 = arith.constant dense<0.000000e+00> : vector<32x8xf32>
    %104 = tpu.matmul %4, %103, %cst_46 {dimension_numbers = #tpu.dot_dimension_numbers<[1], [0], [0], [1], [0, 0, 1, 1], [], []>} : vector<32x16xf32>, vector<16x8xf32>, vector<32x8xf32> -> vector<32x8xf32>
    %105 = vector.extract_strided_slice %104 {offsets = [0, 0], sizes = [8, 8], strides = [1, 1]} : vector<32x8xf32> to vector<8x8xf32>
    %106 = vector.extract_strided_slice %104 {offsets = [8, 0], sizes = [8, 8], strides = [1, 1]} : vector<32x8xf32> to vector<8x8xf32>
    %107 = vector.extract_strided_slice %104 {offsets = [16, 0], sizes = [8, 8], strides = [1, 1]} : vector<32x8xf32> to vector<8x8xf32>
    %108 = vector.extract_strided_slice %104 {offsets = [24, 0], sizes = [8, 8], strides = [1, 1]} : vector<32x8xf32> to vector<8x8xf32>
    %109 = arith.mulf %106, %106 : vector<8x8xf32>
    %110 = arith.addf %58, %109 : vector<8x8xf32>
    %111 = arith.mulf %107, %107 : vector<8x8xf32>
    %112 = arith.addf %60, %111 : vector<8x8xf32>
    %113 = arith.mulf %108, %108 : vector<8x8xf32>
    %114 = arith.addf %62, %113 : vector<8x8xf32>
    %115 = arith.mulf %106, %107 : vector<8x8xf32>
    %116 = arith.addf %64, %115 : vector<8x8xf32>
    %117 = arith.mulf %106, %108 : vector<8x8xf32>
    %118 = arith.addf %66, %117 : vector<8x8xf32>
    %cst_47 = arith.constant dense<0.000000e+00> : vector<8x8xf32>
    %119 = tpu.matmul %105, %105, %cst_47 {dimension_numbers = #tpu.dot_dimension_numbers<[1], [1], [0], [0], [0, 0, 1, 0], [], []>} : vector<8x8xf32>, vector<8x8xf32>, vector<8x8xf32> -> vector<8x8xf32>
    %120 = arith.addf %68, %119 : vector<8x8xf32>
    %121 = vector.extract_strided_slice %8 {offsets = [0, 16], sizes = [16, 8], strides = [1, 1]} : vector<16x64xf32> to vector<16x8xf32>
    %122 = vector.extract_strided_slice %5 {offsets = [0, 16], sizes = [1, 8], strides = [1, 1]} : vector<2x64xf32> to vector<1x8xf32>
    %123 = vector.extract_strided_slice %5 {offsets = [1, 16], sizes = [1, 8], strides = [1, 1]} : vector<2x64xf32> to vector<1x8xf32>
    %cst_48 = arith.constant dense<0.000000e+00> : vector<16x1xf32>
    %124 = tpu.matmul %121, %122, %cst_48 {dimension_numbers = #tpu.dot_dimension_numbers<[1], [1], [0], [0], [0, 0, 1, 0], [], []>} : vector<16x8xf32>, vector<1x8xf32>, vector<16x1xf32> -> vector<16x1xf32>
    %cst_49 = arith.constant dense<0.000000e+00> : vector<1x16xf32>
    %125 = tpu.matmul %123, %121, %cst_49 {dimension_numbers = #tpu.dot_dimension_numbers<[1], [1], [0], [0], [0, 0, 1, 0], [], []>} : vector<1x8xf32>, vector<16x8xf32>, vector<1x16xf32> -> vector<1x16xf32>
    %126 = vector.broadcast %124 : vector<16x1xf32> to vector<16x16xf32>
    %127 = vector.broadcast %125 : vector<1x16xf32> to vector<16x16xf32>
    %128 = arith.addf %126, %127 : vector<16x16xf32>
    %cst_50 = arith.constant 0.000000e+00 : f32
    %129 = vector.broadcast %cst_50 : f32 to vector<16x16xf32>
    %130 = arith.cmpf ogt, %128, %129 : vector<16x16xf32>
    %cst_51 = arith.constant 2.000000e-01 : f32
    %131 = vector.broadcast %cst_51 : f32 to vector<16x16xf32>
    %132 = arith.mulf %131, %128 : vector<16x16xf32>
    %133 = arith.select %130, %128, %132 : vector<16x16xi1>, vector<16x16xf32>
    %cst_52 = arith.constant -9.000000e+15 : f32
    %134 = vector.broadcast %cst_52 : f32 to vector<16x16xf32>
    %135 = arith.select %3, %133, %134 : vector<16x16xi1>, vector<16x16xf32>
    %cst_53 = arith.constant dense<0xFF800000> : vector<16xf32>
    %136 = vector.multi_reduction <maximumf>, %135, %cst_53 [1] : vector<16x16xf32> to vector<16xf32>
    %137 = vector.shape_cast %136 : vector<16xf32> to vector<16x1xf32>
    %138 = vector.broadcast %137 : vector<16x1xf32> to vector<16x16xf32>
    %139 = arith.subf %135, %138 : vector<16x16xf32>
    %140 = math.exp %139 : vector<16x16xf32>
    %cst_54 = arith.constant dense<0.000000e+00> : vector<16xf32>
    %141 = vector.multi_reduction <add>, %140, %cst_54 [1] : vector<16x16xf32> to vector<16xf32>
    %142 = vector.shape_cast %141 : vector<16xf32> to vector<16x1xf32>
    %cst_55 = arith.constant 1.000000e+00 : f32
    %143 = vector.broadcast %cst_55 : f32 to vector<16x1xf32>
    %144 = arith.divf %143, %142 : vector<16x1xf32>
    %cst_56 = arith.constant dense<0.000000e+00> : vector<16x8xf32>
    %145 = tpu.matmul %140, %121, %cst_56 {dimension_numbers = #tpu.dot_dimension_numbers<[1], [0], [0], [1], [0, 0, 1, 1], [], []>} : vector<16x16xf32>, vector<16x8xf32>, vector<16x8xf32> -> vector<16x8xf32>
    %146 = vector.broadcast %144 : vector<16x1xf32> to vector<16x8xf32>
    %147 = arith.mulf %145, %146 : vector<16x8xf32>
    %cst_57 = arith.constant 0.000000e+00 : f32
    %148 = vector.broadcast %cst_57 : f32 to vector<16x8xf32>
    %149 = arith.cmpf ogt, %147, %148 : vector<16x8xf32>
    %cst_58 = arith.constant 0.000000e+00 : f32
    %150 = vector.broadcast %cst_58 : f32 to vector<16x8xf32>
    %151 = arith.minimumf %147, %150 : vector<16x8xf32>
    %152 = math.exp %151 : vector<16x8xf32>
    %cst_59 = arith.constant 1.000000e+00 : f32
    %153 = vector.broadcast %cst_59 : f32 to vector<16x8xf32>
    %154 = arith.subf %152, %153 : vector<16x8xf32>
    %155 = arith.select %149, %147, %154 : vector<16x8xi1>, vector<16x8xf32>
    %cst_60 = arith.constant dense<0.000000e+00> : vector<32x8xf32>
    %156 = tpu.matmul %4, %155, %cst_60 {dimension_numbers = #tpu.dot_dimension_numbers<[1], [0], [0], [1], [0, 0, 1, 1], [], []>} : vector<32x16xf32>, vector<16x8xf32>, vector<32x8xf32> -> vector<32x8xf32>
    %157 = vector.extract_strided_slice %156 {offsets = [0, 0], sizes = [8, 8], strides = [1, 1]} : vector<32x8xf32> to vector<8x8xf32>
    %158 = vector.extract_strided_slice %156 {offsets = [8, 0], sizes = [8, 8], strides = [1, 1]} : vector<32x8xf32> to vector<8x8xf32>
    %159 = vector.extract_strided_slice %156 {offsets = [16, 0], sizes = [8, 8], strides = [1, 1]} : vector<32x8xf32> to vector<8x8xf32>
    %160 = vector.extract_strided_slice %156 {offsets = [24, 0], sizes = [8, 8], strides = [1, 1]} : vector<32x8xf32> to vector<8x8xf32>
    %161 = arith.mulf %158, %158 : vector<8x8xf32>
    %162 = arith.addf %110, %161 : vector<8x8xf32>
    %163 = arith.mulf %159, %159 : vector<8x8xf32>
    %164 = arith.addf %112, %163 : vector<8x8xf32>
    %165 = arith.mulf %160, %160 : vector<8x8xf32>
    %166 = arith.addf %114, %165 : vector<8x8xf32>
    %167 = arith.mulf %158, %159 : vector<8x8xf32>
    %168 = arith.addf %116, %167 : vector<8x8xf32>
    %169 = arith.mulf %158, %160 : vector<8x8xf32>
    %170 = arith.addf %118, %169 : vector<8x8xf32>
    %cst_61 = arith.constant dense<0.000000e+00> : vector<8x8xf32>
    %171 = tpu.matmul %157, %157, %cst_61 {dimension_numbers = #tpu.dot_dimension_numbers<[1], [1], [0], [0], [0, 0, 1, 0], [], []>} : vector<8x8xf32>, vector<8x8xf32>, vector<8x8xf32> -> vector<8x8xf32>
    %172 = arith.addf %120, %171 : vector<8x8xf32>
    %173 = vector.extract_strided_slice %8 {offsets = [0, 24], sizes = [16, 8], strides = [1, 1]} : vector<16x64xf32> to vector<16x8xf32>
    %174 = vector.extract_strided_slice %5 {offsets = [0, 24], sizes = [1, 8], strides = [1, 1]} : vector<2x64xf32> to vector<1x8xf32>
    %175 = vector.extract_strided_slice %5 {offsets = [1, 24], sizes = [1, 8], strides = [1, 1]} : vector<2x64xf32> to vector<1x8xf32>
    %cst_62 = arith.constant dense<0.000000e+00> : vector<16x1xf32>
    %176 = tpu.matmul %173, %174, %cst_62 {dimension_numbers = #tpu.dot_dimension_numbers<[1], [1], [0], [0], [0, 0, 1, 0], [], []>} : vector<16x8xf32>, vector<1x8xf32>, vector<16x1xf32> -> vector<16x1xf32>
    %cst_63 = arith.constant dense<0.000000e+00> : vector<1x16xf32>
    %177 = tpu.matmul %175, %173, %cst_63 {dimension_numbers = #tpu.dot_dimension_numbers<[1], [1], [0], [0], [0, 0, 1, 0], [], []>} : vector<1x8xf32>, vector<16x8xf32>, vector<1x16xf32> -> vector<1x16xf32>
    %178 = vector.broadcast %176 : vector<16x1xf32> to vector<16x16xf32>
    %179 = vector.broadcast %177 : vector<1x16xf32> to vector<16x16xf32>
    %180 = arith.addf %178, %179 : vector<16x16xf32>
    %cst_64 = arith.constant 0.000000e+00 : f32
    %181 = vector.broadcast %cst_64 : f32 to vector<16x16xf32>
    %182 = arith.cmpf ogt, %180, %181 : vector<16x16xf32>
    %cst_65 = arith.constant 2.000000e-01 : f32
    %183 = vector.broadcast %cst_65 : f32 to vector<16x16xf32>
    %184 = arith.mulf %183, %180 : vector<16x16xf32>
    %185 = arith.select %182, %180, %184 : vector<16x16xi1>, vector<16x16xf32>
    %cst_66 = arith.constant -9.000000e+15 : f32
    %186 = vector.broadcast %cst_66 : f32 to vector<16x16xf32>
    %187 = arith.select %3, %185, %186 : vector<16x16xi1>, vector<16x16xf32>
    %cst_67 = arith.constant dense<0xFF800000> : vector<16xf32>
    %188 = vector.multi_reduction <maximumf>, %187, %cst_67 [1] : vector<16x16xf32> to vector<16xf32>
    %189 = vector.shape_cast %188 : vector<16xf32> to vector<16x1xf32>
    %190 = vector.broadcast %189 : vector<16x1xf32> to vector<16x16xf32>
    %191 = arith.subf %187, %190 : vector<16x16xf32>
    %192 = math.exp %191 : vector<16x16xf32>
    %cst_68 = arith.constant dense<0.000000e+00> : vector<16xf32>
    %193 = vector.multi_reduction <add>, %192, %cst_68 [1] : vector<16x16xf32> to vector<16xf32>
    %194 = vector.shape_cast %193 : vector<16xf32> to vector<16x1xf32>
    %cst_69 = arith.constant 1.000000e+00 : f32
    %195 = vector.broadcast %cst_69 : f32 to vector<16x1xf32>
    %196 = arith.divf %195, %194 : vector<16x1xf32>
    %cst_70 = arith.constant dense<0.000000e+00> : vector<16x8xf32>
    %197 = tpu.matmul %192, %173, %cst_70 {dimension_numbers = #tpu.dot_dimension_numbers<[1], [0], [0], [1], [0, 0, 1, 1], [], []>} : vector<16x16xf32>, vector<16x8xf32>, vector<16x8xf32> -> vector<16x8xf32>
    %198 = vector.broadcast %196 : vector<16x1xf32> to vector<16x8xf32>
    %199 = arith.mulf %197, %198 : vector<16x8xf32>
    %cst_71 = arith.constant 0.000000e+00 : f32
    %200 = vector.broadcast %cst_71 : f32 to vector<16x8xf32>
    %201 = arith.cmpf ogt, %199, %200 : vector<16x8xf32>
    %cst_72 = arith.constant 0.000000e+00 : f32
    %202 = vector.broadcast %cst_72 : f32 to vector<16x8xf32>
    %203 = arith.minimumf %199, %202 : vector<16x8xf32>
    %204 = math.exp %203 : vector<16x8xf32>
    %cst_73 = arith.constant 1.000000e+00 : f32
    %205 = vector.broadcast %cst_73 : f32 to vector<16x8xf32>
    %206 = arith.subf %204, %205 : vector<16x8xf32>
    %207 = arith.select %201, %199, %206 : vector<16x8xi1>, vector<16x8xf32>
    %cst_74 = arith.constant dense<0.000000e+00> : vector<32x8xf32>
    %208 = tpu.matmul %4, %207, %cst_74 {dimension_numbers = #tpu.dot_dimension_numbers<[1], [0], [0], [1], [0, 0, 1, 1], [], []>} : vector<32x16xf32>, vector<16x8xf32>, vector<32x8xf32> -> vector<32x8xf32>
    %209 = vector.extract_strided_slice %208 {offsets = [0, 0], sizes = [8, 8], strides = [1, 1]} : vector<32x8xf32> to vector<8x8xf32>
    %210 = vector.extract_strided_slice %208 {offsets = [8, 0], sizes = [8, 8], strides = [1, 1]} : vector<32x8xf32> to vector<8x8xf32>
    %211 = vector.extract_strided_slice %208 {offsets = [16, 0], sizes = [8, 8], strides = [1, 1]} : vector<32x8xf32> to vector<8x8xf32>
    %212 = vector.extract_strided_slice %208 {offsets = [24, 0], sizes = [8, 8], strides = [1, 1]} : vector<32x8xf32> to vector<8x8xf32>
    %213 = arith.mulf %210, %210 : vector<8x8xf32>
    %214 = arith.addf %162, %213 : vector<8x8xf32>
    %215 = arith.mulf %211, %211 : vector<8x8xf32>
    %216 = arith.addf %164, %215 : vector<8x8xf32>
    %217 = arith.mulf %212, %212 : vector<8x8xf32>
    %218 = arith.addf %166, %217 : vector<8x8xf32>
    %219 = arith.mulf %210, %211 : vector<8x8xf32>
    %220 = arith.addf %168, %219 : vector<8x8xf32>
    %221 = arith.mulf %210, %212 : vector<8x8xf32>
    %222 = arith.addf %170, %221 : vector<8x8xf32>
    %cst_75 = arith.constant dense<0.000000e+00> : vector<8x8xf32>
    %223 = tpu.matmul %209, %209, %cst_75 {dimension_numbers = #tpu.dot_dimension_numbers<[1], [1], [0], [0], [0, 0, 1, 0], [], []>} : vector<8x8xf32>, vector<8x8xf32>, vector<8x8xf32> -> vector<8x8xf32>
    %224 = arith.addf %172, %223 : vector<8x8xf32>
    %225 = vector.extract_strided_slice %8 {offsets = [0, 32], sizes = [16, 8], strides = [1, 1]} : vector<16x64xf32> to vector<16x8xf32>
    %226 = vector.extract_strided_slice %5 {offsets = [0, 32], sizes = [1, 8], strides = [1, 1]} : vector<2x64xf32> to vector<1x8xf32>
    %227 = vector.extract_strided_slice %5 {offsets = [1, 32], sizes = [1, 8], strides = [1, 1]} : vector<2x64xf32> to vector<1x8xf32>
    %cst_76 = arith.constant dense<0.000000e+00> : vector<16x1xf32>
    %228 = tpu.matmul %225, %226, %cst_76 {dimension_numbers = #tpu.dot_dimension_numbers<[1], [1], [0], [0], [0, 0, 1, 0], [], []>} : vector<16x8xf32>, vector<1x8xf32>, vector<16x1xf32> -> vector<16x1xf32>
    %cst_77 = arith.constant dense<0.000000e+00> : vector<1x16xf32>
    %229 = tpu.matmul %227, %225, %cst_77 {dimension_numbers = #tpu.dot_dimension_numbers<[1], [1], [0], [0], [0, 0, 1, 0], [], []>} : vector<1x8xf32>, vector<16x8xf32>, vector<1x16xf32> -> vector<1x16xf32>
    %230 = vector.broadcast %228 : vector<16x1xf32> to vector<16x16xf32>
    %231 = vector.broadcast %229 : vector<1x16xf32> to vector<16x16xf32>
    %232 = arith.addf %230, %231 : vector<16x16xf32>
    %cst_78 = arith.constant 0.000000e+00 : f32
    %233 = vector.broadcast %cst_78 : f32 to vector<16x16xf32>
    %234 = arith.cmpf ogt, %232, %233 : vector<16x16xf32>
    %cst_79 = arith.constant 2.000000e-01 : f32
    %235 = vector.broadcast %cst_79 : f32 to vector<16x16xf32>
    %236 = arith.mulf %235, %232 : vector<16x16xf32>
    %237 = arith.select %234, %232, %236 : vector<16x16xi1>, vector<16x16xf32>
    %cst_80 = arith.constant -9.000000e+15 : f32
    %238 = vector.broadcast %cst_80 : f32 to vector<16x16xf32>
    %239 = arith.select %3, %237, %238 : vector<16x16xi1>, vector<16x16xf32>
    %cst_81 = arith.constant dense<0xFF800000> : vector<16xf32>
    %240 = vector.multi_reduction <maximumf>, %239, %cst_81 [1] : vector<16x16xf32> to vector<16xf32>
    %241 = vector.shape_cast %240 : vector<16xf32> to vector<16x1xf32>
    %242 = vector.broadcast %241 : vector<16x1xf32> to vector<16x16xf32>
    %243 = arith.subf %239, %242 : vector<16x16xf32>
    %244 = math.exp %243 : vector<16x16xf32>
    %cst_82 = arith.constant dense<0.000000e+00> : vector<16xf32>
    %245 = vector.multi_reduction <add>, %244, %cst_82 [1] : vector<16x16xf32> to vector<16xf32>
    %246 = vector.shape_cast %245 : vector<16xf32> to vector<16x1xf32>
    %cst_83 = arith.constant 1.000000e+00 : f32
    %247 = vector.broadcast %cst_83 : f32 to vector<16x1xf32>
    %248 = arith.divf %247, %246 : vector<16x1xf32>
    %cst_84 = arith.constant dense<0.000000e+00> : vector<16x8xf32>
    %249 = tpu.matmul %244, %225, %cst_84 {dimension_numbers = #tpu.dot_dimension_numbers<[1], [0], [0], [1], [0, 0, 1, 1], [], []>} : vector<16x16xf32>, vector<16x8xf32>, vector<16x8xf32> -> vector<16x8xf32>
    %250 = vector.broadcast %248 : vector<16x1xf32> to vector<16x8xf32>
    %251 = arith.mulf %249, %250 : vector<16x8xf32>
    %cst_85 = arith.constant 0.000000e+00 : f32
    %252 = vector.broadcast %cst_85 : f32 to vector<16x8xf32>
    %253 = arith.cmpf ogt, %251, %252 : vector<16x8xf32>
    %cst_86 = arith.constant 0.000000e+00 : f32
    %254 = vector.broadcast %cst_86 : f32 to vector<16x8xf32>
    %255 = arith.minimumf %251, %254 : vector<16x8xf32>
    %256 = math.exp %255 : vector<16x8xf32>
    %cst_87 = arith.constant 1.000000e+00 : f32
    %257 = vector.broadcast %cst_87 : f32 to vector<16x8xf32>
    %258 = arith.subf %256, %257 : vector<16x8xf32>
    %259 = arith.select %253, %251, %258 : vector<16x8xi1>, vector<16x8xf32>
    %cst_88 = arith.constant dense<0.000000e+00> : vector<32x8xf32>
    %260 = tpu.matmul %4, %259, %cst_88 {dimension_numbers = #tpu.dot_dimension_numbers<[1], [0], [0], [1], [0, 0, 1, 1], [], []>} : vector<32x16xf32>, vector<16x8xf32>, vector<32x8xf32> -> vector<32x8xf32>
    %261 = vector.extract_strided_slice %260 {offsets = [0, 0], sizes = [8, 8], strides = [1, 1]} : vector<32x8xf32> to vector<8x8xf32>
    %262 = vector.extract_strided_slice %260 {offsets = [8, 0], sizes = [8, 8], strides = [1, 1]} : vector<32x8xf32> to vector<8x8xf32>
    %263 = vector.extract_strided_slice %260 {offsets = [16, 0], sizes = [8, 8], strides = [1, 1]} : vector<32x8xf32> to vector<8x8xf32>
    %264 = vector.extract_strided_slice %260 {offsets = [24, 0], sizes = [8, 8], strides = [1, 1]} : vector<32x8xf32> to vector<8x8xf32>
    %265 = arith.mulf %262, %262 : vector<8x8xf32>
    %266 = arith.addf %214, %265 : vector<8x8xf32>
    %267 = arith.mulf %263, %263 : vector<8x8xf32>
    %268 = arith.addf %216, %267 : vector<8x8xf32>
    %269 = arith.mulf %264, %264 : vector<8x8xf32>
    %270 = arith.addf %218, %269 : vector<8x8xf32>
    %271 = arith.mulf %262, %263 : vector<8x8xf32>
    %272 = arith.addf %220, %271 : vector<8x8xf32>
    %273 = arith.mulf %262, %264 : vector<8x8xf32>
    %274 = arith.addf %222, %273 : vector<8x8xf32>
    %cst_89 = arith.constant dense<0.000000e+00> : vector<8x8xf32>
    %275 = tpu.matmul %261, %261, %cst_89 {dimension_numbers = #tpu.dot_dimension_numbers<[1], [1], [0], [0], [0, 0, 1, 0], [], []>} : vector<8x8xf32>, vector<8x8xf32>, vector<8x8xf32> -> vector<8x8xf32>
    %276 = arith.addf %10, %275 : vector<8x8xf32>
    %277 = vector.extract_strided_slice %6 {offsets = [0, 0], sizes = [8, 3], strides = [1, 1]} : vector<32x3xf32> to vector<8x3xf32>
    %cst_90 = arith.constant dense<0.000000e+00> : vector<8x3xf32>
    %278 = tpu.matmul %261, %277, %cst_90 {dimension_numbers = #tpu.dot_dimension_numbers<[1], [0], [0], [1], [0, 0, 1, 1], [], []>} : vector<8x8xf32>, vector<8x3xf32>, vector<8x3xf32> -> vector<8x3xf32>
    %279 = arith.addf %9, %278 : vector<8x3xf32>
    %280 = vector.extract_strided_slice %8 {offsets = [0, 40], sizes = [16, 8], strides = [1, 1]} : vector<16x64xf32> to vector<16x8xf32>
    %281 = vector.extract_strided_slice %5 {offsets = [0, 40], sizes = [1, 8], strides = [1, 1]} : vector<2x64xf32> to vector<1x8xf32>
    %282 = vector.extract_strided_slice %5 {offsets = [1, 40], sizes = [1, 8], strides = [1, 1]} : vector<2x64xf32> to vector<1x8xf32>
    %cst_91 = arith.constant dense<0.000000e+00> : vector<16x1xf32>
    %283 = tpu.matmul %280, %281, %cst_91 {dimension_numbers = #tpu.dot_dimension_numbers<[1], [1], [0], [0], [0, 0, 1, 0], [], []>} : vector<16x8xf32>, vector<1x8xf32>, vector<16x1xf32> -> vector<16x1xf32>
    %cst_92 = arith.constant dense<0.000000e+00> : vector<1x16xf32>
    %284 = tpu.matmul %282, %280, %cst_92 {dimension_numbers = #tpu.dot_dimension_numbers<[1], [1], [0], [0], [0, 0, 1, 0], [], []>} : vector<1x8xf32>, vector<16x8xf32>, vector<1x16xf32> -> vector<1x16xf32>
    %285 = vector.broadcast %283 : vector<16x1xf32> to vector<16x16xf32>
    %286 = vector.broadcast %284 : vector<1x16xf32> to vector<16x16xf32>
    %287 = arith.addf %285, %286 : vector<16x16xf32>
    %cst_93 = arith.constant 0.000000e+00 : f32
    %288 = vector.broadcast %cst_93 : f32 to vector<16x16xf32>
    %289 = arith.cmpf ogt, %287, %288 : vector<16x16xf32>
    %cst_94 = arith.constant 2.000000e-01 : f32
    %290 = vector.broadcast %cst_94 : f32 to vector<16x16xf32>
    %291 = arith.mulf %290, %287 : vector<16x16xf32>
    %292 = arith.select %289, %287, %291 : vector<16x16xi1>, vector<16x16xf32>
    %cst_95 = arith.constant -9.000000e+15 : f32
    %293 = vector.broadcast %cst_95 : f32 to vector<16x16xf32>
    %294 = arith.select %3, %292, %293 : vector<16x16xi1>, vector<16x16xf32>
    %cst_96 = arith.constant dense<0xFF800000> : vector<16xf32>
    %295 = vector.multi_reduction <maximumf>, %294, %cst_96 [1] : vector<16x16xf32> to vector<16xf32>
    %296 = vector.shape_cast %295 : vector<16xf32> to vector<16x1xf32>
    %297 = vector.broadcast %296 : vector<16x1xf32> to vector<16x16xf32>
    %298 = arith.subf %294, %297 : vector<16x16xf32>
    %299 = math.exp %298 : vector<16x16xf32>
    %cst_97 = arith.constant dense<0.000000e+00> : vector<16xf32>
    %300 = vector.multi_reduction <add>, %299, %cst_97 [1] : vector<16x16xf32> to vector<16xf32>
    %301 = vector.shape_cast %300 : vector<16xf32> to vector<16x1xf32>
    %cst_98 = arith.constant 1.000000e+00 : f32
    %302 = vector.broadcast %cst_98 : f32 to vector<16x1xf32>
    %303 = arith.divf %302, %301 : vector<16x1xf32>
    %cst_99 = arith.constant dense<0.000000e+00> : vector<16x8xf32>
    %304 = tpu.matmul %299, %280, %cst_99 {dimension_numbers = #tpu.dot_dimension_numbers<[1], [0], [0], [1], [0, 0, 1, 1], [], []>} : vector<16x16xf32>, vector<16x8xf32>, vector<16x8xf32> -> vector<16x8xf32>
    %305 = vector.broadcast %303 : vector<16x1xf32> to vector<16x8xf32>
    %306 = arith.mulf %304, %305 : vector<16x8xf32>
    %cst_100 = arith.constant 0.000000e+00 : f32
    %307 = vector.broadcast %cst_100 : f32 to vector<16x8xf32>
    %308 = arith.cmpf ogt, %306, %307 : vector<16x8xf32>
    %cst_101 = arith.constant 0.000000e+00 : f32
    %309 = vector.broadcast %cst_101 : f32 to vector<16x8xf32>
    %310 = arith.minimumf %306, %309 : vector<16x8xf32>
    %311 = math.exp %310 : vector<16x8xf32>
    %cst_102 = arith.constant 1.000000e+00 : f32
    %312 = vector.broadcast %cst_102 : f32 to vector<16x8xf32>
    %313 = arith.subf %311, %312 : vector<16x8xf32>
    %314 = arith.select %308, %306, %313 : vector<16x8xi1>, vector<16x8xf32>
    %cst_103 = arith.constant dense<0.000000e+00> : vector<32x8xf32>
    %315 = tpu.matmul %4, %314, %cst_103 {dimension_numbers = #tpu.dot_dimension_numbers<[1], [0], [0], [1], [0, 0, 1, 1], [], []>} : vector<32x16xf32>, vector<16x8xf32>, vector<32x8xf32> -> vector<32x8xf32>
    %316 = vector.extract_strided_slice %315 {offsets = [0, 0], sizes = [8, 8], strides = [1, 1]} : vector<32x8xf32> to vector<8x8xf32>
    %317 = vector.extract_strided_slice %315 {offsets = [8, 0], sizes = [8, 8], strides = [1, 1]} : vector<32x8xf32> to vector<8x8xf32>
    %318 = vector.extract_strided_slice %315 {offsets = [16, 0], sizes = [8, 8], strides = [1, 1]} : vector<32x8xf32> to vector<8x8xf32>
    %319 = vector.extract_strided_slice %315 {offsets = [24, 0], sizes = [8, 8], strides = [1, 1]} : vector<32x8xf32> to vector<8x8xf32>
    %320 = arith.mulf %317, %317 : vector<8x8xf32>
    %321 = arith.addf %266, %320 : vector<8x8xf32>
    %322 = arith.mulf %318, %318 : vector<8x8xf32>
    %323 = arith.addf %268, %322 : vector<8x8xf32>
    %324 = arith.mulf %319, %319 : vector<8x8xf32>
    %325 = arith.addf %270, %324 : vector<8x8xf32>
    %326 = arith.mulf %317, %318 : vector<8x8xf32>
    %327 = arith.addf %272, %326 : vector<8x8xf32>
    %328 = arith.mulf %317, %319 : vector<8x8xf32>
    %329 = arith.addf %274, %328 : vector<8x8xf32>
    %cst_104 = arith.constant dense<0.000000e+00> : vector<8x8xf32>
    %330 = tpu.matmul %316, %316, %cst_104 {dimension_numbers = #tpu.dot_dimension_numbers<[1], [1], [0], [0], [0, 0, 1, 0], [], []>} : vector<8x8xf32>, vector<8x8xf32>, vector<8x8xf32> -> vector<8x8xf32>
    %331 = arith.addf %276, %330 : vector<8x8xf32>
    %332 = vector.extract_strided_slice %6 {offsets = [8, 0], sizes = [8, 3], strides = [1, 1]} : vector<32x3xf32> to vector<8x3xf32>
    %cst_105 = arith.constant dense<0.000000e+00> : vector<8x3xf32>
    %333 = tpu.matmul %316, %332, %cst_105 {dimension_numbers = #tpu.dot_dimension_numbers<[1], [0], [0], [1], [0, 0, 1, 1], [], []>} : vector<8x8xf32>, vector<8x3xf32>, vector<8x3xf32> -> vector<8x3xf32>
    %334 = arith.addf %279, %333 : vector<8x3xf32>
    %335 = vector.extract_strided_slice %8 {offsets = [0, 48], sizes = [16, 8], strides = [1, 1]} : vector<16x64xf32> to vector<16x8xf32>
    %336 = vector.extract_strided_slice %5 {offsets = [0, 48], sizes = [1, 8], strides = [1, 1]} : vector<2x64xf32> to vector<1x8xf32>
    %337 = vector.extract_strided_slice %5 {offsets = [1, 48], sizes = [1, 8], strides = [1, 1]} : vector<2x64xf32> to vector<1x8xf32>
    %cst_106 = arith.constant dense<0.000000e+00> : vector<16x1xf32>
    %338 = tpu.matmul %335, %336, %cst_106 {dimension_numbers = #tpu.dot_dimension_numbers<[1], [1], [0], [0], [0, 0, 1, 0], [], []>} : vector<16x8xf32>, vector<1x8xf32>, vector<16x1xf32> -> vector<16x1xf32>
    %cst_107 = arith.constant dense<0.000000e+00> : vector<1x16xf32>
    %339 = tpu.matmul %337, %335, %cst_107 {dimension_numbers = #tpu.dot_dimension_numbers<[1], [1], [0], [0], [0, 0, 1, 0], [], []>} : vector<1x8xf32>, vector<16x8xf32>, vector<1x16xf32> -> vector<1x16xf32>
    %340 = vector.broadcast %338 : vector<16x1xf32> to vector<16x16xf32>
    %341 = vector.broadcast %339 : vector<1x16xf32> to vector<16x16xf32>
    %342 = arith.addf %340, %341 : vector<16x16xf32>
    %cst_108 = arith.constant 0.000000e+00 : f32
    %343 = vector.broadcast %cst_108 : f32 to vector<16x16xf32>
    %344 = arith.cmpf ogt, %342, %343 : vector<16x16xf32>
    %cst_109 = arith.constant 2.000000e-01 : f32
    %345 = vector.broadcast %cst_109 : f32 to vector<16x16xf32>
    %346 = arith.mulf %345, %342 : vector<16x16xf32>
    %347 = arith.select %344, %342, %346 : vector<16x16xi1>, vector<16x16xf32>
    %cst_110 = arith.constant -9.000000e+15 : f32
    %348 = vector.broadcast %cst_110 : f32 to vector<16x16xf32>
    %349 = arith.select %3, %347, %348 : vector<16x16xi1>, vector<16x16xf32>
    %cst_111 = arith.constant dense<0xFF800000> : vector<16xf32>
    %350 = vector.multi_reduction <maximumf>, %349, %cst_111 [1] : vector<16x16xf32> to vector<16xf32>
    %351 = vector.shape_cast %350 : vector<16xf32> to vector<16x1xf32>
    %352 = vector.broadcast %351 : vector<16x1xf32> to vector<16x16xf32>
    %353 = arith.subf %349, %352 : vector<16x16xf32>
    %354 = math.exp %353 : vector<16x16xf32>
    %cst_112 = arith.constant dense<0.000000e+00> : vector<16xf32>
    %355 = vector.multi_reduction <add>, %354, %cst_112 [1] : vector<16x16xf32> to vector<16xf32>
    %356 = vector.shape_cast %355 : vector<16xf32> to vector<16x1xf32>
    %cst_113 = arith.constant 1.000000e+00 : f32
    %357 = vector.broadcast %cst_113 : f32 to vector<16x1xf32>
    %358 = arith.divf %357, %356 : vector<16x1xf32>
    %cst_114 = arith.constant dense<0.000000e+00> : vector<16x8xf32>
    %359 = tpu.matmul %354, %335, %cst_114 {dimension_numbers = #tpu.dot_dimension_numbers<[1], [0], [0], [1], [0, 0, 1, 1], [], []>} : vector<16x16xf32>, vector<16x8xf32>, vector<16x8xf32> -> vector<16x8xf32>
    %360 = vector.broadcast %358 : vector<16x1xf32> to vector<16x8xf32>
    %361 = arith.mulf %359, %360 : vector<16x8xf32>
    %cst_115 = arith.constant 0.000000e+00 : f32
    %362 = vector.broadcast %cst_115 : f32 to vector<16x8xf32>
    %363 = arith.cmpf ogt, %361, %362 : vector<16x8xf32>
    %cst_116 = arith.constant 0.000000e+00 : f32
    %364 = vector.broadcast %cst_116 : f32 to vector<16x8xf32>
    %365 = arith.minimumf %361, %364 : vector<16x8xf32>
    %366 = math.exp %365 : vector<16x8xf32>
    %cst_117 = arith.constant 1.000000e+00 : f32
    %367 = vector.broadcast %cst_117 : f32 to vector<16x8xf32>
    %368 = arith.subf %366, %367 : vector<16x8xf32>
    %369 = arith.select %363, %361, %368 : vector<16x8xi1>, vector<16x8xf32>
    %cst_118 = arith.constant dense<0.000000e+00> : vector<32x8xf32>
    %370 = tpu.matmul %4, %369, %cst_118 {dimension_numbers = #tpu.dot_dimension_numbers<[1], [0], [0], [1], [0, 0, 1, 1], [], []>} : vector<32x16xf32>, vector<16x8xf32>, vector<32x8xf32> -> vector<32x8xf32>
    %371 = vector.extract_strided_slice %370 {offsets = [0, 0], sizes = [8, 8], strides = [1, 1]} : vector<32x8xf32> to vector<8x8xf32>
    %372 = vector.extract_strided_slice %370 {offsets = [8, 0], sizes = [8, 8], strides = [1, 1]} : vector<32x8xf32> to vector<8x8xf32>
    %373 = vector.extract_strided_slice %370 {offsets = [16, 0], sizes = [8, 8], strides = [1, 1]} : vector<32x8xf32> to vector<8x8xf32>
    %374 = vector.extract_strided_slice %370 {offsets = [24, 0], sizes = [8, 8], strides = [1, 1]} : vector<32x8xf32> to vector<8x8xf32>
    %375 = arith.mulf %372, %372 : vector<8x8xf32>
    %376 = arith.addf %321, %375 : vector<8x8xf32>
    %377 = arith.mulf %373, %373 : vector<8x8xf32>
    %378 = arith.addf %323, %377 : vector<8x8xf32>
    %379 = arith.mulf %374, %374 : vector<8x8xf32>
    %380 = arith.addf %325, %379 : vector<8x8xf32>
    %381 = arith.mulf %372, %373 : vector<8x8xf32>
    %382 = arith.addf %327, %381 : vector<8x8xf32>
    %383 = arith.mulf %372, %374 : vector<8x8xf32>
    %384 = arith.addf %329, %383 : vector<8x8xf32>
    %cst_119 = arith.constant dense<0.000000e+00> : vector<8x8xf32>
    %385 = tpu.matmul %371, %371, %cst_119 {dimension_numbers = #tpu.dot_dimension_numbers<[1], [1], [0], [0], [0, 0, 1, 0], [], []>} : vector<8x8xf32>, vector<8x8xf32>, vector<8x8xf32> -> vector<8x8xf32>
    %386 = arith.addf %331, %385 : vector<8x8xf32>
    %387 = vector.extract_strided_slice %6 {offsets = [16, 0], sizes = [8, 3], strides = [1, 1]} : vector<32x3xf32> to vector<8x3xf32>
    %cst_120 = arith.constant dense<0.000000e+00> : vector<8x3xf32>
    %388 = tpu.matmul %371, %387, %cst_120 {dimension_numbers = #tpu.dot_dimension_numbers<[1], [0], [0], [1], [0, 0, 1, 1], [], []>} : vector<8x8xf32>, vector<8x3xf32>, vector<8x3xf32> -> vector<8x3xf32>
    %389 = arith.addf %334, %388 : vector<8x3xf32>
    %390 = vector.extract_strided_slice %8 {offsets = [0, 56], sizes = [16, 8], strides = [1, 1]} : vector<16x64xf32> to vector<16x8xf32>
    %391 = vector.extract_strided_slice %5 {offsets = [0, 56], sizes = [1, 8], strides = [1, 1]} : vector<2x64xf32> to vector<1x8xf32>
    %392 = vector.extract_strided_slice %5 {offsets = [1, 56], sizes = [1, 8], strides = [1, 1]} : vector<2x64xf32> to vector<1x8xf32>
    %cst_121 = arith.constant dense<0.000000e+00> : vector<16x1xf32>
    %393 = tpu.matmul %390, %391, %cst_121 {dimension_numbers = #tpu.dot_dimension_numbers<[1], [1], [0], [0], [0, 0, 1, 0], [], []>} : vector<16x8xf32>, vector<1x8xf32>, vector<16x1xf32> -> vector<16x1xf32>
    %cst_122 = arith.constant dense<0.000000e+00> : vector<1x16xf32>
    %394 = tpu.matmul %392, %390, %cst_122 {dimension_numbers = #tpu.dot_dimension_numbers<[1], [1], [0], [0], [0, 0, 1, 0], [], []>} : vector<1x8xf32>, vector<16x8xf32>, vector<1x16xf32> -> vector<1x16xf32>
    %395 = vector.broadcast %393 : vector<16x1xf32> to vector<16x16xf32>
    %396 = vector.broadcast %394 : vector<1x16xf32> to vector<16x16xf32>
    %397 = arith.addf %395, %396 : vector<16x16xf32>
    %cst_123 = arith.constant 0.000000e+00 : f32
    %398 = vector.broadcast %cst_123 : f32 to vector<16x16xf32>
    %399 = arith.cmpf ogt, %397, %398 : vector<16x16xf32>
    %cst_124 = arith.constant 2.000000e-01 : f32
    %400 = vector.broadcast %cst_124 : f32 to vector<16x16xf32>
    %401 = arith.mulf %400, %397 : vector<16x16xf32>
    %402 = arith.select %399, %397, %401 : vector<16x16xi1>, vector<16x16xf32>
    %cst_125 = arith.constant -9.000000e+15 : f32
    %403 = vector.broadcast %cst_125 : f32 to vector<16x16xf32>
    %404 = arith.select %3, %402, %403 : vector<16x16xi1>, vector<16x16xf32>
    %cst_126 = arith.constant dense<0xFF800000> : vector<16xf32>
    %405 = vector.multi_reduction <maximumf>, %404, %cst_126 [1] : vector<16x16xf32> to vector<16xf32>
    %406 = vector.shape_cast %405 : vector<16xf32> to vector<16x1xf32>
    %407 = vector.broadcast %406 : vector<16x1xf32> to vector<16x16xf32>
    %408 = arith.subf %404, %407 : vector<16x16xf32>
    %409 = math.exp %408 : vector<16x16xf32>
    %cst_127 = arith.constant dense<0.000000e+00> : vector<16xf32>
    %410 = vector.multi_reduction <add>, %409, %cst_127 [1] : vector<16x16xf32> to vector<16xf32>
    %411 = vector.shape_cast %410 : vector<16xf32> to vector<16x1xf32>
    %cst_128 = arith.constant 1.000000e+00 : f32
    %412 = vector.broadcast %cst_128 : f32 to vector<16x1xf32>
    %413 = arith.divf %412, %411 : vector<16x1xf32>
    %cst_129 = arith.constant dense<0.000000e+00> : vector<16x8xf32>
    %414 = tpu.matmul %409, %390, %cst_129 {dimension_numbers = #tpu.dot_dimension_numbers<[1], [0], [0], [1], [0, 0, 1, 1], [], []>} : vector<16x16xf32>, vector<16x8xf32>, vector<16x8xf32> -> vector<16x8xf32>
    %415 = vector.broadcast %413 : vector<16x1xf32> to vector<16x8xf32>
    %416 = arith.mulf %414, %415 : vector<16x8xf32>
    %cst_130 = arith.constant 0.000000e+00 : f32
    %417 = vector.broadcast %cst_130 : f32 to vector<16x8xf32>
    %418 = arith.cmpf ogt, %416, %417 : vector<16x8xf32>
    %cst_131 = arith.constant 0.000000e+00 : f32
    %419 = vector.broadcast %cst_131 : f32 to vector<16x8xf32>
    %420 = arith.minimumf %416, %419 : vector<16x8xf32>
    %421 = math.exp %420 : vector<16x8xf32>
    %cst_132 = arith.constant 1.000000e+00 : f32
    %422 = vector.broadcast %cst_132 : f32 to vector<16x8xf32>
    %423 = arith.subf %421, %422 : vector<16x8xf32>
    %424 = arith.select %418, %416, %423 : vector<16x8xi1>, vector<16x8xf32>
    %cst_133 = arith.constant dense<0.000000e+00> : vector<32x8xf32>
    %425 = tpu.matmul %4, %424, %cst_133 {dimension_numbers = #tpu.dot_dimension_numbers<[1], [0], [0], [1], [0, 0, 1, 1], [], []>} : vector<32x16xf32>, vector<16x8xf32>, vector<32x8xf32> -> vector<32x8xf32>
    %426 = vector.extract_strided_slice %425 {offsets = [0, 0], sizes = [8, 8], strides = [1, 1]} : vector<32x8xf32> to vector<8x8xf32>
    %427 = vector.extract_strided_slice %425 {offsets = [8, 0], sizes = [8, 8], strides = [1, 1]} : vector<32x8xf32> to vector<8x8xf32>
    %428 = vector.extract_strided_slice %425 {offsets = [16, 0], sizes = [8, 8], strides = [1, 1]} : vector<32x8xf32> to vector<8x8xf32>
    %429 = vector.extract_strided_slice %425 {offsets = [24, 0], sizes = [8, 8], strides = [1, 1]} : vector<32x8xf32> to vector<8x8xf32>
    %430 = arith.mulf %427, %427 : vector<8x8xf32>
    %431 = arith.addf %376, %430 : vector<8x8xf32>
    %432 = arith.mulf %428, %428 : vector<8x8xf32>
    %433 = arith.addf %378, %432 : vector<8x8xf32>
    %434 = arith.mulf %429, %429 : vector<8x8xf32>
    %435 = arith.addf %380, %434 : vector<8x8xf32>
    %436 = arith.mulf %427, %428 : vector<8x8xf32>
    %437 = arith.addf %382, %436 : vector<8x8xf32>
    %438 = arith.mulf %427, %429 : vector<8x8xf32>
    %439 = arith.addf %384, %438 : vector<8x8xf32>
    %cst_134 = arith.constant dense<0.000000e+00> : vector<8x8xf32>
    %440 = tpu.matmul %426, %426, %cst_134 {dimension_numbers = #tpu.dot_dimension_numbers<[1], [1], [0], [0], [0, 0, 1, 0], [], []>} : vector<8x8xf32>, vector<8x8xf32>, vector<8x8xf32> -> vector<8x8xf32>
    %441 = arith.addf %386, %440 : vector<8x8xf32>
    %442 = vector.extract_strided_slice %6 {offsets = [24, 0], sizes = [8, 3], strides = [1, 1]} : vector<32x3xf32> to vector<8x3xf32>
    %cst_135 = arith.constant dense<0.000000e+00> : vector<8x3xf32>
    %443 = tpu.matmul %426, %442, %cst_135 {dimension_numbers = #tpu.dot_dimension_numbers<[1], [0], [0], [1], [0, 0, 1, 1], [], []>} : vector<8x8xf32>, vector<8x3xf32>, vector<8x3xf32> -> vector<8x3xf32>
    %444 = arith.addf %389, %443 : vector<8x3xf32>
    %c0_136 = arith.constant 0 : index
    %c0_137 = arith.constant 0 : index
    %445 = vector.load %arg5[%c0_136, %c0_137] : memref<1x3xf32, #tpu.memory_space<vmem>>, vector<1x3xf32>
    %446 = vector.broadcast %445 : vector<1x3xf32> to vector<8x3xf32>
    %447 = arith.addf %444, %446 : vector<8x3xf32>
    %448 = arith.negf %447 : vector<8x3xf32>
    %449 = math.exp %448 : vector<8x3xf32>
    %cst_138 = arith.constant 1.000000e+00 : f32
    %450 = vector.broadcast %cst_138 : f32 to vector<8x3xf32>
    %451 = arith.addf %450, %449 : vector<8x3xf32>
    %452 = arith.divf %450, %451 : vector<8x3xf32>
    %cst_139 = arith.constant dense<0xFF800000> : vector<8xf32>
    %453 = vector.multi_reduction <maximumf>, %452, %cst_139 [1] : vector<8x3xf32> to vector<8xf32>
    %454 = vector.shape_cast %453 : vector<8xf32> to vector<8x1xf32>
    %455 = vector.broadcast %454 : vector<8x1xf32> to vector<8x3xf32>
    %456 = arith.subf %452, %455 : vector<8x3xf32>
    %457 = math.exp %456 : vector<8x3xf32>
    %cst_140 = arith.constant dense<0.000000e+00> : vector<8xf32>
    %458 = vector.multi_reduction <add>, %457, %cst_140 [1] : vector<8x3xf32> to vector<8xf32>
    %459 = vector.shape_cast %458 : vector<8xf32> to vector<8x1xf32>
    %460 = vector.broadcast %459 : vector<8x1xf32> to vector<8x3xf32>
    %461 = arith.divf %457, %460 : vector<8x3xf32>
    %462 = math.exp %461 : vector<8x3xf32>
    %cst_141 = arith.constant dense<0.000000e+00> : vector<8xf32>
    %463 = vector.multi_reduction <add>, %462, %cst_141 [1] : vector<8x3xf32> to vector<8xf32>
    %464 = vector.shape_cast %463 : vector<8xf32> to vector<8x1xf32>
    %465 = math.log %464 : vector<8x1xf32>
    %466 = tpu.iota {dimensions = array<i32: 1>} : vector<8x3xi32>
    %c0_142 = arith.constant 0 : index
    %c0_143 = arith.constant 0 : index
    %467 = vector.load %arg7[%c0_142, %c0_143] : memref<8x1xi32, #tpu.memory_space<vmem>>, vector<8x1xi32>
    %468 = vector.broadcast %467 : vector<8x1xi32> to vector<8x3xi32>
    %469 = arith.cmpi eq, %466, %468 : vector<8x3xi32>
    %470 = arith.extui %469 : vector<8x3xi1> to vector<8x3xi32>
    %471 = arith.sitofp %470 : vector<8x3xi32> to vector<8x3xf32>
    %472 = arith.mulf %471, %461 : vector<8x3xf32>
    %cst_144 = arith.constant dense<0.000000e+00> : vector<8xf32>
    %473 = vector.multi_reduction <add>, %472, %cst_144 [1] : vector<8x3xf32> to vector<8xf32>
    %474 = vector.shape_cast %473 : vector<8xf32> to vector<8x1xf32>
    %475 = tpu.iota {dimensions = array<i32: 0>} : vector<8x1xi32>
    %c6_i32 = arith.constant 6 : i32
    %476 = vector.broadcast %c6_i32 : i32 to vector<8x1xi32>
    %477 = arith.cmpi slt, %475, %476 : vector<8x1xi32>
    %478 = arith.extui %477 : vector<8x1xi1> to vector<8x1xi32>
    %479 = arith.sitofp %478 : vector<8x1xi32> to vector<8x1xf32>
    %480 = arith.subf %465, %474 : vector<8x1xf32>
    %481 = arith.mulf %480, %479 : vector<8x1xf32>
    %cst_145 = arith.constant dense<0.000000e+00> : vector<1xf32>
    %482 = vector.multi_reduction <add>, %481, %cst_145 [0] : vector<8x1xf32> to vector<1xf32>
    %483 = vector.shape_cast %482 : vector<1xf32> to vector<1x1xf32>
    %cst_146 = arith.constant 0.166666672 : f32
    %484 = vector.broadcast %cst_146 : f32 to vector<1x1xf32>
    %485 = arith.mulf %483, %484 : vector<1x1xf32>
    %c0_147 = arith.constant 0 : index
    %c0_148 = arith.constant 0 : index
    %486 = vector.load %arg9[%c0_147, %c0_148] : memref<1x1xf32, #tpu.memory_space<vmem>>, vector<1x1xf32>
    tpu.vector_store %arg9[%c0_147, %c0_148], %485 {strides = array<i32>} : memref<1x1xf32, #tpu.memory_space<vmem>>, vector<1x1xf32>,
    %487 = arith.mulf %441, %224 : vector<8x8xf32>
    %cst_149 = arith.constant dense<0.000000e+00> : vector<8xf32>
    %488 = vector.multi_reduction <add>, %487, %cst_149 [1] : vector<8x8xf32> to vector<8xf32>
    %489 = vector.shape_cast %488 : vector<8xf32> to vector<8x1xf32>
    %cst_150 = arith.constant dense<0.000000e+00> : vector<1xf32>
    %490 = vector.multi_reduction <add>, %489, %cst_150 [0] : vector<8x1xf32> to vector<1xf32>
    %491 = vector.shape_cast %490 : vector<1xf32> to vector<1x1xf32>
    %c0_151 = arith.constant 0 : index
    %c0_152 = arith.constant 0 : index
    %492 = vector.load %arg10[%c0_151, %c0_152] : memref<1x1xf32, #tpu.memory_space<vmem>>, vector<1x1xf32>
    tpu.vector_store %arg10[%c0_151, %c0_152], %491 {strides = array<i32>} : memref<1x1xf32, #tpu.memory_space<vmem>>, vector<1x1xf32>,
    %cst_153 = arith.constant dense<0.000000e+00> : vector<8xf32>
    %493 = vector.multi_reduction <add>, %431, %cst_153 [1] : vector<8x8xf32> to vector<8xf32>
    %494 = vector.shape_cast %493 : vector<8xf32> to vector<8x1xf32>
    %cst_154 = arith.constant dense<0.000000e+00> : vector<8xf32>
    %495 = vector.multi_reduction <add>, %433, %cst_154 [1] : vector<8x8xf32> to vector<8xf32>
    %496 = vector.shape_cast %495 : vector<8xf32> to vector<8x1xf32>
    %cst_155 = arith.constant dense<0.000000e+00> : vector<8xf32>
    %497 = vector.multi_reduction <add>, %435, %cst_155 [1] : vector<8x8xf32> to vector<8xf32>
    %498 = vector.shape_cast %497 : vector<8xf32> to vector<8x1xf32>
    %cst_156 = arith.constant dense<0.000000e+00> : vector<8xf32>
    %499 = vector.multi_reduction <add>, %437, %cst_156 [1] : vector<8x8xf32> to vector<8xf32>
    %500 = vector.shape_cast %499 : vector<8xf32> to vector<8x1xf32>
    %cst_157 = arith.constant dense<0.000000e+00> : vector<8xf32>
    %501 = vector.multi_reduction <add>, %439, %cst_157 [1] : vector<8x8xf32> to vector<8xf32>
    %502 = vector.shape_cast %501 : vector<8xf32> to vector<8x1xf32>
    %cst_158 = arith.constant 9.99999974E-6 : f32
    %503 = vector.broadcast %cst_158 : f32 to vector<8x1xf32>
    %504 = arith.addf %494, %503 : vector<8x1xf32>
    %505 = math.sqrt %504 : vector<8x1xf32>
    %cst_159 = arith.constant 9.99999974E-6 : f32
    %506 = vector.broadcast %cst_159 : f32 to vector<8x1xf32>
    %507 = arith.addf %496, %506 : vector<8x1xf32>
    %508 = math.sqrt %507 : vector<8x1xf32>
    %cst_160 = arith.constant 9.99999974E-6 : f32
    %509 = vector.broadcast %cst_160 : f32 to vector<8x1xf32>
    %510 = arith.addf %498, %509 : vector<8x1xf32>
    %511 = math.sqrt %510 : vector<8x1xf32>
    %512 = arith.mulf %505, %508 : vector<8x1xf32>
    %513 = arith.divf %500, %512 : vector<8x1xf32>
    %514 = arith.mulf %505, %511 : vector<8x1xf32>
    %515 = arith.divf %502, %514 : vector<8x1xf32>
    %516 = arith.subf %513, %515 : vector<8x1xf32>
    %517 = vector.extract_strided_slice %516 {offsets = [0, 0], sizes = [2, 1], strides = [1, 1]} : vector<8x1xf32> to vector<2x1xf32>
    %c0_161 = arith.constant 0 : index
    %c0_162 = arith.constant 0 : index
    %518 = vector.load %arg8[%c0_161, %c0_162] : memref<2x1xf32, #tpu.memory_space<vmem>>, vector<2x1xf32>
    tpu.vector_store %arg8[%c0_161, %c0_162], %517 {strides = array<i32>} : memref<2x1xf32, #tpu.memory_space<vmem>>, vector<2x1xf32>,
    return
  }
}

</mosaic_0001>

<llo_original>
// kernel: tpu_custom_call.1
$region0: #{tpu_custom_call.1}
  #allocation0 [shape = 'u32[]', space=smem, size = 0x4, offset = 0x4, fixed_abs, tag = 'smem constant byte address 0x4 - core index']
  #allocation1 [shape = 'u32[144,128]{1,0:T(1,128)}', space=vmem, size = 0x12000, scoped, tag = 'internal scratch']
  %s0 = inlined_call_operand.vmem [shape: f32[16,32], index: 0, kind: input, shape index: {}]
  %s1 = inlined_call_operand.vmem [shape: bf16[16,16], index: 1, kind: input, shape index: {}]
  %s2 = inlined_call_operand.vmem [shape: f32[32,64], index: 2, kind: input, shape index: {}]
  %s3 = inlined_call_operand.vmem [shape: f32[2,64], index: 3, kind: input, shape index: {}]
  %s4 = inlined_call_operand.vmem [shape: f32[32,3], index: 4, kind: input, shape index: {}]
  %s5 = inlined_call_operand.vmem [shape: f32[1,3], index: 5, kind: input, shape index: {}]
  %s6 = inlined_call_operand.vmem [shape: f32[32,16], index: 6, kind: input, shape index: {}]
  %s7 = inlined_call_operand.vmem [shape: s32[8,1], index: 7, kind: input, shape index: {}]
  %s8 = inlined_call_operand.vmem [shape: f32[2,1], index: 8, kind: output, shape index: {0}]
  %s9 = inlined_call_operand.hbm [shape: f32[1,1], index: 9, kind: output, shape index: {1}]
  %s10 = inlined_call_operand.hbm [shape: f32[1,1], index: 10, kind: output, shape index: {2}]
  %11 = xla_tuple %s8, %s9, %s10
  %s12 = sld [smem:[#allocation0]]
  $region58: #{tpu_custom_call.1} parent=0
    _
  %s14 = ssub.s32 1, %s12
  %s15 = scalar_select 0, %s14, %s12
  $region1: #{tpu_custom_call.1} parent=0
    #allocation2 [shape = 'u8[512]{0}', space=vmem, size = 0x400, scoped, tag = 'output window, operand 1, single buffered']
    #allocation3 [shape = 's32[1]{0}', space=sflag, size = 0x4, scoped, tag = 'scoped memory for tpu_custom_call.1']
    #allocation4 [shape = 'u8[512]{0}', space=vmem, size = 0x400, scoped, tag = 'output window, operand 2, single buffered']
    #allocation5 [shape = 's32[1]{0}', space=sflag, size = 0x4, scoped, tag = 'scoped memory for tpu_custom_call.1']
    %16 = vsyncpa [#allocation3], 0
    %17 = vsyncpa [#allocation5], 0
    // Predicated region
    $region2: #{tpu_custom_call.1} parent=1 // pred_check
      _
    $region3: #{tpu_custom_call.1} parent=1 // pred_check_branch
      %19 = sbr.rel (0) target = $region5
    $region4: #{tpu_custom_call.1} parent=1 // pred_region
      _
    $region5: #{tpu_custom_call.1} parent=1 // pred_fallthru
      _
    // Predicated region
    $region6: #{tpu_custom_call.1} parent=1 // pred_check
      _
    $region7: #{tpu_custom_call.1} parent=1 // pred_check_branch
      %21 = sbr.rel (0) target = $region9
    $region8: #{tpu_custom_call.1} parent=1 // pred_region
      _
    $region9: #{tpu_custom_call.1} parent=1 // pred_fallthru
      _
    // Predicated region
    $region10: #{tpu_custom_call.1} parent=1 // pred_check
      _
    $region11: #{tpu_custom_call.1} parent=1 // pred_check_branch
      %23 = sbr.rel (0) target = $region13
    $region12: #{tpu_custom_call.1} parent=1 // pred_region
      _
    $region13: #{tpu_custom_call.1} parent=1 // pred_fallthru
      _
    // Predicated region
    $region14: #{tpu_custom_call.1} parent=1 // pred_check
      _
    $region15: #{tpu_custom_call.1} parent=1 // pred_check_branch
      %25 = sbr.rel (0) target = $region17
    $region16: #{tpu_custom_call.1} parent=1 // pred_region
      _
    $region17: #{tpu_custom_call.1} parent=1 // pred_fallthru
      _
    // Predicated region
    $region18: #{tpu_custom_call.1} parent=1 // pred_check
      _
    $region19: #{tpu_custom_call.1} parent=1 // pred_check_branch
      %27 = sbr.rel (0) target = $region21
    $region20: #{tpu_custom_call.1} parent=1 // pred_region
      _
    $region21: #{tpu_custom_call.1} parent=1 // pred_fallthru
      _
    // Predicated region
    $region22: #{tpu_custom_call.1} parent=1 // pred_check
      _
    $region23: #{tpu_custom_call.1} parent=1 // pred_check_branch
      %29 = sbr.rel (0) target = $region25
    $region24: #{tpu_custom_call.1} parent=1 // pred_region
      _
    $region25: #{tpu_custom_call.1} parent=1 // pred_fallthru
      _
    // Predicated region
    $region26: #{tpu_custom_call.1} parent=1 // pred_check
      _
    $region27: #{tpu_custom_call.1} parent=1 // pred_check_branch
      %31 = sbr.rel (0) target = $region29
    $region28: #{tpu_custom_call.1} parent=1 // pred_region
      _
    $region29: #{tpu_custom_call.1} parent=1 // pred_fallthru
      _
    // Predicated region
    $region30: #{tpu_custom_call.1} parent=1 // pred_check
      _
    $region31: #{tpu_custom_call.1} parent=1 // pred_check_branch
      %33 = sbr.rel (0) target = $region33
    $region32: #{tpu_custom_call.1} parent=1 // pred_region
      _
    $region33: #{tpu_custom_call.1} parent=1 // pred_fallthru
      _
    %v37 = vld [vmem:[%s0] sm:$0xff]
    %v38 = vld [vmem:[%s0 + $0x8] sm:$0xff]
    %v39 = vld [vmem:[%s1] sm:$0xf]
    %v40 = vld [vmem:[%s1 + $0x4] sm:$0xf]
    %vm41 = vcmp.gt.bf16.partialorder %v39, 0
    %vm42 = vcmp.gt.bf16.partialorder %v40, 0
    %v43 = vld [vmem:[%s6] sm:$0xff]
    %v44 = vld [vmem:[%s6 + $0x8] sm:$0xff]
    %v45 = vld [vmem:[%s6 + $0x10] sm:$0xff]
    %v46 = vld [vmem:[%s6 + $0x18] sm:$0xff]
    %v47 = vld [vmem:[%s3] sm:$0x3]
    %v48 = vld [vmem:[%s4] sm:$0xff]
    %v49 = vld [vmem:[%s4 + $0x8] sm:$0xff]
    %v50 = vld [vmem:[%s4 + $0x10] sm:$0xff]
    %v51 = vld [vmem:[%s4 + $0x18] sm:$0xff]
    %v52 = vld [vmem:[%s2] sm:$0xff]
    %v53 = vld [vmem:[%s2 + $0x8] sm:$0xff]
    %v54 = vld [vmem:[%s2 + $0x10] sm:$0xff]
    %v55 = vld [vmem:[%s2 + $0x18] sm:$0xff]
    %vm56 = vcmask 261120
    %v58 = vsel %vm56, %v37, 0
    %v61 = vsel %vm56, %v38, 0
    %63 = vmatprep.subr.mxu0 0.0
    %64 = vmatpush1.msra.mxu0 0.0
    %65 = vmatprep.subr.mxu0 0.0
    %66 = vmatpush1.msra.mxu0 0.0
    %67 = vmatprep.subr.mxu0 0.0
    %68 = vmatpush1.msra.mxu0 0.0
    %69 = vmatprep.subr.mxu0 0.0
    %70 = vmatpush1.msra.mxu0 0.0
    %71 = vmatprep.subr.mxu0 0.0
    %72 = vmatpush1.msra.mxu0 0.0
    %73 = vmatprep.subr.mxu0 0.0
    %74 = vmatpush1.msra.mxu0 0.0
    %75 = vmatprep.subr.mxu0 0.0
    %76 = vmatpush1.msra.mxu0 0.0
    %77 = vmatprep.subr.mxu0 0.0
    %78 = vmatpush1.msra.mxu0 0.0
    %79 = vmatprep.subr.mxu0 0.0
    %80 = vmatpush1.msra.mxu0 0.0
    %81 = vmatprep.subr.mxu0 0.0
    %82 = vmatpush1.msra.mxu0 0.0
    %83 = vmatprep.subr.mxu0 0.0
    %84 = vmatpush1.msra.mxu0 0.0
    %85 = vmatprep.subr.mxu0 0.0
    %86 = vmatpush1.msra.mxu0 0.0
    %87 = vmatprep.subr.mxu0 0.0
    %88 = vmatpush1.msra.mxu0 %v55
    %89 = vmatprep.subr.mxu0 0.0
    %90 = vmatpush1.msra.mxu0 %v54
    %91 = vmatprep.subr.mxu0 0.0
    %92 = vmatpush1.msra.mxu0 %v53
    %93 = vmatprep.subr.mxu0 0.0
    %94 = vmatpush1.msra.mxu0 %v52
    %95 = vmatprep.subr.mxu0 0.0
    %96 = vmatpush2.msra.mxu0 0.0
    %97 = vmatprep.subr.mxu0 0.0
    %98 = vmatpush2.msra.mxu0 0.0
    %99 = vmatprep.subr.mxu0 0.0
    %100 = vmatpush2.msra.mxu0 0.0
    %101 = vmatprep.subr.mxu0 0.0
    %102 = vmatpush2.msra.mxu0 0.0
    %103 = vmatprep.subr.mxu0 0.0
    %104 = vmatpush2.msra.mxu0 0.0
    %105 = vmatprep.subr.mxu0 0.0
    %106 = vmatpush2.msra.mxu0 0.0
    %107 = vmatprep.subr.mxu0 0.0
    %108 = vmatpush2.msra.mxu0 0.0
    %109 = vmatprep.subr.mxu0 0.0
    %110 = vmatpush2.msra.mxu0 0.0
    %111 = vmatprep.subr.mxu0 0.0
    %112 = vmatpush2.msra.mxu0 0.0
    %113 = vmatprep.subr.mxu0 0.0
    %114 = vmatpush2.msra.mxu0 0.0
    %115 = vmatprep.subr.mxu0 0.0
    %116 = vmatpush2.msra.mxu0 0.0
    %117 = vmatprep.subr.mxu0 0.0
    %118 = vmatpush2.msra.mxu0 0.0
    %119 = vmatprep.subr.mxu0 0.0
    %120 = vmatpush2.msra.mxu0 0.0
    %121 = vmatprep.subr.mxu0 0.0
    %122 = vmatpush2.msra.mxu0 0.0
    %123 = vmatprep.subr.mxu0 0.0
    %124 = vmatpush2.msra.mxu0 0.0
    %125 = vmatprep.subr.mxu0 0.0
    %126 = vmatpush2.msra.mxu0 0.0
    %127 = vmatprep.mubr.f32.mxu0 0.0
    %128 = vmatmul.mubr.f32.gmra.mxu0 %v58
    %v129 = vpop.f32.mrf.mxu0
    %v130 = vadd.f32 0.0, %v129
    %v131 = vpop.f32.mrf.mxu0
    %132 = vmatprep.mubr.f32.mxu0 0.0
    %133 = vmatmul.mubr.f32.gmra.mxu0 %v61
    %v134 = vpop.f32.mrf.mxu0
    %v135 = vadd.f32 0.0, %v134
    %v136 = vpop.f32.mrf.mxu0
    %137 = vdwg.mxu0
    %v138 = vlaneseq
    %v139 = vshrl.u32 %v138, 7
    %v140 = vsub.s32 0, %v139
    %v141 = vrot.slane %v47, %v140
    %v142 = vmul.f32 %v130, %v141
    %v143 = vmul.f32 %v135, %v141
    %vm144 = vcmask 64512
    %v145 = vsel %vm144, %v142, 0.0
    %146 = vadd.xlane.f32.xlu0 %v145
    %v147 = vpop.xlane.xlu0 %146
    %v148 = vsel %vm144, %v143, 0.0
    %149 = vadd.xlane.f32.xlu0 %v148
    %v150 = vpop.xlane.xlu0 %149
    %v152 = vrot.slane %v47, 1
    %v153 = vsel %vm144, %v152, 0
    %v156 = vsel %vm144, %v130, 0
    %v159 = vsel %vm144, %v135, 0
    %161 = vmatprep.subr.mxu0 0.0
    %162 = vmatpush1.xpose.msra.mxu0 0.0
    %163 = vmatprep.subr.mxu0 0.0
    %164 = vmatpush1.xpose.msra.mxu0 0.0
    %165 = vmatprep.subr.mxu0 0.0
    %166 = vmatpush1.xpose.msra.mxu0 0.0
    %167 = vmatprep.subr.mxu0 0.0
    %168 = vmatpush1.xpose.msra.mxu0 0.0
    %169 = vmatprep.subr.mxu0 0.0
    %170 = vmatpush1.xpose.msra.mxu0 0.0
    %171 = vmatprep.subr.mxu0 0.0
    %172 = vmatpush1.xpose.msra.mxu0 0.0
    %173 = vmatprep.subr.mxu0 0.0
    %174 = vmatpush1.xpose.msra.mxu0 0.0
    %175 = vmatprep.subr.mxu0 0.0
    %176 = vmatpush1.xpose.msra.mxu0 0.0
    %177 = vmatprep.subr.mxu0 0.0
    %178 = vmatpush1.xpose.msra.mxu0 0.0
    %179 = vmatprep.subr.mxu0 0.0
    %180 = vmatpush1.xpose.msra.mxu0 0.0
    %181 = vmatprep.subr.mxu0 0.0
    %182 = vmatpush1.xpose.msra.mxu0 0.0
    %183 = vmatprep.subr.mxu0 0.0
    %184 = vmatpush1.xpose.msra.mxu0 0.0
    %185 = vmatprep.subr.mxu0 0.0
    %186 = vmatpush1.xpose.msra.mxu0 0.0
    %187 = vmatprep.subr.mxu0 0.0
    %188 = vmatpush1.xpose.msra.mxu0 0.0
    %189 = vmatprep.subr.mxu0 0.0
    %190 = vmatpush1.xpose.msra.mxu0 %v159
    %191 = vmatprep.subr.mxu0 0.0
    %192 = vmatpush1.xpose.msra.mxu0 %v156
    %193 = vmatprep.subr.mxu0 0.0
    %194 = vmatpush2.xpose.msra.mxu0 0.0
    %195 = vmatprep.subr.mxu0 0.0
    %196 = vmatpush2.xpose.msra.mxu0 0.0
    %197 = vmatprep.subr.mxu0 0.0
    %198 = vmatpush2.xpose.msra.mxu0 0.0
    %199 = vmatprep.subr.mxu0 0.0
    %200 = vmatpush2.xpose.msra.mxu0 0.0
    %201 = vmatprep.subr.mxu0 0.0
    %202 = vmatpush2.xpose.msra.mxu0 0.0
    %203 = vmatprep.subr.mxu0 0.0
    %204 = vmatpush2.xpose.msra.mxu0 0.0
    %205 = vmatprep.subr.mxu0 0.0
    %206 = vmatpush2.xpose.msra.mxu0 0.0
    %207 = vmatprep.subr.mxu0 0.0
    %208 = vmatpush2.xpose.msra.mxu0 0.0
    %209 = vmatprep.subr.mxu0 0.0
    %210 = vmatpush2.xpose.msra.mxu0 0.0
    %211 = vmatprep.subr.mxu0 0.0
    %212 = vmatpush2.xpose.msra.mxu0 0.0
    %213 = vmatprep.subr.mxu0 0.0
    %214 = vmatpush2.xpose.msra.mxu0 0.0
    %215 = vmatprep.subr.mxu0 0.0
    %216 = vmatpush2.xpose.msra.mxu0 0.0
    %217 = vmatprep.subr.mxu0 0.0
    %218 = vmatpush2.xpose.msra.mxu0 0.0
    %219 = vmatprep.subr.mxu0 0.0
    %220 = vmatpush2.xpose.msra.mxu0 0.0
    %221 = vmatprep.subr.mxu0 0.0
    %222 = vmatpush2.xpose.msra.mxu0 0.0
    %223 = vmatprep.subr.mxu0 0.0
    %224 = vmatpush2.xpose.msra.mxu0 0.0
    %225 = vmatprep.mubr.f32.mxu0 0.0
    %226 = vmatmul.mubr.f32.gmra.mxu0 %v153
    %v227 = vpop.f32.mrf.mxu0
    %v228 = vadd.f32 0.0, %v227
    %v229 = vpop.f32.mrf.mxu0
    %230 = vdwg.mxu0
    %v231 = vlaneseq
    %v232 = vshrl.u32 %v231, 7
    %v233 = vsub.s32 0, %v232
    %v234 = vrot.slane %v228, %v233
    %v235 = vadd.f32 %v147, %v234
    %v236 = vadd.f32 %v150, %v234
    %vm237 = vcmp.gt.f32.partialorder %v235, 0.0
    %vm238 = vcmp.gt.f32.partialorder %v236, 0.0
    %v239 = vmul.f32 %v235, 0.2
    %v240 = vmul.f32 %v236, 0.2
    %v241 = vsel %vm237, %v235, %v239
    %v242 = vsel %vm238, %v236, %v240
    %v243 = vsel %vm41, 65537, 0
    %v244 = vsel %vm42, 65537, 0
    %v245 = vunpack.c.l.b16 %v243
    %v246 = vunpack.c.l.b16 %v244
    %vm247 = vcmp.ne.s32.totalorder %v245, 0
    %vm248 = vcmp.ne.s32.totalorder %v246, 0
    %v249 = vsel %vm247, %v241, -9e+15
    %v250 = vsel %vm248, %v242, -9e+15
    %vm251 = vcmask 130048
    %v252 = vsel %vm251, %v249, -inf
    %253 = vmax.xlane.f32.xlu0 %v252
    %v254 = vpop.xlane.xlu0 %253
    %v255 = vsel %vm251, %v250, -inf
    %256 = vmax.xlane.f32.xlu0 %v255
    %v257 = vpop.xlane.xlu0 %256
    %v258 = vsub.f32 %v249, %v254
    %v259 = vsub.f32 %v250, %v257
    %v260 = vmul.f32 %v258, 1.442695
    %v261 = vpow.pop %v260
    %v262 = vmul.f32 %v259, 1.442695
    %v263 = vpow.pop %v262
    %v264 = vsel %vm251, %v261, 0.0
    %265 = vadd.xlane.f32.xlu0 %v264
    %v266 = vpop.xlane.xlu0 %265
    %v267 = vsel %vm251, %v263, 0.0
    %268 = vadd.xlane.f32.xlu0 %v267
    %v269 = vpop.xlane.xlu0 %268
    %v270 = vrcp.pop %v266
    %v271 = vmul.f32 1.0, %v270
    %v272 = vrcp.pop %v269
    %v273 = vmul.f32 1.0, %v272
    %v275 = vsel %vm251, %v261, 0
    %v278 = vsel %vm251, %v263, 0
    %280 = vmatprep.subr.mxu0 0.0
    %281 = vmatpush1.msra.mxu0 0.0
    %282 = vmatprep.subr.mxu0 0.0
    %283 = vmatpush1.msra.mxu0 0.0
    %284 = vmatprep.subr.mxu0 0.0
    %285 = vmatpush1.msra.mxu0 0.0
    %286 = vmatprep.subr.mxu0 0.0
    %287 = vmatpush1.msra.mxu0 0.0
    %288 = vmatprep.subr.mxu0 0.0
    %289 = vmatpush1.msra.mxu0 0.0
    %290 = vmatprep.subr.mxu0 0.0
    %291 = vmatpush1.msra.mxu0 0.0
    %292 = vmatprep.subr.mxu0 0.0
    %293 = vmatpush1.msra.mxu0 0.0
    %294 = vmatprep.subr.mxu0 0.0
    %295 = vmatpush1.msra.mxu0 0.0
    %296 = vmatprep.subr.mxu0 0.0
    %297 = vmatpush1.msra.mxu0 0.0
    %298 = vmatprep.subr.mxu0 0.0
    %299 = vmatpush1.msra.mxu0 0.0
    %300 = vmatprep.subr.mxu0 0.0
    %301 = vmatpush1.msra.mxu0 0.0
    %302 = vmatprep.subr.mxu0 0.0
    %303 = vmatpush1.msra.mxu0 0.0
    %304 = vmatprep.subr.mxu0 0.0
    %305 = vmatpush1.msra.mxu0 0.0
    %306 = vmatprep.subr.mxu0 0.0
    %307 = vmatpush1.msra.mxu0 0.0
    %308 = vmatprep.subr.mxu0 0.0
    %309 = vmatpush1.msra.mxu0 %v135
    %310 = vmatprep.subr.mxu0 0.0
    %311 = vmatpush1.msra.mxu0 %v130
    %312 = vmatprep.subr.mxu0 0.0
    %313 = vmatpush2.msra.mxu0 0.0
    %314 = vmatprep.subr.mxu0 0.0
    %315 = vmatpush2.msra.mxu0 0.0
    %316 = vmatprep.subr.mxu0 0.0
    %317 = vmatpush2.msra.mxu0 0.0
    %318 = vmatprep.subr.mxu0 0.0
    %319 = vmatpush2.msra.mxu0 0.0
    %320 = vmatprep.subr.mxu0 0.0
    %321 = vmatpush2.msra.mxu0 0.0
    %322 = vmatprep.subr.mxu0 0.0
    %323 = vmatpush2.msra.mxu0 0.0
    %324 = vmatprep.subr.mxu0 0.0
    %325 = vmatpush2.msra.mxu0 0.0
    %326 = vmatprep.subr.mxu0 0.0
    %327 = vmatpush2.msra.mxu0 0.0
    %328 = vmatprep.subr.mxu0 0.0
    %329 = vmatpush2.msra.mxu0 0.0
    %330 = vmatprep.subr.mxu0 0.0
    %331 = vmatpush2.msra.mxu0 0.0
    %332 = vmatprep.subr.mxu0 0.0
    %333 = vmatpush2.msra.mxu0 0.0
    %334 = vmatprep.subr.mxu0 0.0
    %335 = vmatpush2.msra.mxu0 0.0
    %336 = vmatprep.subr.mxu0 0.0
    %337 = vmatpush2.msra.mxu0 0.0
    %338 = vmatprep.subr.mxu0 0.0
    %339 = vmatpush2.msra.mxu0 0.0
    %340 = vmatprep.subr.mxu0 0.0
    %341 = vmatpush2.msra.mxu0 0.0
    %342 = vmatprep.subr.mxu0 0.0
    %343 = vmatpush2.msra.mxu0 0.0
    %344 = vmatprep.mubr.f32.mxu0 0.0
    %345 = vmatmul.mubr.f32.gmra.mxu0 %v275
    %v346 = vpop.f32.mrf.mxu0
    %v347 = vadd.f32 0.0, %v346
    %v348 = vpop.f32.mrf.mxu0
    %349 = vmatprep.mubr.f32.mxu0 0.0
    %350 = vmatmul.mubr.f32.gmra.mxu0 %v278
    %v351 = vpop.f32.mrf.mxu0
    %v352 = vadd.f32 0.0, %v351
    %v353 = vpop.f32.mrf.mxu0
    %354 = vdwg.mxu0
    %v355 = vmul.f32 %v347, %v271
    %v356 = vmul.f32 %v352, %v273
    %vm357 = vcmp.gt.f32.partialorder %v355, 0.0
    %vm358 = vcmp.gt.f32.partialorder %v356, 0.0
    %v359 = vmin.f32 %v355, 0.0
    %v360 = vmin.f32 %v356, 0.0
    %v361 = vmul.f32 %v359, 1.442695
    %v362 = vpow.pop %v361
    %v363 = vmul.f32 %v360, 1.442695
    %v364 = vpow.pop %v363
    %v365 = vsub.f32 %v362, 1.0
    %v366 = vsub.f32 %v364, 1.0
    %v367 = vsel %vm357, %v355, %v365
    %v368 = vsel %vm358, %v356, %v366
    %v370 = vsel %vm251, %v43, 0
    %v373 = vsel %vm251, %v44, 0
    %v376 = vsel %vm251, %v45, 0
    %v379 = vsel %vm251, %v46, 0
    %381 = vmatprep.subr.mxu0 0.0
    %382 = vmatpush1.msra.mxu0 0.0
    %383 = vmatprep.subr.mxu0 0.0
    %384 = vmatpush1.msra.mxu0 0.0
    %385 = vmatprep.subr.mxu0 0.0
    %386 = vmatpush1.msra.mxu0 0.0
    %387 = vmatprep.subr.mxu0 0.0
    %388 = vmatpush1.msra.mxu0 0.0
    %389 = vmatprep.subr.mxu0 0.0
    %390 = vmatpush1.msra.mxu0 0.0
    %391 = vmatprep.subr.mxu0 0.0
    %392 = vmatpush1.msra.mxu0 0.0
    %393 = vmatprep.subr.mxu0 0.0
    %394 = vmatpush1.msra.mxu0 0.0
    %395 = vmatprep.subr.mxu0 0.0
    %396 = vmatpush1.msra.mxu0 0.0
    %397 = vmatprep.subr.mxu0 0.0
    %398 = vmatpush1.msra.mxu0 0.0
    %399 = vmatprep.subr.mxu0 0.0
    %400 = vmatpush1.msra.mxu0 0.0
    %401 = vmatprep.subr.mxu0 0.0
    %402 = vmatpush1.msra.mxu0 0.0
    %403 = vmatprep.subr.mxu0 0.0
    %404 = vmatpush1.msra.mxu0 0.0
    %405 = vmatprep.subr.mxu0 0.0
    %406 = vmatpush1.msra.mxu0 0.0
    %407 = vmatprep.subr.mxu0 0.0
    %408 = vmatpush1.msra.mxu0 0.0
    %409 = vmatprep.subr.mxu0 0.0
    %410 = vmatpush1.msra.mxu0 %v368
    %411 = vmatprep.subr.mxu0 0.0
    %412 = vmatpush1.msra.mxu0 %v367
    %413 = vmatprep.subr.mxu0 0.0
    %414 = vmatpush2.msra.mxu0 0.0
    %415 = vmatprep.subr.mxu0 0.0
    %416 = vmatpush2.msra.mxu0 0.0
    %417 = vmatprep.subr.mxu0 0.0
    %418 = vmatpush2.msra.mxu0 0.0
    %419 = vmatprep.subr.mxu0 0.0
    %420 = vmatpush2.msra.mxu0 0.0
    %421 = vmatprep.subr.mxu0 0.0
    %422 = vmatpush2.msra.mxu0 0.0
    %423 = vmatprep.subr.mxu0 0.0
    %424 = vmatpush2.msra.mxu0 0.0
    %425 = vmatprep.subr.mxu0 0.0
    %426 = vmatpush2.msra.mxu0 0.0
    %427 = vmatprep.subr.mxu0 0.0
    %428 = vmatpush2.msra.mxu0 0.0
    %429 = vmatprep.subr.mxu0 0.0
    %430 = vmatpush2.msra.mxu0 0.0
    %431 = vmatprep.subr.mxu0 0.0
    %432 = vmatpush2.msra.mxu0 0.0
    %433 = vmatprep.subr.mxu0 0.0
    %434 = vmatpush2.msra.mxu0 0.0
    %435 = vmatprep.subr.mxu0 0.0
    %436 = vmatpush2.msra.mxu0 0.0
    %437 = vmatprep.subr.mxu0 0.0
    %438 = vmatpush2.msra.mxu0 0.0
    %439 = vmatprep.subr.mxu0 0.0
    %440 = vmatpush2.msra.mxu0 0.0
    %441 = vmatprep.subr.mxu0 0.0
    %442 = vmatpush2.msra.mxu0 0.0
    %443 = vmatprep.subr.mxu0 0.0
    %444 = vmatpush2.msra.mxu0 0.0
    %445 = vmatprep.mubr.f32.mxu0 0.0
    %446 = vmatmul.mubr.f32.gmra.mxu0 %v370
    %v447 = vpop.f32.mrf.mxu0
    %v448 = vadd.f32 0.0, %v447
    %v449 = vpop.f32.mrf.mxu0
    %450 = vmatprep.mubr.f32.mxu0 0.0
    %451 = vmatmul.mubr.f32.gmra.mxu0 %v373
    %v452 = vpop.f32.mrf.mxu0
    %v453 = vadd.f32 0.0, %v452
    %v454 = vpop.f32.mrf.mxu0
    %455 = vmatprep.mubr.f32.mxu0 0.0
    %456 = vmatmul.mubr.f32.gmra.mxu0 %v376
    %v457 = vpop.f32.mrf.mxu0
    %v458 = vadd.f32 0.0, %v457
    %v459 = vpop.f32.mrf.mxu0
    %460 = vmatprep.mubr.f32.mxu0 0.0
    %461 = vmatmul.mubr.f32.gmra.mxu0 %v379
    %v462 = vpop.f32.mrf.mxu0
    %v463 = vadd.f32 0.0, %v462
    %v464 = vpop.f32.mrf.mxu0
    %465 = vdwg.mxu0
    %v466 = vmul.f32 %v453, %v453
    %v467 = vadd.f32 %v466, 0.0
    %v468 = vmul.f32 %v458, %v458
    %v469 = vadd.f32 %v468, 0.0
    %v470 = vmul.f32 %v463, %v463
    %v471 = vadd.f32 %v470, 0.0
    %v472 = vmul.f32 %v453, %v458
    %v473 = vadd.f32 %v472, 0.0
    %v474 = vmul.f32 %v453, %v463
    %v475 = vadd.f32 %v474, 0.0
    %478 = vrot.lane.b32.xlu0 %v142, 120
    %v479 = vpop.permute.xlu0 %478
    %480 = vrot.lane.b32.xlu0 %v143, 120
    %v481 = vpop.permute.xlu0 %480
    %v484 = vsel %vm144, %v479, 0.0
    %485 = vadd.xlane.f32.xlu0 %v484
    %v486 = vpop.xlane.xlu0 %485
    %v487 = vsel %vm144, %v481, 0.0
    %488 = vadd.xlane.f32.xlu0 %v487
    %v489 = vpop.xlane.xlu0 %488
    %490 = vrot.lane.b32.xlu0 %v152, 120
    %v491 = vpop.permute.xlu0 %490
    %492 = vrot.lane.b32.xlu0 %v130, 120
    %v493 = vpop.permute.xlu0 %492
    %494 = vrot.lane.b32.xlu0 %v135, 120
    %v495 = vpop.permute.xlu0 %494
    %v496 = vsel %vm144, %v491, 0
    %v498 = vsel %vm144, %v493, 0
    %v500 = vsel %vm144, %v495, 0
    %502 = vmatprep.subr.mxu0 0.0
    %503 = vmatpush1.xpose.msra.mxu0 0.0
    %504 = vmatprep.subr.mxu0 0.0
    %505 = vmatpush1.xpose.msra.mxu0 0.0
    %506 = vmatprep.subr.mxu0 0.0
    %507 = vmatpush1.xpose.msra.mxu0 0.0
    %508 = vmatprep.subr.mxu0 0.0
    %509 = vmatpush1.xpose.msra.mxu0 0.0
    %510 = vmatprep.subr.mxu0 0.0
    %511 = vmatpush1.xpose.msra.mxu0 0.0
    %512 = vmatprep.subr.mxu0 0.0
    %513 = vmatpush1.xpose.msra.mxu0 0.0
    %514 = vmatprep.subr.mxu0 0.0
    %515 = vmatpush1.xpose.msra.mxu0 0.0
    %516 = vmatprep.subr.mxu0 0.0
    %517 = vmatpush1.xpose.msra.mxu0 0.0
    %518 = vmatprep.subr.mxu0 0.0
    %519 = vmatpush1.xpose.msra.mxu0 0.0
    %520 = vmatprep.subr.mxu0 0.0
    %521 = vmatpush1.xpose.msra.mxu0 0.0
    %522 = vmatprep.subr.mxu0 0.0
    %523 = vmatpush1.xpose.msra.mxu0 0.0
    %524 = vmatprep.subr.mxu0 0.0
    %525 = vmatpush1.xpose.msra.mxu0 0.0
    %526 = vmatprep.subr.mxu0 0.0
    %527 = vmatpush1.xpose.msra.mxu0 0.0
    %528 = vmatprep.subr.mxu0 0.0
    %529 = vmatpush1.xpose.msra.mxu0 0.0
    %530 = vmatprep.subr.mxu0 0.0
    %531 = vmatpush1.xpose.msra.mxu0 %v500
    %532 = vmatprep.subr.mxu0 0.0
    %533 = vmatpush1.xpose.msra.mxu0 %v498
    %534 = vmatprep.subr.mxu0 0.0
    %535 = vmatpush2.xpose.msra.mxu0 0.0
    %536 = vmatprep.subr.mxu0 0.0
    %537 = vmatpush2.xpose.msra.mxu0 0.0
    %538 = vmatprep.subr.mxu0 0.0
    %539 = vmatpush2.xpose.msra.mxu0 0.0
    %540 = vmatprep.subr.mxu0 0.0
    %541 = vmatpush2.xpose.msra.mxu0 0.0
    %542 = vmatprep.subr.mxu0 0.0
    %543 = vmatpush2.xpose.msra.mxu0 0.0
    %544 = vmatprep.subr.mxu0 0.0
    %545 = vmatpush2.xpose.msra.mxu0 0.0
    %546 = vmatprep.subr.mxu0 0.0
    %547 = vmatpush2.xpose.msra.mxu0 0.0
    %548 = vmatprep.subr.mxu0 0.0
    %549 = vmatpush2.xpose.msra.mxu0 0.0
    %550 = vmatprep.subr.mxu0 0.0
    %551 = vmatpush2.xpose.msra.mxu0 0.0
    %552 = vmatprep.subr.mxu0 0.0
    %553 = vmatpush2.xpose.msra.mxu0 0.0
    %554 = vmatprep.subr.mxu0 0.0
    %555 = vmatpush2.xpose.msra.mxu0 0.0
    %556 = vmatprep.subr.mxu0 0.0
    %557 = vmatpush2.xpose.msra.mxu0 0.0
    %558 = vmatprep.subr.mxu0 0.0
    %559 = vmatpush2.xpose.msra.mxu0 0.0
    %560 = vmatprep.subr.mxu0 0.0
    %561 = vmatpush2.xpose.msra.mxu0 0.0
    %562 = vmatprep.subr.mxu0 0.0
    %563 = vmatpush2.xpose.msra.mxu0 0.0
    %564 = vmatprep.subr.mxu0 0.0
    %565 = vmatpush2.xpose.msra.mxu0 0.0
    %566 = vmatprep.mubr.f32.mxu0 0.0
    %567 = vmatmul.mubr.f32.gmra.mxu0 %v496
    %v568 = vpop.f32.mrf.mxu0
    %v569 = vadd.f32 0.0, %v568
    %v570 = vpop.f32.mrf.mxu0
    %571 = vdwg.mxu0
    %v572 = vlaneseq
    %v573 = vshrl.u32 %v572, 7
    %v574 = vsub.s32 0, %v573
    %v575 = vrot.slane %v569, %v574
    %v576 = vadd.f32 %v486, %v575
    %v577 = vadd.f32 %v489, %v575
    %vm578 = vcmp.gt.f32.partialorder %v576, 0.0
    %vm579 = vcmp.gt.f32.partialorder %v577, 0.0
    %v580 = vmul.f32 %v576, 0.2
    %v581 = vmul.f32 %v577, 0.2
    %v582 = vsel %vm578, %v576, %v580
    %v583 = vsel %vm579, %v577, %v581
    %v584 = vsel %vm247, %v582, -9e+15
    %v585 = vsel %vm248, %v583, -9e+15
    %v586 = vsel %vm251, %v584, -inf
    %587 = vmax.xlane.f32.xlu0 %v586
    %v588 = vpop.xlane.xlu0 %587
    %v589 = vsel %vm251, %v585, -inf
    %590 = vmax.xlane.f32.xlu0 %v589
    %v591 = vpop.xlane.xlu0 %590
    %v592 = vsub.f32 %v584, %v588
    %v593 = vsub.f32 %v585, %v591
    %v594 = vmul.f32 %v592, 1.442695
    %v595 = vpow.pop %v594
    %v596 = vmul.f32 %v593, 1.442695
    %v597 = vpow.pop %v596
    %v598 = vsel %vm251, %v595, 0.0
    %599 = vadd.xlane.f32.xlu0 %v598
    %v600 = vpop.xlane.xlu0 %599
    %v601 = vsel %vm251, %v597, 0.0
    %602 = vadd.xlane.f32.xlu0 %v601
    %v603 = vpop.xlane.xlu0 %602
    %v604 = vrcp.pop %v600
    %v605 = vmul.f32 1.0, %v604
    %v606 = vrcp.pop %v603
    %v607 = vmul.f32 1.0, %v606
    %v611 = vsel %vm251, %v595, 0
    %v614 = vsel %vm251, %v597, 0
    %616 = vmatprep.subr.mxu0 0.0
    %617 = vmatpush1.msra.mxu0 0.0
    %618 = vmatprep.subr.mxu0 0.0
    %619 = vmatpush1.msra.mxu0 0.0
    %620 = vmatprep.subr.mxu0 0.0
    %621 = vmatpush1.msra.mxu0 0.0
    %622 = vmatprep.subr.mxu0 0.0
    %623 = vmatpush1.msra.mxu0 0.0
    %624 = vmatprep.subr.mxu0 0.0
    %625 = vmatpush1.msra.mxu0 0.0
    %626 = vmatprep.subr.mxu0 0.0
    %627 = vmatpush1.msra.mxu0 0.0
    %628 = vmatprep.subr.mxu0 0.0
    %629 = vmatpush1.msra.mxu0 0.0
    %630 = vmatprep.subr.mxu0 0.0
    %631 = vmatpush1.msra.mxu0 0.0
    %632 = vmatprep.subr.mxu0 0.0
    %633 = vmatpush1.msra.mxu0 0.0
    %634 = vmatprep.subr.mxu0 0.0
    %635 = vmatpush1.msra.mxu0 0.0
    %636 = vmatprep.subr.mxu0 0.0
    %637 = vmatpush1.msra.mxu0 0.0
    %638 = vmatprep.subr.mxu0 0.0
    %639 = vmatpush1.msra.mxu0 0.0
    %640 = vmatprep.subr.mxu0 0.0
    %641 = vmatpush1.msra.mxu0 0.0
    %642 = vmatprep.subr.mxu0 0.0
    %643 = vmatpush1.msra.mxu0 0.0
    %644 = vmatprep.subr.mxu0 0.0
    %645 = vmatpush1.msra.mxu0 %v495
    %646 = vmatprep.subr.mxu0 0.0
    %647 = vmatpush1.msra.mxu0 %v493
    %648 = vmatprep.subr.mxu0 0.0
    %649 = vmatpush2.msra.mxu0 0.0
    %650 = vmatprep.subr.mxu0 0.0
    %651 = vmatpush2.msra.mxu0 0.0
    %652 = vmatprep.subr.mxu0 0.0
    %653 = vmatpush2.msra.mxu0 0.0
    %654 = vmatprep.subr.mxu0 0.0
    %655 = vmatpush2.msra.mxu0 0.0
    %656 = vmatprep.subr.mxu0 0.0
    %657 = vmatpush2.msra.mxu0 0.0
    %658 = vmatprep.subr.mxu0 0.0
    %659 = vmatpush2.msra.mxu0 0.0
    %660 = vmatprep.subr.mxu0 0.0
    %661 = vmatpush2.msra.mxu0 0.0
    %662 = vmatprep.subr.mxu0 0.0
    %663 = vmatpush2.msra.mxu0 0.0
    %664 = vmatprep.subr.mxu0 0.0
    %665 = vmatpush2.msra.mxu0 0.0
    %666 = vmatprep.subr.mxu0 0.0
    %667 = vmatpush2.msra.mxu0 0.0
    %668 = vmatprep.subr.mxu0 0.0
    %669 = vmatpush2.msra.mxu0 0.0
    %670 = vmatprep.subr.mxu0 0.0
    %671 = vmatpush2.msra.mxu0 0.0
    %672 = vmatprep.subr.mxu0 0.0
    %673 = vmatpush2.msra.mxu0 0.0
    %674 = vmatprep.subr.mxu0 0.0
    %675 = vmatpush2.msra.mxu0 0.0
    %676 = vmatprep.subr.mxu0 0.0
    %677 = vmatpush2.msra.mxu0 0.0
    %678 = vmatprep.subr.mxu0 0.0
    %679 = vmatpush2.msra.mxu0 0.0
    %680 = vmatprep.mubr.f32.mxu0 0.0
    %681 = vmatmul.mubr.f32.gmra.mxu0 %v611
    %v682 = vpop.f32.mrf.mxu0
    %v683 = vadd.f32 0.0, %v682
    %v684 = vpop.f32.mrf.mxu0
    %685 = vmatprep.mubr.f32.mxu0 0.0
    %686 = vmatmul.mubr.f32.gmra.mxu0 %v614
    %v687 = vpop.f32.mrf.mxu0
    %v688 = vadd.f32 0.0, %v687
    %v689 = vpop.f32.mrf.mxu0
    %690 = vdwg.mxu0
    %v691 = vmul.f32 %v683, %v605
    %v692 = vmul.f32 %v688, %v607
    %vm693 = vcmp.gt.f32.partialorder %v691, 0.0
    %vm694 = vcmp.gt.f32.partialorder %v692, 0.0
    %v695 = vmin.f32 %v691, 0.0
    %v696 = vmin.f32 %v692, 0.0
    %v697 = vmul.f32 %v695, 1.442695
    %v698 = vpow.pop %v697
    %v699 = vmul.f32 %v696, 1.442695
    %v700 = vpow.pop %v699
    %v701 = vsub.f32 %v698, 1.0
    %v702 = vsub.f32 %v700, 1.0
    %v703 = vsel %vm693, %v691, %v701
    %v704 = vsel %vm694, %v692, %v702
    %705 = vmatprep.subr.mxu0 0.0
    %706 = vmatpush1.msra.mxu0 0.0
    %707 = vmatprep.subr.mxu0 0.0
    %708 = vmatpush1.msra.mxu0 0.0
    %709 = vmatprep.subr.mxu0 0.0
    %710 = vmatpush1.msra.mxu0 0.0
    %711 = vmatprep.subr.mxu0 0.0
    %712 = vmatpush1.msra.mxu0 0.0
    %713 = vmatprep.subr.mxu0 0.0
    %714 = vmatpush1.msra.mxu0 0.0
    %715 = vmatprep.subr.mxu0 0.0
    %716 = vmatpush1.msra.mxu0 0.0
    %717 = vmatprep.subr.mxu0 0.0
    %718 = vmatpush1.msra.mxu0 0.0
    %719 = vmatprep.subr.mxu0 0.0
    %720 = vmatpush1.msra.mxu0 0.0
    %721 = vmatprep.subr.mxu0 0.0
    %722 = vmatpush1.msra.mxu0 0.0
    %723 = vmatprep.subr.mxu0 0.0
    %724 = vmatpush1.msra.mxu0 0.0
    %725 = vmatprep.subr.mxu0 0.0
    %726 = vmatpush1.msra.mxu0 0.0
    %727 = vmatprep.subr.mxu0 0.0
    %728 = vmatpush1.msra.mxu0 0.0
    %729 = vmatprep.subr.mxu0 0.0
    %730 = vmatpush1.msra.mxu0 0.0
    %731 = vmatprep.subr.mxu0 0.0
    %732 = vmatpush1.msra.mxu0 0.0
    %733 = vmatprep.subr.mxu0 0.0
    %734 = vmatpush1.msra.mxu0 %v704
    %735 = vmatprep.subr.mxu0 0.0
    %736 = vmatpush1.msra.mxu0 %v703
    %737 = vmatprep.subr.mxu0 0.0
    %738 = vmatpush2.msra.mxu0 0.0
    %739 = vmatprep.subr.mxu0 0.0
    %740 = vmatpush2.msra.mxu0 0.0
    %741 = vmatprep.subr.mxu0 0.0
    %742 = vmatpush2.msra.mxu0 0.0
    %743 = vmatprep.subr.mxu0 0.0
    %744 = vmatpush2.msra.mxu0 0.0
    %745 = vmatprep.subr.mxu0 0.0
    %746 = vmatpush2.msra.mxu0 0.0
    %747 = vmatprep.subr.mxu0 0.0
    %748 = vmatpush2.msra.mxu0 0.0
    %749 = vmatprep.subr.mxu0 0.0
    %750 = vmatpush2.msra.mxu0 0.0
    %751 = vmatprep.subr.mxu0 0.0
    %752 = vmatpush2.msra.mxu0 0.0
    %753 = vmatprep.subr.mxu0 0.0
    %754 = vmatpush2.msra.mxu0 0.0
    %755 = vmatprep.subr.mxu0 0.0
    %756 = vmatpush2.msra.mxu0 0.0
    %757 = vmatprep.subr.mxu0 0.0
    %758 = vmatpush2.msra.mxu0 0.0
    %759 = vmatprep.subr.mxu0 0.0
    %760 = vmatpush2.msra.mxu0 0.0
    %761 = vmatprep.subr.mxu0 0.0
    %762 = vmatpush2.msra.mxu0 0.0
    %763 = vmatprep.subr.mxu0 0.0
    %764 = vmatpush2.msra.mxu0 0.0
    %765 = vmatprep.subr.mxu0 0.0
    %766 = vmatpush2.msra.mxu0 0.0
    %767 = vmatprep.subr.mxu0 0.0
    %768 = vmatpush2.msra.mxu0 0.0
    %769 = vmatprep.mubr.f32.mxu0 0.0
    %770 = vmatmul.mubr.f32.gmra.mxu0 %v370
    %v771 = vpop.f32.mrf.mxu0
    %v772 = vadd.f32 0.0, %v771
    %v773 = vpop.f32.mrf.mxu0
    %774 = vmatprep.mubr.f32.mxu0 0.0
    %775 = vmatmul.mubr.f32.gmra.mxu0 %v373
    %v776 = vpop.f32.mrf.mxu0
    %v777 = vadd.f32 0.0, %v776
    %v778 = vpop.f32.mrf.mxu0
    %779 = vmatprep.mubr.f32.mxu0 0.0
    %780 = vmatmul.mubr.f32.gmra.mxu0 %v376
    %v781 = vpop.f32.mrf.mxu0
    %v782 = vadd.f32 0.0, %v781
    %v783 = vpop.f32.mrf.mxu0
    %784 = vmatprep.mubr.f32.mxu0 0.0
    %785 = vmatmul.mubr.f32.gmra.mxu0 %v379
    %v786 = vpop.f32.mrf.mxu0
    %v787 = vadd.f32 0.0, %v786
    %v788 = vpop.f32.mrf.mxu0
    %789 = vdwg.mxu0
    %v790 = vmul.f32 %v777, %v777
    %v791 = vadd.f32 %v467, %v790
    %v792 = vmul.f32 %v782, %v782
    %v793 = vadd.f32 %v469, %v792
    %v794 = vmul.f32 %v787, %v787
    %v795 = vadd.f32 %v471, %v794
    %v796 = vmul.f32 %v777, %v782
    %v797 = vadd.f32 %v473, %v796
    %v798 = vmul.f32 %v777, %v787
    %v799 = vadd.f32 %v475, %v798
    %v801 = vsel %vm144, %v772, 0
    %803 = vmatprep.subr.mxu0 0.0
    %804 = vmatpush1.xpose.msra.mxu0 0.0
    %805 = vmatprep.subr.mxu0 0.0
    %806 = vmatpush1.xpose.msra.mxu0 0.0
    %807 = vmatprep.subr.mxu0 0.0
    %808 = vmatpush1.xpose.msra.mxu0 0.0
    %809 = vmatprep.subr.mxu0 0.0
    %810 = vmatpush1.xpose.msra.mxu0 0.0
    %811 = vmatprep.subr.mxu0 0.0
    %812 = vmatpush1.xpose.msra.mxu0 0.0
    %813 = vmatprep.subr.mxu0 0.0
    %814 = vmatpush1.xpose.msra.mxu0 0.0
    %815 = vmatprep.subr.mxu0 0.0
    %816 = vmatpush1.xpose.msra.mxu0 0.0
    %817 = vmatprep.subr.mxu0 0.0
    %818 = vmatpush1.xpose.msra.mxu0 0.0
    %819 = vmatprep.subr.mxu0 0.0
    %820 = vmatpush1.xpose.msra.mxu0 0.0
    %821 = vmatprep.subr.mxu0 0.0
    %822 = vmatpush1.xpose.msra.mxu0 0.0
    %823 = vmatprep.subr.mxu0 0.0
    %824 = vmatpush1.xpose.msra.mxu0 0.0
    %825 = vmatprep.subr.mxu0 0.0
    %826 = vmatpush1.xpose.msra.mxu0 0.0
    %827 = vmatprep.subr.mxu0 0.0
    %828 = vmatpush1.xpose.msra.mxu0 0.0
    %829 = vmatprep.subr.mxu0 0.0
    %830 = vmatpush1.xpose.msra.mxu0 0.0
    %831 = vmatprep.subr.mxu0 0.0
    %832 = vmatpush1.xpose.msra.mxu0 0.0
    %833 = vmatprep.subr.mxu0 0.0
    %834 = vmatpush1.xpose.msra.mxu0 %v801
    %835 = vmatprep.subr.mxu0 0.0
    %836 = vmatpush2.xpose.msra.mxu0 0.0
    %837 = vmatprep.subr.mxu0 0.0
    %838 = vmatpush2.xpose.msra.mxu0 0.0
    %839 = vmatprep.subr.mxu0 0.0
    %840 = vmatpush2.xpose.msra.mxu0 0.0
    %841 = vmatprep.subr.mxu0 0.0
    %842 = vmatpush2.xpose.msra.mxu0 0.0
    %843 = vmatprep.subr.mxu0 0.0
    %844 = vmatpush2.xpose.msra.mxu0 0.0
    %845 = vmatprep.subr.mxu0 0.0
    %846 = vmatpush2.xpose.msra.mxu0 0.0
    %847 = vmatprep.subr.mxu0 0.0
    %848 = vmatpush2.xpose.msra.mxu0 0.0
    %849 = vmatprep.subr.mxu0 0.0
    %850 = vmatpush2.xpose.msra.mxu0 0.0
    %851 = vmatprep.subr.mxu0 0.0
    %852 = vmatpush2.xpose.msra.mxu0 0.0
    %853 = vmatprep.subr.mxu0 0.0
    %854 = vmatpush2.xpose.msra.mxu0 0.0
    %855 = vmatprep.subr.mxu0 0.0
    %856 = vmatpush2.xpose.msra.mxu0 0.0
    %857 = vmatprep.subr.mxu0 0.0
    %858 = vmatpush2.xpose.msra.mxu0 0.0
    %859 = vmatprep.subr.mxu0 0.0
    %860 = vmatpush2.xpose.msra.mxu0 0.0
    %861 = vmatprep.subr.mxu0 0.0
    %862 = vmatpush2.xpose.msra.mxu0 0.0
    %863 = vmatprep.subr.mxu0 0.0
    %864 = vmatpush2.xpose.msra.mxu0 0.0
    %865 = vmatprep.subr.mxu0 0.0
    %866 = vmatpush2.xpose.msra.mxu0 0.0
    %867 = vmatprep.mubr.f32.mxu0 0.0
    %868 = vmatmul.mubr.f32.gmra.mxu0 %v801
    %v869 = vpop.f32.mrf.mxu0
    %v870 = vadd.f32 0.0, %v869
    %v871 = vpop.f32.mrf.mxu0
    %872 = vdwg.mxu0
    %v874 = vsel %vm144, %v448, 0
    %876 = vmatprep.subr.mxu0 0.0
    %877 = vmatpush1.xpose.msra.mxu0 0.0
    %878 = vmatprep.subr.mxu0 0.0
    %879 = vmatpush1.xpose.msra.mxu0 0.0
    %880 = vmatprep.subr.mxu0 0.0
    %881 = vmatpush1.xpose.msra.mxu0 0.0
    %882 = vmatprep.subr.mxu0 0.0
    %883 = vmatpush1.xpose.msra.mxu0 0.0
    %884 = vmatprep.subr.mxu0 0.0
    %885 = vmatpush1.xpose.msra.mxu0 0.0
    %886 = vmatprep.subr.mxu0 0.0
    %887 = vmatpush1.xpose.msra.mxu0 0.0
    %888 = vmatprep.subr.mxu0 0.0
    %889 = vmatpush1.xpose.msra.mxu0 0.0
    %890 = vmatprep.subr.mxu0 0.0
    %891 = vmatpush1.xpose.msra.mxu0 0.0
    %892 = vmatprep.subr.mxu0 0.0
    %893 = vmatpush1.xpose.msra.mxu0 0.0
    %894 = vmatprep.subr.mxu0 0.0
    %895 = vmatpush1.xpose.msra.mxu0 0.0
    %896 = vmatprep.subr.mxu0 0.0
    %897 = vmatpush1.xpose.msra.mxu0 0.0
    %898 = vmatprep.subr.mxu0 0.0
    %899 = vmatpush1.xpose.msra.mxu0 0.0
    %900 = vmatprep.subr.mxu0 0.0
    %901 = vmatpush1.xpose.msra.mxu0 0.0
    %902 = vmatprep.subr.mxu0 0.0
    %903 = vmatpush1.xpose.msra.mxu0 0.0
    %904 = vmatprep.subr.mxu0 0.0
    %905 = vmatpush1.xpose.msra.mxu0 0.0
    %906 = vmatprep.subr.mxu0 0.0
    %907 = vmatpush1.xpose.msra.mxu0 %v874
    %908 = vmatprep.subr.mxu0 0.0
    %909 = vmatpush2.xpose.msra.mxu0 0.0
    %910 = vmatprep.subr.mxu0 0.0
    %911 = vmatpush2.xpose.msra.mxu0 0.0
    %912 = vmatprep.subr.mxu0 0.0
    %913 = vmatpush2.xpose.msra.mxu0 0.0
    %914 = vmatprep.subr.mxu0 0.0
    %915 = vmatpush2.xpose.msra.mxu0 0.0
    %916 = vmatprep.subr.mxu0 0.0
    %917 = vmatpush2.xpose.msra.mxu0 0.0
    %918 = vmatprep.subr.mxu0 0.0
    %919 = vmatpush2.xpose.msra.mxu0 0.0
    %920 = vmatprep.subr.mxu0 0.0
    %921 = vmatpush2.xpose.msra.mxu0 0.0
    %922 = vmatprep.subr.mxu0 0.0
    %923 = vmatpush2.xpose.msra.mxu0 0.0
    %924 = vmatprep.subr.mxu0 0.0
    %925 = vmatpush2.xpose.msra.mxu0 0.0
    %926 = vmatprep.subr.mxu0 0.0
    %927 = vmatpush2.xpose.msra.mxu0 0.0
    %928 = vmatprep.subr.mxu0 0.0
    %929 = vmatpush2.xpose.msra.mxu0 0.0
    %930 = vmatprep.subr.mxu0 0.0
    %931 = vmatpush2.xpose.msra.mxu0 0.0
    %932 = vmatprep.subr.mxu0 0.0
    %933 = vmatpush2.xpose.msra.mxu0 0.0
    %934 = vmatprep.subr.mxu0 0.0
    %935 = vmatpush2.xpose.msra.mxu0 0.0
    %936 = vmatprep.subr.mxu0 0.0
    %937 = vmatpush2.xpose.msra.mxu0 0.0
    %938 = vmatprep.subr.mxu0 0.0
    %939 = vmatpush2.xpose.msra.mxu0 0.0
    %940 = vmatprep.mubr.f32.mxu0 0.0
    %941 = vmatmul.mubr.f32.gmra.mxu0 %v874
    %v942 = vpop.f32.mrf.mxu0
    %v943 = vadd.f32 %v870, %v942
    %v944 = vpop.f32.mrf.mxu0
    %945 = vdwg.mxu0
    %946 = vrot.lane.b32.xlu0 %v142, 112
    %v947 = vpop.permute.xlu0 %946
    %948 = vrot.lane.b32.xlu0 %v143, 112
    %v949 = vpop.permute.xlu0 %948
    %v952 = vsel %vm144, %v947, 0.0
    %953 = vadd.xlane.f32.xlu0 %v952
    %v954 = vpop.xlane.xlu0 %953
    %v955 = vsel %vm144, %v949, 0.0
    %956 = vadd.xlane.f32.xlu0 %v955
    %v957 = vpop.xlane.xlu0 %956
    %958 = vrot.lane.b32.xlu0 %v152, 112
    %v959 = vpop.permute.xlu0 %958
    %960 = vrot.lane.b32.xlu0 %v130, 112
    %v961 = vpop.permute.xlu0 %960
    %962 = vrot.lane.b32.xlu0 %v135, 112
    %v963 = vpop.permute.xlu0 %962
    %v964 = vsel %vm144, %v959, 0
    %v966 = vsel %vm144, %v961, 0
    %v968 = vsel %vm144, %v963, 0
    %970 = vmatprep.subr.mxu0 0.0
    %971 = vmatpush1.xpose.msra.mxu0 0.0
    %972 = vmatprep.subr.mxu0 0.0
    %973 = vmatpush1.xpose.msra.mxu0 0.0
    %974 = vmatprep.subr.mxu0 0.0
    %975 = vmatpush1.xpose.msra.mxu0 0.0
    %976 = vmatprep.subr.mxu0 0.0
    %977 = vmatpush1.xpose.msra.mxu0 0.0
    %978 = vmatprep.subr.mxu0 0.0
    %979 = vmatpush1.xpose.msra.mxu0 0.0
    %980 = vmatprep.subr.mxu0 0.0
    %981 = vmatpush1.xpose.msra.mxu0 0.0
    %982 = vmatprep.subr.mxu0 0.0
    %983 = vmatpush1.xpose.msra.mxu0 0.0
    %984 = vmatprep.subr.mxu0 0.0
    %985 = vmatpush1.xpose.msra.mxu0 0.0
    %986 = vmatprep.subr.mxu0 0.0
    %987 = vmatpush1.xpose.msra.mxu0 0.0
    %988 = vmatprep.subr.mxu0 0.0
    %989 = vmatpush1.xpose.msra.mxu0 0.0
    %990 = vmatprep.subr.mxu0 0.0
    %991 = vmatpush1.xpose.msra.mxu0 0.0
    %992 = vmatprep.subr.mxu0 0.0
    %993 = vmatpush1.xpose.msra.mxu0 0.0
    %994 = vmatprep.subr.mxu0 0.0
    %995 = vmatpush1.xpose.msra.mxu0 0.0
    %996 = vmatprep.subr.mxu0 0.0
    %997 = vmatpush1.xpose.msra.mxu0 0.0
    %998 = vmatprep.subr.mxu0 0.0
    %999 = vmatpush1.xpose.msra.mxu0 %v968
    %1000 = vmatprep.subr.mxu0 0.0
    %1001 = vmatpush1.xpose.msra.mxu0 %v966
    %1002 = vmatprep.subr.mxu0 0.0
    %1003 = vmatpush2.xpose.msra.mxu0 0.0
    %1004 = vmatprep.subr.mxu0 0.0
    %1005 = vmatpush2.xpose.msra.mxu0 0.0
    %1006 = vmatprep.subr.mxu0 0.0
    %1007 = vmatpush2.xpose.msra.mxu0 0.0
    %1008 = vmatprep.subr.mxu0 0.0
    %1009 = vmatpush2.xpose.msra.mxu0 0.0
    %1010 = vmatprep.subr.mxu0 0.0
    %1011 = vmatpush2.xpose.msra.mxu0 0.0
    %1012 = vmatprep.subr.mxu0 0.0
    %1013 = vmatpush2.xpose.msra.mxu0 0.0
    %1014 = vmatprep.subr.mxu0 0.0
    %1015 = vmatpush2.xpose.msra.mxu0 0.0
    %1016 = vmatprep.subr.mxu0 0.0
    %1017 = vmatpush2.xpose.msra.mxu0 0.0
    %1018 = vmatprep.subr.mxu0 0.0
    %1019 = vmatpush2.xpose.msra.mxu0 0.0
    %1020 = vmatprep.subr.mxu0 0.0
    %1021 = vmatpush2.xpose.msra.mxu0 0.0
    %1022 = vmatprep.subr.mxu0 0.0
    %1023 = vmatpush2.xpose.msra.mxu0 0.0
    %1024 = vmatprep.subr.mxu0 0.0
    %1025 = vmatpush2.xpose.msra.mxu0 0.0
    %1026 = vmatprep.subr.mxu0 0.0
    %1027 = vmatpush2.xpose.msra.mxu0 0.0
    %1028 = vmatprep.subr.mxu0 0.0
    %1029 = vmatpush2.xpose.msra.mxu0 0.0
    %1030 = vmatprep.subr.mxu0 0.0
    %1031 = vmatpush2.xpose.msra.mxu0 0.0
    %1032 = vmatprep.subr.mxu0 0.0
    %1033 = vmatpush2.xpose.msra.mxu0 0.0
    %1034 = vmatprep.mubr.f32.mxu0 0.0
    %1035 = vmatmul.mubr.f32.gmra.mxu0 %v964
    %v1036 = vpop.f32.mrf.mxu0
    %v1037 = vadd.f32 0.0, %v1036
    %v1038 = vpop.f32.mrf.mxu0
    %1039 = vdwg.mxu0
    %v1040 = vlaneseq
    %v1041 = vshrl.u32 %v1040, 7
    %v1042 = vsub.s32 0, %v1041
    %v1043 = vrot.slane %v1037, %v1042
    %v1044 = vadd.f32 %v954, %v1043
    %v1045 = vadd.f32 %v957, %v1043
    %vm1046 = vcmp.gt.f32.partialorder %v1044, 0.0
    %vm1047 = vcmp.gt.f32.partialorder %v1045, 0.0
    %v1048 = vmul.f32 %v1044, 0.2
    %v1049 = vmul.f32 %v1045, 0.2
    %v1050 = vsel %vm1046, %v1044, %v1048
    %v1051 = vsel %vm1047, %v1045, %v1049
    %v1052 = vsel %vm247, %v1050, -9e+15
    %v1053 = vsel %vm248, %v1051, -9e+15
    %v1054 = vsel %vm251, %v1052, -inf
    %1055 = vmax.xlane.f32.xlu0 %v1054
    %v1056 = vpop.xlane.xlu0 %1055
    %v1057 = vsel %vm251, %v1053, -inf
    %1058 = vmax.xlane.f32.xlu0 %v1057
    %v1059 = vpop.xlane.xlu0 %1058
    %v1060 = vsub.f32 %v1052, %v1056
    %v1061 = vsub.f32 %v1053, %v1059
    %v1062 = vmul.f32 %v1060, 1.442695
    %v1063 = vpow.pop %v1062
    %v1064 = vmul.f32 %v1061, 1.442695
    %v1065 = vpow.pop %v1064
    %v1066 = vsel %vm251, %v1063, 0.0
    %1067 = vadd.xlane.f32.xlu0 %v1066
    %v1068 = vpop.xlane.xlu0 %1067
    %v1069 = vsel %vm251, %v1065, 0.0
    %1070 = vadd.xlane.f32.xlu0 %v1069
    %v1071 = vpop.xlane.xlu0 %1070
    %v1072 = vrcp.pop %v1068
    %v1073 = vmul.f32 1.0, %v1072
    %v1074 = vrcp.pop %v1071
    %v1075 = vmul.f32 1.0, %v1074
    %v1079 = vsel %vm251, %v1063, 0
    %v1082 = vsel %vm251, %v1065, 0
    %1084 = vmatprep.subr.mxu0 0.0
    %1085 = vmatpush1.msra.mxu0 0.0
    %1086 = vmatprep.subr.mxu0 0.0
    %1087 = vmatpush1.msra.mxu0 0.0
    %1088 = vmatprep.subr.mxu0 0.0
    %1089 = vmatpush1.msra.mxu0 0.0
    %1090 = vmatprep.subr.mxu0 0.0
    %1091 = vmatpush1.msra.mxu0 0.0
    %1092 = vmatprep.subr.mxu0 0.0
    %1093 = vmatpush1.msra.mxu0 0.0
    %1094 = vmatprep.subr.mxu0 0.0
    %1095 = vmatpush1.msra.mxu0 0.0
    %1096 = vmatprep.subr.mxu0 0.0
    %1097 = vmatpush1.msra.mxu0 0.0
    %1098 = vmatprep.subr.mxu0 0.0
    %1099 = vmatpush1.msra.mxu0 0.0
    %1100 = vmatprep.subr.mxu0 0.0
    %1101 = vmatpush1.msra.mxu0 0.0
    %1102 = vmatprep.subr.mxu0 0.0
    %1103 = vmatpush1.msra.mxu0 0.0
    %1104 = vmatprep.subr.mxu0 0.0
    %1105 = vmatpush1.msra.mxu0 0.0
    %1106 = vmatprep.subr.mxu0 0.0
    %1107 = vmatpush1.msra.mxu0 0.0
    %1108 = vmatprep.subr.mxu0 0.0
    %1109 = vmatpush1.msra.mxu0 0.0
    %1110 = vmatprep.subr.mxu0 0.0
    %1111 = vmatpush1.msra.mxu0 0.0
    %1112 = vmatprep.subr.mxu0 0.0
    %1113 = vmatpush1.msra.mxu0 %v963
    %1114 = vmatprep.subr.mxu0 0.0
    %1115 = vmatpush1.msra.mxu0 %v961
    %1116 = vmatprep.subr.mxu0 0.0
    %1117 = vmatpush2.msra.mxu0 0.0
    %1118 = vmatprep.subr.mxu0 0.0
    %1119 = vmatpush2.msra.mxu0 0.0
    %1120 = vmatprep.subr.mxu0 0.0
    %1121 = vmatpush2.msra.mxu0 0.0
    %1122 = vmatprep.subr.mxu0 0.0
    %1123 = vmatpush2.msra.mxu0 0.0
    %1124 = vmatprep.subr.mxu0 0.0
    %1125 = vmatpush2.msra.mxu0 0.0
    %1126 = vmatprep.subr.mxu0 0.0
    %1127 = vmatpush2.msra.mxu0 0.0
    %1128 = vmatprep.subr.mxu0 0.0
    %1129 = vmatpush2.msra.mxu0 0.0
    %1130 = vmatprep.subr.mxu0 0.0
    %1131 = vmatpush2.msra.mxu0 0.0
    %1132 = vmatprep.subr.mxu0 0.0
    %1133 = vmatpush2.msra.mxu0 0.0
    %1134 = vmatprep.subr.mxu0 0.0
    %1135 = vmatpush2.msra.mxu0 0.0
    %1136 = vmatprep.subr.mxu0 0.0
    %1137 = vmatpush2.msra.mxu0 0.0
    %1138 = vmatprep.subr.mxu0 0.0
    %1139 = vmatpush2.msra.mxu0 0.0
    %1140 = vmatprep.subr.mxu0 0.0
    %1141 = vmatpush2.msra.mxu0 0.0
    %1142 = vmatprep.subr.mxu0 0.0
    %1143 = vmatpush2.msra.mxu0 0.0
    %1144 = vmatprep.subr.mxu0 0.0
    %1145 = vmatpush2.msra.mxu0 0.0
    %1146 = vmatprep.subr.mxu0 0.0
    %1147 = vmatpush2.msra.mxu0 0.0
    %1148 = vmatprep.mubr.f32.mxu0 0.0
    %1149 = vmatmul.mubr.f32.gmra.mxu0 %v1079
    %v1150 = vpop.f32.mrf.mxu0
    %v1151 = vadd.f32 0.0, %v1150
    %v1152 = vpop.f32.mrf.mxu0
    %1153 = vmatprep.mubr.f32.mxu0 0.0
    %1154 = vmatmul.mubr.f32.gmra.mxu0 %v1082
    %v1155 = vpop.f32.mrf.mxu0
    %v1156 = vadd.f32 0.0, %v1155
    %v1157 = vpop.f32.mrf.mxu0
    %1158 = vdwg.mxu0
    %v1159 = vmul.f32 %v1151, %v1073
    %v1160 = vmul.f32 %v1156, %v1075
    %vm1161 = vcmp.gt.f32.partialorder %v1159, 0.0
    %vm1162 = vcmp.gt.f32.partialorder %v1160, 0.0
    %v1163 = vmin.f32 %v1159, 0.0
    %v1164 = vmin.f32 %v1160, 0.0
    %v1165 = vmul.f32 %v1163, 1.442695
    %v1166 = vpow.pop %v1165
    %v1167 = vmul.f32 %v1164, 1.442695
    %v1168 = vpow.pop %v1167
    %v1169 = vsub.f32 %v1166, 1.0
    %v1170 = vsub.f32 %v1168, 1.0
    %v1171 = vsel %vm1161, %v1159, %v1169
    %v1172 = vsel %vm1162, %v1160, %v1170
    %1173 = vmatprep.subr.mxu0 0.0
    %1174 = vmatpush1.msra.mxu0 0.0
    %1175 = vmatprep.subr.mxu0 0.0
    %1176 = vmatpush1.msra.mxu0 0.0
    %1177 = vmatprep.subr.mxu0 0.0
    %1178 = vmatpush1.msra.mxu0 0.0
    %1179 = vmatprep.subr.mxu0 0.0
    %1180 = vmatpush1.msra.mxu0 0.0
    %1181 = vmatprep.subr.mxu0 0.0
    %1182 = vmatpush1.msra.mxu0 0.0
    %1183 = vmatprep.subr.mxu0 0.0
    %1184 = vmatpush1.msra.mxu0 0.0
    %1185 = vmatprep.subr.mxu0 0.0
    %1186 = vmatpush1.msra.mxu0 0.0
    %1187 = vmatprep.subr.mxu0 0.0
    %1188 = vmatpush1.msra.mxu0 0.0
    %1189 = vmatprep.subr.mxu0 0.0
    %1190 = vmatpush1.msra.mxu0 0.0
    %1191 = vmatprep.subr.mxu0 0.0
    %1192 = vmatpush1.msra.mxu0 0.0
    %1193 = vmatprep.subr.mxu0 0.0
    %1194 = vmatpush1.msra.mxu0 0.0
    %1195 = vmatprep.subr.mxu0 0.0
    %1196 = vmatpush1.msra.mxu0 0.0
    %1197 = vmatprep.subr.mxu0 0.0
    %1198 = vmatpush1.msra.mxu0 0.0
    %1199 = vmatprep.subr.mxu0 0.0
    %1200 = vmatpush1.msra.mxu0 0.0
    %1201 = vmatprep.subr.mxu0 0.0
    %1202 = vmatpush1.msra.mxu0 %v1172
    %1203 = vmatprep.subr.mxu0 0.0
    %1204 = vmatpush1.msra.mxu0 %v1171
    %1205 = vmatprep.subr.mxu0 0.0
    %1206 = vmatpush2.msra.mxu0 0.0
    %1207 = vmatprep.subr.mxu0 0.0
    %1208 = vmatpush2.msra.mxu0 0.0
    %1209 = vmatprep.subr.mxu0 0.0
    %1210 = vmatpush2.msra.mxu0 0.0
    %1211 = vmatprep.subr.mxu0 0.0
    %1212 = vmatpush2.msra.mxu0 0.0
    %1213 = vmatprep.subr.mxu0 0.0
    %1214 = vmatpush2.msra.mxu0 0.0
    %1215 = vmatprep.subr.mxu0 0.0
    %1216 = vmatpush2.msra.mxu0 0.0
    %1217 = vmatprep.subr.mxu0 0.0
    %1218 = vmatpush2.msra.mxu0 0.0
    %1219 = vmatprep.subr.mxu0 0.0
    %1220 = vmatpush2.msra.mxu0 0.0
    %1221 = vmatprep.subr.mxu0 0.0
    %1222 = vmatpush2.msra.mxu0 0.0
    %1223 = vmatprep.subr.mxu0 0.0
    %1224 = vmatpush2.msra.mxu0 0.0
    %1225 = vmatprep.subr.mxu0 0.0
    %1226 = vmatpush2.msra.mxu0 0.0
    %1227 = vmatprep.subr.mxu0 0.0
    %1228 = vmatpush2.msra.mxu0 0.0
    %1229 = vmatprep.subr.mxu0 0.0
    %1230 = vmatpush2.msra.mxu0 0.0
    %1231 = vmatprep.subr.mxu0 0.0
    %1232 = vmatpush2.msra.mxu0 0.0
    %1233 = vmatprep.subr.mxu0 0.0
    %1234 = vmatpush2.msra.mxu0 0.0
    %1235 = vmatprep.subr.mxu0 0.0
    %1236 = vmatpush2.msra.mxu0 0.0
    %1237 = vmatprep.mubr.f32.mxu0 0.0
    %1238 = vmatmul.mubr.f32.gmra.mxu0 %v370
    %v1239 = vpop.f32.mrf.mxu0
    %v1240 = vadd.f32 0.0, %v1239
    %v1241 = vpop.f32.mrf.mxu0
    %1242 = vmatprep.mubr.f32.mxu0 0.0
    %1243 = vmatmul.mubr.f32.gmra.mxu0 %v373
    %v1244 = vpop.f32.mrf.mxu0
    %v1245 = vadd.f32 0.0, %v1244
    %v1246 = vpop.f32.mrf.mxu0
    %1247 = vmatprep.mubr.f32.mxu0 0.0
    %1248 = vmatmul.mubr.f32.gmra.mxu0 %v376
    %v1249 = vpop.f32.mrf.mxu0
    %v1250 = vadd.f32 0.0, %v1249
    %v1251 = vpop.f32.mrf.mxu0
    %1252 = vmatprep.mubr.f32.mxu0 0.0
    %1253 = vmatmul.mubr.f32.gmra.mxu0 %v379
    %v1254 = vpop.f32.mrf.mxu0
    %v1255 = vadd.f32 0.0, %v1254
    %v1256 = vpop.f32.mrf.mxu0
    %1257 = vdwg.mxu0
    %v1258 = vmul.f32 %v1245, %v1245
    %v1259 = vadd.f32 %v791, %v1258
    %v1260 = vmul.f32 %v1250, %v1250
    %v1261 = vadd.f32 %v793, %v1260
    %v1262 = vmul.f32 %v1255, %v1255
    %v1263 = vadd.f32 %v795, %v1262
    %v1264 = vmul.f32 %v1245, %v1250
    %v1265 = vadd.f32 %v797, %v1264
    %v1266 = vmul.f32 %v1245, %v1255
    %v1267 = vadd.f32 %v799, %v1266
    %v1269 = vsel %vm144, %v1240, 0
    %1271 = vmatprep.subr.mxu0 0.0
    %1272 = vmatpush1.xpose.msra.mxu0 0.0
    %1273 = vmatprep.subr.mxu0 0.0
    %1274 = vmatpush1.xpose.msra.mxu0 0.0
    %1275 = vmatprep.subr.mxu0 0.0
    %1276 = vmatpush1.xpose.msra.mxu0 0.0
    %1277 = vmatprep.subr.mxu0 0.0
    %1278 = vmatpush1.xpose.msra.mxu0 0.0
    %1279 = vmatprep.subr.mxu0 0.0
    %1280 = vmatpush1.xpose.msra.mxu0 0.0
    %1281 = vmatprep.subr.mxu0 0.0
    %1282 = vmatpush1.xpose.msra.mxu0 0.0
    %1283 = vmatprep.subr.mxu0 0.0
    %1284 = vmatpush1.xpose.msra.mxu0 0.0
    %1285 = vmatprep.subr.mxu0 0.0
    %1286 = vmatpush1.xpose.msra.mxu0 0.0
    %1287 = vmatprep.subr.mxu0 0.0
    %1288 = vmatpush1.xpose.msra.mxu0 0.0
    %1289 = vmatprep.subr.mxu0 0.0
    %1290 = vmatpush1.xpose.msra.mxu0 0.0
    %1291 = vmatprep.subr.mxu0 0.0
    %1292 = vmatpush1.xpose.msra.mxu0 0.0
    %1293 = vmatprep.subr.mxu0 0.0
    %1294 = vmatpush1.xpose.msra.mxu0 0.0
    %1295 = vmatprep.subr.mxu0 0.0
    %1296 = vmatpush1.xpose.msra.mxu0 0.0
    %1297 = vmatprep.subr.mxu0 0.0
    %1298 = vmatpush1.xpose.msra.mxu0 0.0
    %1299 = vmatprep.subr.mxu0 0.0
    %1300 = vmatpush1.xpose.msra.mxu0 0.0
    %1301 = vmatprep.subr.mxu0 0.0
    %1302 = vmatpush1.xpose.msra.mxu0 %v1269
    %1303 = vmatprep.subr.mxu0 0.0
    %1304 = vmatpush2.xpose.msra.mxu0 0.0
    %1305 = vmatprep.subr.mxu0 0.0
    %1306 = vmatpush2.xpose.msra.mxu0 0.0
    %1307 = vmatprep.subr.mxu0 0.0
    %1308 = vmatpush2.xpose.msra.mxu0 0.0
    %1309 = vmatprep.subr.mxu0 0.0
    %1310 = vmatpush2.xpose.msra.mxu0 0.0
    %1311 = vmatprep.subr.mxu0 0.0
    %1312 = vmatpush2.xpose.msra.mxu0 0.0
    %1313 = vmatprep.subr.mxu0 0.0
    %1314 = vmatpush2.xpose.msra.mxu0 0.0
    %1315 = vmatprep.subr.mxu0 0.0
    %1316 = vmatpush2.xpose.msra.mxu0 0.0
    %1317 = vmatprep.subr.mxu0 0.0
    %1318 = vmatpush2.xpose.msra.mxu0 0.0
    %1319 = vmatprep.subr.mxu0 0.0
    %1320 = vmatpush2.xpose.msra.mxu0 0.0
    %1321 = vmatprep.subr.mxu0 0.0
    %1322 = vmatpush2.xpose.msra.mxu0 0.0
    %1323 = vmatprep.subr.mxu0 0.0
    %1324 = vmatpush2.xpose.msra.mxu0 0.0
    %1325 = vmatprep.subr.mxu0 0.0
    %1326 = vmatpush2.xpose.msra.mxu0 0.0
    %1327 = vmatprep.subr.mxu0 0.0
    %1328 = vmatpush2.xpose.msra.mxu0 0.0
    %1329 = vmatprep.subr.mxu0 0.0
    %1330 = vmatpush2.xpose.msra.mxu0 0.0
    %1331 = vmatprep.subr.mxu0 0.0
    %1332 = vmatpush2.xpose.msra.mxu0 0.0
    %1333 = vmatprep.subr.mxu0 0.0
    %1334 = vmatpush2.xpose.msra.mxu0 0.0
    %1335 = vmatprep.mubr.f32.mxu0 0.0
    %1336 = vmatmul.mubr.f32.gmra.mxu0 %v1269
    %v1337 = vpop.f32.mrf.mxu0
    %v1338 = vadd.f32 0.0, %v1337
    %v1339 = vpop.f32.mrf.mxu0
    %1340 = vdwg.mxu0
    %v1341 = vadd.f32 %v943, %v1338
    %1342 = vrot.lane.b32.xlu0 %v142, 104
    %v1343 = vpop.permute.xlu0 %1342
    %1344 = vrot.lane.b32.xlu0 %v143, 104
    %v1345 = vpop.permute.xlu0 %1344
    %v1348 = vsel %vm144, %v1343, 0.0
    %1349 = vadd.xlane.f32.xlu0 %v1348
    %v1350 = vpop.xlane.xlu0 %1349
    %v1351 = vsel %vm144, %v1345, 0.0
    %1352 = vadd.xlane.f32.xlu0 %v1351
    %v1353 = vpop.xlane.xlu0 %1352
    %1354 = vrot.lane.b32.xlu0 %v152, 104
    %v1355 = vpop.permute.xlu0 %1354
    %1356 = vrot.lane.b32.xlu0 %v130, 104
    %v1357 = vpop.permute.xlu0 %1356
    %1358 = vrot.lane.b32.xlu0 %v135, 104
    %v1359 = vpop.permute.xlu0 %1358
    %v1360 = vsel %vm144, %v1355, 0
    %v1362 = vsel %vm144, %v1357, 0
    %v1364 = vsel %vm144, %v1359, 0
    %1366 = vmatprep.subr.mxu0 0.0
    %1367 = vmatpush1.xpose.msra.mxu0 0.0
    %1368 = vmatprep.subr.mxu0 0.0
    %1369 = vmatpush1.xpose.msra.mxu0 0.0
    %1370 = vmatprep.subr.mxu0 0.0
    %1371 = vmatpush1.xpose.msra.mxu0 0.0
    %1372 = vmatprep.subr.mxu0 0.0
    %1373 = vmatpush1.xpose.msra.mxu0 0.0
    %1374 = vmatprep.subr.mxu0 0.0
    %1375 = vmatpush1.xpose.msra.mxu0 0.0
    %1376 = vmatprep.subr.mxu0 0.0
    %1377 = vmatpush1.xpose.msra.mxu0 0.0
    %1378 = vmatprep.subr.mxu0 0.0
    %1379 = vmatpush1.xpose.msra.mxu0 0.0
    %1380 = vmatprep.subr.mxu0 0.0
    %1381 = vmatpush1.xpose.msra.mxu0 0.0
    %1382 = vmatprep.subr.mxu0 0.0
    %1383 = vmatpush1.xpose.msra.mxu0 0.0
    %1384 = vmatprep.subr.mxu0 0.0
    %1385 = vmatpush1.xpose.msra.mxu0 0.0
    %1386 = vmatprep.subr.mxu0 0.0
    %1387 = vmatpush1.xpose.msra.mxu0 0.0
    %1388 = vmatprep.subr.mxu0 0.0
    %1389 = vmatpush1.xpose.msra.mxu0 0.0
    %1390 = vmatprep.subr.mxu0 0.0
    %1391 = vmatpush1.xpose.msra.mxu0 0.0
    %1392 = vmatprep.subr.mxu0 0.0
    %1393 = vmatpush1.xpose.msra.mxu0 0.0
    %1394 = vmatprep.subr.mxu0 0.0
    %1395 = vmatpush1.xpose.msra.mxu0 %v1364
    %1396 = vmatprep.subr.mxu0 0.0
    %1397 = vmatpush1.xpose.msra.mxu0 %v1362
    %1398 = vmatprep.subr.mxu0 0.0
    %1399 = vmatpush2.xpose.msra.mxu0 0.0
    %1400 = vmatprep.subr.mxu0 0.0
    %1401 = vmatpush2.xpose.msra.mxu0 0.0
    %1402 = vmatprep.subr.mxu0 0.0
    %1403 = vmatpush2.xpose.msra.mxu0 0.0
    %1404 = vmatprep.subr.mxu0 0.0
    %1405 = vmatpush2.xpose.msra.mxu0 0.0
    %1406 = vmatprep.subr.mxu0 0.0
    %1407 = vmatpush2.xpose.msra.mxu0 0.0
    %1408 = vmatprep.subr.mxu0 0.0
    %1409 = vmatpush2.xpose.msra.mxu0 0.0
    %1410 = vmatprep.subr.mxu0 0.0
    %1411 = vmatpush2.xpose.msra.mxu0 0.0
    %1412 = vmatprep.subr.mxu0 0.0
    %1413 = vmatpush2.xpose.msra.mxu0 0.0
    %1414 = vmatprep.subr.mxu0 0.0
    %1415 = vmatpush2.xpose.msra.mxu0 0.0
    %1416 = vmatprep.subr.mxu0 0.0
    %1417 = vmatpush2.xpose.msra.mxu0 0.0
    %1418 = vmatprep.subr.mxu0 0.0
    %1419 = vmatpush2.xpose.msra.mxu0 0.0
    %1420 = vmatprep.subr.mxu0 0.0
    %1421 = vmatpush2.xpose.msra.mxu0 0.0
    %1422 = vmatprep.subr.mxu0 0.0
    %1423 = vmatpush2.xpose.msra.mxu0 0.0
    %1424 = vmatprep.subr.mxu0 0.0
    %1425 = vmatpush2.xpose.msra.mxu0 0.0
    %1426 = vmatprep.subr.mxu0 0.0
    %1427 = vmatpush2.xpose.msra.mxu0 0.0
    %1428 = vmatprep.subr.mxu0 0.0
    %1429 = vmatpush2.xpose.msra.mxu0 0.0
    %1430 = vmatprep.mubr.f32.mxu0 0.0
    %1431 = vmatmul.mubr.f32.gmra.mxu0 %v1360
    %v1432 = vpop.f32.mrf.mxu0
    %v1433 = vadd.f32 0.0, %v1432
    %v1434 = vpop.f32.mrf.mxu0
    %1435 = vdwg.mxu0
    %v1436 = vlaneseq
    %v1437 = vshrl.u32 %v1436, 7
    %v1438 = vsub.s32 0, %v1437
    %v1439 = vrot.slane %v1433, %v1438
    %v1440 = vadd.f32 %v1350, %v1439
    %v1441 = vadd.f32 %v1353, %v1439
    %vm1442 = vcmp.gt.f32.partialorder %v1440, 0.0
    %vm1443 = vcmp.gt.f32.partialorder %v1441, 0.0
    %v1444 = vmul.f32 %v1440, 0.2
    %v1445 = vmul.f32 %v1441, 0.2
    %v1446 = vsel %vm1442, %v1440, %v1444
    %v1447 = vsel %vm1443, %v1441, %v1445
    %v1448 = vsel %vm247, %v1446, -9e+15
    %v1449 = vsel %vm248, %v1447, -9e+15
    %v1450 = vsel %vm251, %v1448, -inf
    %1451 = vmax.xlane.f32.xlu0 %v1450
    %v1452 = vpop.xlane.xlu0 %1451
    %v1453 = vsel %vm251, %v1449, -inf
    %1454 = vmax.xlane.f32.xlu0 %v1453
    %v1455 = vpop.xlane.xlu0 %1454
    %v1456 = vsub.f32 %v1448, %v1452
    %v1457 = vsub.f32 %v1449, %v1455
    %v1458 = vmul.f32 %v1456, 1.442695
    %v1459 = vpow.pop %v1458
    %v1460 = vmul.f32 %v1457, 1.442695
    %v1461 = vpow.pop %v1460
    %v1462 = vsel %vm251, %v1459, 0.0
    %1463 = vadd.xlane.f32.xlu0 %v1462
    %v1464 = vpop.xlane.xlu0 %1463
    %v1465 = vsel %vm251, %v1461, 0.0
    %1466 = vadd.xlane.f32.xlu0 %v1465
    %v1467 = vpop.xlane.xlu0 %1466
    %v1468 = vrcp.pop %v1464
    %v1469 = vmul.f32 1.0, %v1468
    %v1470 = vrcp.pop %v1467
    %v1471 = vmul.f32 1.0, %v1470
    %v1475 = vsel %vm251, %v1459, 0
    %v1478 = vsel %vm251, %v1461, 0
    %1480 = vmatprep.subr.mxu0 0.0
    %1481 = vmatpush1.msra.mxu0 0.0
    %1482 = vmatprep.subr.mxu0 0.0
    %1483 = vmatpush1.msra.mxu0 0.0
    %1484 = vmatprep.subr.mxu0 0.0
    %1485 = vmatpush1.msra.mxu0 0.0
    %1486 = vmatprep.subr.mxu0 0.0
    %1487 = vmatpush1.msra.mxu0 0.0
    %1488 = vmatprep.subr.mxu0 0.0
    %1489 = vmatpush1.msra.mxu0 0.0
    %1490 = vmatprep.subr.mxu0 0.0
    %1491 = vmatpush1.msra.mxu0 0.0
    %1492 = vmatprep.subr.mxu0 0.0
    %1493 = vmatpush1.msra.mxu0 0.0
    %1494 = vmatprep.subr.mxu0 0.0
    %1495 = vmatpush1.msra.mxu0 0.0
    %1496 = vmatprep.subr.mxu0 0.0
    %1497 = vmatpush1.msra.mxu0 0.0
    %1498 = vmatprep.subr.mxu0 0.0
    %1499 = vmatpush1.msra.mxu0 0.0
    %1500 = vmatprep.subr.mxu0 0.0
    %1501 = vmatpush1.msra.mxu0 0.0
    %1502 = vmatprep.subr.mxu0 0.0
    %1503 = vmatpush1.msra.mxu0 0.0
    %1504 = vmatprep.subr.mxu0 0.0
    %1505 = vmatpush1.msra.mxu0 0.0
    %1506 = vmatprep.subr.mxu0 0.0
    %1507 = vmatpush1.msra.mxu0 0.0
    %1508 = vmatprep.subr.mxu0 0.0
    %1509 = vmatpush1.msra.mxu0 %v1359
    %1510 = vmatprep.subr.mxu0 0.0
    %1511 = vmatpush1.msra.mxu0 %v1357
    %1512 = vmatprep.subr.mxu0 0.0
    %1513 = vmatpush2.msra.mxu0 0.0
    %1514 = vmatprep.subr.mxu0 0.0
    %1515 = vmatpush2.msra.mxu0 0.0
    %1516 = vmatprep.subr.mxu0 0.0
    %1517 = vmatpush2.msra.mxu0 0.0
    %1518 = vmatprep.subr.mxu0 0.0
    %1519 = vmatpush2.msra.mxu0 0.0
    %1520 = vmatprep.subr.mxu0 0.0
    %1521 = vmatpush2.msra.mxu0 0.0
    %1522 = vmatprep.subr.mxu0 0.0
    %1523 = vmatpush2.msra.mxu0 0.0
    %1524 = vmatprep.subr.mxu0 0.0
    %1525 = vmatpush2.msra.mxu0 0.0
    %1526 = vmatprep.subr.mxu0 0.0
    %1527 = vmatpush2.msra.mxu0 0.0
    %1528 = vmatprep.subr.mxu0 0.0
    %1529 = vmatpush2.msra.mxu0 0.0
    %1530 = vmatprep.subr.mxu0 0.0
    %1531 = vmatpush2.msra.mxu0 0.0
    %1532 = vmatprep.subr.mxu0 0.0
    %1533 = vmatpush2.msra.mxu0 0.0
    %1534 = vmatprep.subr.mxu0 0.0
    %1535 = vmatpush2.msra.mxu0 0.0
    %1536 = vmatprep.subr.mxu0 0.0
    %1537 = vmatpush2.msra.mxu0 0.0
    %1538 = vmatprep.subr.mxu0 0.0
    %1539 = vmatpush2.msra.mxu0 0.0
    %1540 = vmatprep.subr.mxu0 0.0
    %1541 = vmatpush2.msra.mxu0 0.0
    %1542 = vmatprep.subr.mxu0 0.0
    %1543 = vmatpush2.msra.mxu0 0.0
    %1544 = vmatprep.mubr.f32.mxu0 0.0
    %1545 = vmatmul.mubr.f32.gmra.mxu0 %v1475
    %v1546 = vpop.f32.mrf.mxu0
    %v1547 = vadd.f32 0.0, %v1546
    %v1548 = vpop.f32.mrf.mxu0
    %1549 = vmatprep.mubr.f32.mxu0 0.0
    %1550 = vmatmul.mubr.f32.gmra.mxu0 %v1478
    %v1551 = vpop.f32.mrf.mxu0
    %v1552 = vadd.f32 0.0, %v1551
    %v1553 = vpop.f32.mrf.mxu0
    %1554 = vdwg.mxu0
    %v1555 = vmul.f32 %v1547, %v1469
    %v1556 = vmul.f32 %v1552, %v1471
    %vm1557 = vcmp.gt.f32.partialorder %v1555, 0.0
    %vm1558 = vcmp.gt.f32.partialorder %v1556, 0.0
    %v1559 = vmin.f32 %v1555, 0.0
    %v1560 = vmin.f32 %v1556, 0.0
    %v1561 = vmul.f32 %v1559, 1.442695
    %v1562 = vpow.pop %v1561
    %v1563 = vmul.f32 %v1560, 1.442695
    %v1564 = vpow.pop %v1563
    %v1565 = vsub.f32 %v1562, 1.0
    %v1566 = vsub.f32 %v1564, 1.0
    %v1567 = vsel %vm1557, %v1555, %v1565
    %v1568 = vsel %vm1558, %v1556, %v1566
    %1569 = vmatprep.subr.mxu0 0.0
    %1570 = vmatpush1.msra.mxu0 0.0
    %1571 = vmatprep.subr.mxu0 0.0
    %1572 = vmatpush1.msra.mxu0 0.0
    %1573 = vmatprep.subr.mxu0 0.0
    %1574 = vmatpush1.msra.mxu0 0.0
    %1575 = vmatprep.subr.mxu0 0.0
    %1576 = vmatpush1.msra.mxu0 0.0
    %1577 = vmatprep.subr.mxu0 0.0
    %1578 = vmatpush1.msra.mxu0 0.0
    %1579 = vmatprep.subr.mxu0 0.0
    %1580 = vmatpush1.msra.mxu0 0.0
    %1581 = vmatprep.subr.mxu0 0.0
    %1582 = vmatpush1.msra.mxu0 0.0
    %1583 = vmatprep.subr.mxu0 0.0
    %1584 = vmatpush1.msra.mxu0 0.0
    %1585 = vmatprep.subr.mxu0 0.0
    %1586 = vmatpush1.msra.mxu0 0.0
    %1587 = vmatprep.subr.mxu0 0.0
    %1588 = vmatpush1.msra.mxu0 0.0
    %1589 = vmatprep.subr.mxu0 0.0
    %1590 = vmatpush1.msra.mxu0 0.0
    %1591 = vmatprep.subr.mxu0 0.0
    %1592 = vmatpush1.msra.mxu0 0.0
    %1593 = vmatprep.subr.mxu0 0.0
    %1594 = vmatpush1.msra.mxu0 0.0
    %1595 = vmatprep.subr.mxu0 0.0
    %1596 = vmatpush1.msra.mxu0 0.0
    %1597 = vmatprep.subr.mxu0 0.0
    %1598 = vmatpush1.msra.mxu0 %v1568
    %1599 = vmatprep.subr.mxu0 0.0
    %1600 = vmatpush1.msra.mxu0 %v1567
    %1601 = vmatprep.subr.mxu0 0.0
    %1602 = vmatpush2.msra.mxu0 0.0
    %1603 = vmatprep.subr.mxu0 0.0
    %1604 = vmatpush2.msra.mxu0 0.0
    %1605 = vmatprep.subr.mxu0 0.0
    %1606 = vmatpush2.msra.mxu0 0.0
    %1607 = vmatprep.subr.mxu0 0.0
    %1608 = vmatpush2.msra.mxu0 0.0
    %1609 = vmatprep.subr.mxu0 0.0
    %1610 = vmatpush2.msra.mxu0 0.0
    %1611 = vmatprep.subr.mxu0 0.0
    %1612 = vmatpush2.msra.mxu0 0.0
    %1613 = vmatprep.subr.mxu0 0.0
    %1614 = vmatpush2.msra.mxu0 0.0
    %1615 = vmatprep.subr.mxu0 0.0
    %1616 = vmatpush2.msra.mxu0 0.0
    %1617 = vmatprep.subr.mxu0 0.0
    %1618 = vmatpush2.msra.mxu0 0.0
    %1619 = vmatprep.subr.mxu0 0.0
    %1620 = vmatpush2.msra.mxu0 0.0
    %1621 = vmatprep.subr.mxu0 0.0
    %1622 = vmatpush2.msra.mxu0 0.0
    %1623 = vmatprep.subr.mxu0 0.0
    %1624 = vmatpush2.msra.mxu0 0.0
    %1625 = vmatprep.subr.mxu0 0.0
    %1626 = vmatpush2.msra.mxu0 0.0
    %1627 = vmatprep.subr.mxu0 0.0
    %1628 = vmatpush2.msra.mxu0 0.0
    %1629 = vmatprep.subr.mxu0 0.0
    %1630 = vmatpush2.msra.mxu0 0.0
    %1631 = vmatprep.subr.mxu0 0.0
    %1632 = vmatpush2.msra.mxu0 0.0
    %1633 = vmatprep.mubr.f32.mxu0 0.0
    %1634 = vmatmul.mubr.f32.gmra.mxu0 %v370
    %v1635 = vpop.f32.mrf.mxu0
    %v1636 = vadd.f32 0.0, %v1635
    %v1637 = vpop.f32.mrf.mxu0
    %1638 = vmatprep.mubr.f32.mxu0 0.0
    %1639 = vmatmul.mubr.f32.gmra.mxu0 %v373
    %v1640 = vpop.f32.mrf.mxu0
    %v1641 = vadd.f32 0.0, %v1640
    %v1642 = vpop.f32.mrf.mxu0
    %1643 = vmatprep.mubr.f32.mxu0 0.0
    %1644 = vmatmul.mubr.f32.gmra.mxu0 %v376
    %v1645 = vpop.f32.mrf.mxu0
    %v1646 = vadd.f32 0.0, %v1645
    %v1647 = vpop.f32.mrf.mxu0
    %1648 = vmatprep.mubr.f32.mxu0 0.0
    %1649 = vmatmul.mubr.f32.gmra.mxu0 %v379
    %v1650 = vpop.f32.mrf.mxu0
    %v1651 = vadd.f32 0.0, %v1650
    %v1652 = vpop.f32.mrf.mxu0
    %1653 = vdwg.mxu0
    %v1654 = vmul.f32 %v1641, %v1641
    %v1655 = vadd.f32 %v1259, %v1654
    %v1656 = vmul.f32 %v1646, %v1646
    %v1657 = vadd.f32 %v1261, %v1656
    %v1658 = vmul.f32 %v1651, %v1651
    %v1659 = vadd.f32 %v1263, %v1658
    %v1660 = vmul.f32 %v1641, %v1646
    %v1661 = vadd.f32 %v1265, %v1660
    %v1662 = vmul.f32 %v1641, %v1651
    %v1663 = vadd.f32 %v1267, %v1662
    %v1665 = vsel %vm144, %v1636, 0
    %1667 = vmatprep.subr.mxu0 0.0
    %1668 = vmatpush1.xpose.msra.mxu0 0.0
    %1669 = vmatprep.subr.mxu0 0.0
    %1670 = vmatpush1.xpose.msra.mxu0 0.0
    %1671 = vmatprep.subr.mxu0 0.0
    %1672 = vmatpush1.xpose.msra.mxu0 0.0
    %1673 = vmatprep.subr.mxu0 0.0
    %1674 = vmatpush1.xpose.msra.mxu0 0.0
    %1675 = vmatprep.subr.mxu0 0.0
    %1676 = vmatpush1.xpose.msra.mxu0 0.0
    %1677 = vmatprep.subr.mxu0 0.0
    %1678 = vmatpush1.xpose.msra.mxu0 0.0
    %1679 = vmatprep.subr.mxu0 0.0
    %1680 = vmatpush1.xpose.msra.mxu0 0.0
    %1681 = vmatprep.subr.mxu0 0.0
    %1682 = vmatpush1.xpose.msra.mxu0 0.0
    %1683 = vmatprep.subr.mxu0 0.0
    %1684 = vmatpush1.xpose.msra.mxu0 0.0
    %1685 = vmatprep.subr.mxu0 0.0
    %1686 = vmatpush1.xpose.msra.mxu0 0.0
    %1687 = vmatprep.subr.mxu0 0.0
    %1688 = vmatpush1.xpose.msra.mxu0 0.0
    %1689 = vmatprep.subr.mxu0 0.0
    %1690 = vmatpush1.xpose.msra.mxu0 0.0
    %1691 = vmatprep.subr.mxu0 0.0
    %1692 = vmatpush1.xpose.msra.mxu0 0.0
    %1693 = vmatprep.subr.mxu0 0.0
    %1694 = vmatpush1.xpose.msra.mxu0 0.0
    %1695 = vmatprep.subr.mxu0 0.0
    %1696 = vmatpush1.xpose.msra.mxu0 0.0
    %1697 = vmatprep.subr.mxu0 0.0
    %1698 = vmatpush1.xpose.msra.mxu0 %v1665
    %1699 = vmatprep.subr.mxu0 0.0
    %1700 = vmatpush2.xpose.msra.mxu0 0.0
    %1701 = vmatprep.subr.mxu0 0.0
    %1702 = vmatpush2.xpose.msra.mxu0 0.0
    %1703 = vmatprep.subr.mxu0 0.0
    %1704 = vmatpush2.xpose.msra.mxu0 0.0
    %1705 = vmatprep.subr.mxu0 0.0
    %1706 = vmatpush2.xpose.msra.mxu0 0.0
    %1707 = vmatprep.subr.mxu0 0.0
    %1708 = vmatpush2.xpose.msra.mxu0 0.0
    %1709 = vmatprep.subr.mxu0 0.0
    %1710 = vmatpush2.xpose.msra.mxu0 0.0
    %1711 = vmatprep.subr.mxu0 0.0
    %1712 = vmatpush2.xpose.msra.mxu0 0.0
    %1713 = vmatprep.subr.mxu0 0.0
    %1714 = vmatpush2.xpose.msra.mxu0 0.0
    %1715 = vmatprep.subr.mxu0 0.0
    %1716 = vmatpush2.xpose.msra.mxu0 0.0
    %1717 = vmatprep.subr.mxu0 0.0
    %1718 = vmatpush2.xpose.msra.mxu0 0.0
    %1719 = vmatprep.subr.mxu0 0.0
    %1720 = vmatpush2.xpose.msra.mxu0 0.0
    %1721 = vmatprep.subr.mxu0 0.0
    %1722 = vmatpush2.xpose.msra.mxu0 0.0
    %1723 = vmatprep.subr.mxu0 0.0
    %1724 = vmatpush2.xpose.msra.mxu0 0.0
    %1725 = vmatprep.subr.mxu0 0.0
    %1726 = vmatpush2.xpose.msra.mxu0 0.0
    %1727 = vmatprep.subr.mxu0 0.0
    %1728 = vmatpush2.xpose.msra.mxu0 0.0
    %1729 = vmatprep.subr.mxu0 0.0
    %1730 = vmatpush2.xpose.msra.mxu0 0.0
    %1731 = vmatprep.mubr.f32.mxu0 0.0
    %1732 = vmatmul.mubr.f32.gmra.mxu0 %v1665
    %v1733 = vpop.f32.mrf.mxu0
    %v1734 = vadd.f32 0.0, %v1733
    %v1735 = vpop.f32.mrf.mxu0
    %1736 = vdwg.mxu0
    %v1737 = vadd.f32 %v1341, %v1734
    %1738 = vrot.lane.b32.xlu0 %v142, 96
    %v1739 = vpop.permute.xlu0 %1738
    %1740 = vrot.lane.b32.xlu0 %v143, 96
    %v1741 = vpop.permute.xlu0 %1740
    %v1744 = vsel %vm144, %v1739, 0.0
    %1745 = vadd.xlane.f32.xlu0 %v1744
    %v1746 = vpop.xlane.xlu0 %1745
    %v1747 = vsel %vm144, %v1741, 0.0
    %1748 = vadd.xlane.f32.xlu0 %v1747
    %v1749 = vpop.xlane.xlu0 %1748
    %1750 = vrot.lane.b32.xlu0 %v152, 96
    %v1751 = vpop.permute.xlu0 %1750
    %1752 = vrot.lane.b32.xlu0 %v130, 96
    %v1753 = vpop.permute.xlu0 %1752
    %1754 = vrot.lane.b32.xlu0 %v135, 96
    %v1755 = vpop.permute.xlu0 %1754
    %v1756 = vsel %vm144, %v1751, 0
    %v1758 = vsel %vm144, %v1753, 0
    %v1760 = vsel %vm144, %v1755, 0
    %1762 = vmatprep.subr.mxu0 0.0
    %1763 = vmatpush1.xpose.msra.mxu0 0.0
    %1764 = vmatprep.subr.mxu0 0.0
    %1765 = vmatpush1.xpose.msra.mxu0 0.0
    %1766 = vmatprep.subr.mxu0 0.0
    %1767 = vmatpush1.xpose.msra.mxu0 0.0
    %1768 = vmatprep.subr.mxu0 0.0
    %1769 = vmatpush1.xpose.msra.mxu0 0.0
    %1770 = vmatprep.subr.mxu0 0.0
    %1771 = vmatpush1.xpose.msra.mxu0 0.0
    %1772 = vmatprep.subr.mxu0 0.0
    %1773 = vmatpush1.xpose.msra.mxu0 0.0
    %1774 = vmatprep.subr.mxu0 0.0
    %1775 = vmatpush1.xpose.msra.mxu0 0.0
    %1776 = vmatprep.subr.mxu0 0.0
    %1777 = vmatpush1.xpose.msra.mxu0 0.0
    %1778 = vmatprep.subr.mxu0 0.0
    %1779 = vmatpush1.xpose.msra.mxu0 0.0
    %1780 = vmatprep.subr.mxu0 0.0
    %1781 = vmatpush1.xpose.msra.mxu0 0.0
    %1782 = vmatprep.subr.mxu0 0.0
    %1783 = vmatpush1.xpose.msra.mxu0 0.0
    %1784 = vmatprep.subr.mxu0 0.0
    %1785 = vmatpush1.xpose.msra.mxu0 0.0
    %1786 = vmatprep.subr.mxu0 0.0
    %1787 = vmatpush1.xpose.msra.mxu0 0.0
    %1788 = vmatprep.subr.mxu0 0.0
    %1789 = vmatpush1.xpose.msra.mxu0 0.0
    %1790 = vmatprep.subr.mxu0 0.0
    %1791 = vmatpush1.xpose.msra.mxu0 %v1760
    %1792 = vmatprep.subr.mxu0 0.0
    %1793 = vmatpush1.xpose.msra.mxu0 %v1758
    %1794 = vmatprep.subr.mxu0 0.0
    %1795 = vmatpush2.xpose.msra.mxu0 0.0
    %1796 = vmatprep.subr.mxu0 0.0
    %1797 = vmatpush2.xpose.msra.mxu0 0.0
    %1798 = vmatprep.subr.mxu0 0.0
    %1799 = vmatpush2.xpose.msra.mxu0 0.0
    %1800 = vmatprep.subr.mxu0 0.0
    %1801 = vmatpush2.xpose.msra.mxu0 0.0
    %1802 = vmatprep.subr.mxu0 0.0
    %1803 = vmatpush2.xpose.msra.mxu0 0.0
    %1804 = vmatprep.subr.mxu0 0.0
    %1805 = vmatpush2.xpose.msra.mxu0 0.0
    %1806 = vmatprep.subr.mxu0 0.0
    %1807 = vmatpush2.xpose.msra.mxu0 0.0
    %1808 = vmatprep.subr.mxu0 0.0
    %1809 = vmatpush2.xpose.msra.mxu0 0.0
    %1810 = vmatprep.subr.mxu0 0.0
    %1811 = vmatpush2.xpose.msra.mxu0 0.0
    %1812 = vmatprep.subr.mxu0 0.0
    %1813 = vmatpush2.xpose.msra.mxu0 0.0
    %1814 = vmatprep.subr.mxu0 0.0
    %1815 = vmatpush2.xpose.msra.mxu0 0.0
    %1816 = vmatprep.subr.mxu0 0.0
    %1817 = vmatpush2.xpose.msra.mxu0 0.0
    %1818 = vmatprep.subr.mxu0 0.0
    %1819 = vmatpush2.xpose.msra.mxu0 0.0
    %1820 = vmatprep.subr.mxu0 0.0
    %1821 = vmatpush2.xpose.msra.mxu0 0.0
    %1822 = vmatprep.subr.mxu0 0.0
    %1823 = vmatpush2.xpose.msra.mxu0 0.0
    %1824 = vmatprep.subr.mxu0 0.0
    %1825 = vmatpush2.xpose.msra.mxu0 0.0
    %1826 = vmatprep.mubr.f32.mxu0 0.0
    %1827 = vmatmul.mubr.f32.gmra.mxu0 %v1756
    %v1828 = vpop.f32.mrf.mxu0
    %v1829 = vadd.f32 0.0, %v1828
    %v1830 = vpop.f32.mrf.mxu0
    %1831 = vdwg.mxu0
    %v1832 = vlaneseq
    %v1833 = vshrl.u32 %v1832, 7
    %v1834 = vsub.s32 0, %v1833
    %v1835 = vrot.slane %v1829, %v1834
    %v1836 = vadd.f32 %v1746, %v1835
    %v1837 = vadd.f32 %v1749, %v1835
    %vm1838 = vcmp.gt.f32.partialorder %v1836, 0.0
    %vm1839 = vcmp.gt.f32.partialorder %v1837, 0.0
    %v1840 = vmul.f32 %v1836, 0.2
    %v1841 = vmul.f32 %v1837, 0.2
    %v1842 = vsel %vm1838, %v1836, %v1840
    %v1843 = vsel %vm1839, %v1837, %v1841
    %v1844 = vsel %vm247, %v1842, -9e+15
    %v1845 = vsel %vm248, %v1843, -9e+15
    %v1846 = vsel %vm251, %v1844, -inf
    %1847 = vmax.xlane.f32.xlu0 %v1846
    %v1848 = vpop.xlane.xlu0 %1847
    %v1849 = vsel %vm251, %v1845, -inf
    %1850 = vmax.xlane.f32.xlu0 %v1849
    %v1851 = vpop.xlane.xlu0 %1850
    %v1852 = vsub.f32 %v1844, %v1848
    %v1853 = vsub.f32 %v1845, %v1851
    %v1854 = vmul.f32 %v1852, 1.442695
    %v1855 = vpow.pop %v1854
    %v1856 = vmul.f32 %v1853, 1.442695
    %v1857 = vpow.pop %v1856
    %v1858 = vsel %vm251, %v1855, 0.0
    %1859 = vadd.xlane.f32.xlu0 %v1858
    %v1860 = vpop.xlane.xlu0 %1859
    %v1861 = vsel %vm251, %v1857, 0.0
    %1862 = vadd.xlane.f32.xlu0 %v1861
    %v1863 = vpop.xlane.xlu0 %1862
    %v1864 = vrcp.pop %v1860
    %v1865 = vmul.f32 1.0, %v1864
    %v1866 = vrcp.pop %v1863
    %v1867 = vmul.f32 1.0, %v1866
    %v1871 = vsel %vm251, %v1855, 0
    %v1874 = vsel %vm251, %v1857, 0
    %1876 = vmatprep.subr.mxu0 0.0
    %1877 = vmatpush1.msra.mxu0 0.0
    %1878 = vmatprep.subr.mxu0 0.0
    %1879 = vmatpush1.msra.mxu0 0.0
    %1880 = vmatprep.subr.mxu0 0.0
    %1881 = vmatpush1.msra.mxu0 0.0
    %1882 = vmatprep.subr.mxu0 0.0
    %1883 = vmatpush1.msra.mxu0 0.0
    %1884 = vmatprep.subr.mxu0 0.0
    %1885 = vmatpush1.msra.mxu0 0.0
    %1886 = vmatprep.subr.mxu0 0.0
    %1887 = vmatpush1.msra.mxu0 0.0
    %1888 = vmatprep.subr.mxu0 0.0
    %1889 = vmatpush1.msra.mxu0 0.0
    %1890 = vmatprep.subr.mxu0 0.0
    %1891 = vmatpush1.msra.mxu0 0.0
    %1892 = vmatprep.subr.mxu0 0.0
    %1893 = vmatpush1.msra.mxu0 0.0
    %1894 = vmatprep.subr.mxu0 0.0
    %1895 = vmatpush1.msra.mxu0 0.0
    %1896 = vmatprep.subr.mxu0 0.0
    %1897 = vmatpush1.msra.mxu0 0.0
    %1898 = vmatprep.subr.mxu0 0.0
    %1899 = vmatpush1.msra.mxu0 0.0
    %1900 = vmatprep.subr.mxu0 0.0
    %1901 = vmatpush1.msra.mxu0 0.0
    %1902 = vmatprep.subr.mxu0 0.0
    %1903 = vmatpush1.msra.mxu0 0.0
    %1904 = vmatprep.subr.mxu0 0.0
    %1905 = vmatpush1.msra.mxu0 %v1755
    %1906 = vmatprep.subr.mxu0 0.0
    %1907 = vmatpush1.msra.mxu0 %v1753
    %1908 = vmatprep.subr.mxu0 0.0
    %1909 = vmatpush2.msra.mxu0 0.0
    %1910 = vmatprep.subr.mxu0 0.0
    %1911 = vmatpush2.msra.mxu0 0.0
    %1912 = vmatprep.subr.mxu0 0.0
    %1913 = vmatpush2.msra.mxu0 0.0
    %1914 = vmatprep.subr.mxu0 0.0
    %1915 = vmatpush2.msra.mxu0 0.0
    %1916 = vmatprep.subr.mxu0 0.0
    %1917 = vmatpush2.msra.mxu0 0.0
    %1918 = vmatprep.subr.mxu0 0.0
    %1919 = vmatpush2.msra.mxu0 0.0
    %1920 = vmatprep.subr.mxu0 0.0
    %1921 = vmatpush2.msra.mxu0 0.0
    %1922 = vmatprep.subr.mxu0 0.0
    %1923 = vmatpush2.msra.mxu0 0.0
    %1924 = vmatprep.subr.mxu0 0.0
    %1925 = vmatpush2.msra.mxu0 0.0
    %1926 = vmatprep.subr.mxu0 0.0
    %1927 = vmatpush2.msra.mxu0 0.0
    %1928 = vmatprep.subr.mxu0 0.0
    %1929 = vmatpush2.msra.mxu0 0.0
    %1930 = vmatprep.subr.mxu0 0.0
    %1931 = vmatpush2.msra.mxu0 0.0
    %1932 = vmatprep.subr.mxu0 0.0
    %1933 = vmatpush2.msra.mxu0 0.0
    %1934 = vmatprep.subr.mxu0 0.0
    %1935 = vmatpush2.msra.mxu0 0.0
    %1936 = vmatprep.subr.mxu0 0.0
    %1937 = vmatpush2.msra.mxu0 0.0
    %1938 = vmatprep.subr.mxu0 0.0
    %1939 = vmatpush2.msra.mxu0 0.0
    %1940 = vmatprep.mubr.f32.mxu0 0.0
    %1941 = vmatmul.mubr.f32.gmra.mxu0 %v1871
    %v1942 = vpop.f32.mrf.mxu0
    %v1943 = vadd.f32 0.0, %v1942
    %v1944 = vpop.f32.mrf.mxu0
    %1945 = vmatprep.mubr.f32.mxu0 0.0
    %1946 = vmatmul.mubr.f32.gmra.mxu0 %v1874
    %v1947 = vpop.f32.mrf.mxu0
    %v1948 = vadd.f32 0.0, %v1947
    %v1949 = vpop.f32.mrf.mxu0
    %1950 = vdwg.mxu0
    %v1951 = vmul.f32 %v1943, %v1865
    %v1952 = vmul.f32 %v1948, %v1867
    %vm1953 = vcmp.gt.f32.partialorder %v1951, 0.0
    %vm1954 = vcmp.gt.f32.partialorder %v1952, 0.0
    %v1955 = vmin.f32 %v1951, 0.0
    %v1956 = vmin.f32 %v1952, 0.0
    %v1957 = vmul.f32 %v1955, 1.442695
    %v1958 = vpow.pop %v1957
    %v1959 = vmul.f32 %v1956, 1.442695
    %v1960 = vpow.pop %v1959
    %v1961 = vsub.f32 %v1958, 1.0
    %v1962 = vsub.f32 %v1960, 1.0
    %v1963 = vsel %vm1953, %v1951, %v1961
    %v1964 = vsel %vm1954, %v1952, %v1962
    %1965 = vmatprep.subr.mxu0 0.0
    %1966 = vmatpush1.msra.mxu0 0.0
    %1967 = vmatprep.subr.mxu0 0.0
    %1968 = vmatpush1.msra.mxu0 0.0
    %1969 = vmatprep.subr.mxu0 0.0
    %1970 = vmatpush1.msra.mxu0 0.0
    %1971 = vmatprep.subr.mxu0 0.0
    %1972 = vmatpush1.msra.mxu0 0.0
    %1973 = vmatprep.subr.mxu0 0.0
    %1974 = vmatpush1.msra.mxu0 0.0
    %1975 = vmatprep.subr.mxu0 0.0
    %1976 = vmatpush1.msra.mxu0 0.0
    %1977 = vmatprep.subr.mxu0 0.0
    %1978 = vmatpush1.msra.mxu0 0.0
    %1979 = vmatprep.subr.mxu0 0.0
    %1980 = vmatpush1.msra.mxu0 0.0
    %1981 = vmatprep.subr.mxu0 0.0
    %1982 = vmatpush1.msra.mxu0 0.0
    %1983 = vmatprep.subr.mxu0 0.0
    %1984 = vmatpush1.msra.mxu0 0.0
    %1985 = vmatprep.subr.mxu0 0.0
    %1986 = vmatpush1.msra.mxu0 0.0
    %1987 = vmatprep.subr.mxu0 0.0
    %1988 = vmatpush1.msra.mxu0 0.0
    %1989 = vmatprep.subr.mxu0 0.0
    %1990 = vmatpush1.msra.mxu0 0.0
    %1991 = vmatprep.subr.mxu0 0.0
    %1992 = vmatpush1.msra.mxu0 0.0
    %1993 = vmatprep.subr.mxu0 0.0
    %1994 = vmatpush1.msra.mxu0 %v1964
    %1995 = vmatprep.subr.mxu0 0.0
    %1996 = vmatpush1.msra.mxu0 %v1963
    %1997 = vmatprep.subr.mxu0 0.0
    %1998 = vmatpush2.msra.mxu0 0.0
    %1999 = vmatprep.subr.mxu0 0.0
    %2000 = vmatpush2.msra.mxu0 0.0
    %2001 = vmatprep.subr.mxu0 0.0
    %2002 = vmatpush2.msra.mxu0 0.0
    %2003 = vmatprep.subr.mxu0 0.0
    %2004 = vmatpush2.msra.mxu0 0.0
    %2005 = vmatprep.subr.mxu0 0.0
    %2006 = vmatpush2.msra.mxu0 0.0
    %2007 = vmatprep.subr.mxu0 0.0
    %2008 = vmatpush2.msra.mxu0 0.0
    %2009 = vmatprep.subr.mxu0 0.0
    %2010 = vmatpush2.msra.mxu0 0.0
    %2011 = vmatprep.subr.mxu0 0.0
    %2012 = vmatpush2.msra.mxu0 0.0
    %2013 = vmatprep.subr.mxu0 0.0
    %2014 = vmatpush2.msra.mxu0 0.0
    %2015 = vmatprep.subr.mxu0 0.0
    %2016 = vmatpush2.msra.mxu0 0.0
    %2017 = vmatprep.subr.mxu0 0.0
    %2018 = vmatpush2.msra.mxu0 0.0
    %2019 = vmatprep.subr.mxu0 0.0
    %2020 = vmatpush2.msra.mxu0 0.0
    %2021 = vmatprep.subr.mxu0 0.0
    %2022 = vmatpush2.msra.mxu0 0.0
    %2023 = vmatprep.subr.mxu0 0.0
    %2024 = vmatpush2.msra.mxu0 0.0
    %2025 = vmatprep.subr.mxu0 0.0
    %2026 = vmatpush2.msra.mxu0 0.0
    %2027 = vmatprep.subr.mxu0 0.0
    %2028 = vmatpush2.msra.mxu0 0.0
    %2029 = vmatprep.mubr.f32.mxu0 0.0
    %2030 = vmatmul.mubr.f32.gmra.mxu0 %v370
    %v2031 = vpop.f32.mrf.mxu0
    %v2032 = vadd.f32 0.0, %v2031
    %v2033 = vpop.f32.mrf.mxu0
    %2034 = vmatprep.mubr.f32.mxu0 0.0
    %2035 = vmatmul.mubr.f32.gmra.mxu0 %v373
    %v2036 = vpop.f32.mrf.mxu0
    %v2037 = vadd.f32 0.0, %v2036
    %v2038 = vpop.f32.mrf.mxu0
    %2039 = vmatprep.mubr.f32.mxu0 0.0
    %2040 = vmatmul.mubr.f32.gmra.mxu0 %v376
    %v2041 = vpop.f32.mrf.mxu0
    %v2042 = vadd.f32 0.0, %v2041
    %v2043 = vpop.f32.mrf.mxu0
    %2044 = vmatprep.mubr.f32.mxu0 0.0
    %2045 = vmatmul.mubr.f32.gmra.mxu0 %v379
    %v2046 = vpop.f32.mrf.mxu0
    %v2047 = vadd.f32 0.0, %v2046
    %v2048 = vpop.f32.mrf.mxu0
    %2049 = vdwg.mxu0
    %v2050 = vmul.f32 %v2037, %v2037
    %v2051 = vadd.f32 %v1655, %v2050
    %v2052 = vmul.f32 %v2042, %v2042
    %v2053 = vadd.f32 %v1657, %v2052
    %v2054 = vmul.f32 %v2047, %v2047
    %v2055 = vadd.f32 %v1659, %v2054
    %v2056 = vmul.f32 %v2037, %v2042
    %v2057 = vadd.f32 %v1661, %v2056
    %v2058 = vmul.f32 %v2037, %v2047
    %v2059 = vadd.f32 %v1663, %v2058
    %2060 = vrot.lane.b32.xlu0 %v142, 88
    %v2061 = vpop.permute.xlu0 %2060
    %2062 = vrot.lane.b32.xlu0 %v143, 88
    %v2063 = vpop.permute.xlu0 %2062
    %v2066 = vsel %vm144, %v2061, 0.0
    %2067 = vadd.xlane.f32.xlu0 %v2066
    %v2068 = vpop.xlane.xlu0 %2067
    %v2069 = vsel %vm144, %v2063, 0.0
    %2070 = vadd.xlane.f32.xlu0 %v2069
    %v2071 = vpop.xlane.xlu0 %2070
    %2072 = vrot.lane.b32.xlu0 %v152, 88
    %v2073 = vpop.permute.xlu0 %2072
    %2074 = vrot.lane.b32.xlu0 %v130, 88
    %v2075 = vpop.permute.xlu0 %2074
    %2076 = vrot.lane.b32.xlu0 %v135, 88
    %v2077 = vpop.permute.xlu0 %2076
    %v2078 = vsel %vm144, %v2073, 0
    %v2080 = vsel %vm144, %v2075, 0
    %v2082 = vsel %vm144, %v2077, 0
    %2084 = vmatprep.subr.mxu0 0.0
    %2085 = vmatpush1.xpose.msra.mxu0 0.0
    %2086 = vmatprep.subr.mxu0 0.0
    %2087 = vmatpush1.xpose.msra.mxu0 0.0
    %2088 = vmatprep.subr.mxu0 0.0
    %2089 = vmatpush1.xpose.msra.mxu0 0.0
    %2090 = vmatprep.subr.mxu0 0.0
    %2091 = vmatpush1.xpose.msra.mxu0 0.0
    %2092 = vmatprep.subr.mxu0 0.0
    %2093 = vmatpush1.xpose.msra.mxu0 0.0
    %2094 = vmatprep.subr.mxu0 0.0
    %2095 = vmatpush1.xpose.msra.mxu0 0.0
    %2096 = vmatprep.subr.mxu0 0.0
    %2097 = vmatpush1.xpose.msra.mxu0 0.0
    %2098 = vmatprep.subr.mxu0 0.0
    %2099 = vmatpush1.xpose.msra.mxu0 0.0
    %2100 = vmatprep.subr.mxu0 0.0
    %2101 = vmatpush1.xpose.msra.mxu0 0.0
    %2102 = vmatprep.subr.mxu0 0.0
    %2103 = vmatpush1.xpose.msra.mxu0 0.0
    %2104 = vmatprep.subr.mxu0 0.0
    %2105 = vmatpush1.xpose.msra.mxu0 0.0
    %2106 = vmatprep.subr.mxu0 0.0
    %2107 = vmatpush1.xpose.msra.mxu0 0.0
    %2108 = vmatprep.subr.mxu0 0.0
    %2109 = vmatpush1.xpose.msra.mxu0 0.0
    %2110 = vmatprep.subr.mxu0 0.0
    %2111 = vmatpush1.xpose.msra.mxu0 0.0
    %2112 = vmatprep.subr.mxu0 0.0
    %2113 = vmatpush1.xpose.msra.mxu0 %v2082
    %2114 = vmatprep.subr.mxu0 0.0
    %2115 = vmatpush1.xpose.msra.mxu0 %v2080
    %2116 = vmatprep.subr.mxu0 0.0
    %2117 = vmatpush2.xpose.msra.mxu0 0.0
    %2118 = vmatprep.subr.mxu0 0.0
    %2119 = vmatpush2.xpose.msra.mxu0 0.0
    %2120 = vmatprep.subr.mxu0 0.0
    %2121 = vmatpush2.xpose.msra.mxu0 0.0
    %2122 = vmatprep.subr.mxu0 0.0
    %2123 = vmatpush2.xpose.msra.mxu0 0.0
    %2124 = vmatprep.subr.mxu0 0.0
    %2125 = vmatpush2.xpose.msra.mxu0 0.0
    %2126 = vmatprep.subr.mxu0 0.0
    %2127 = vmatpush2.xpose.msra.mxu0 0.0
    %2128 = vmatprep.subr.mxu0 0.0
    %2129 = vmatpush2.xpose.msra.mxu0 0.0
    %2130 = vmatprep.subr.mxu0 0.0
    %2131 = vmatpush2.xpose.msra.mxu0 0.0
    %2132 = vmatprep.subr.mxu0 0.0
    %2133 = vmatpush2.xpose.msra.mxu0 0.0
    %2134 = vmatprep.subr.mxu0 0.0
    %2135 = vmatpush2.xpose.msra.mxu0 0.0
    %2136 = vmatprep.subr.mxu0 0.0
    %2137 = vmatpush2.xpose.msra.mxu0 0.0
    %2138 = vmatprep.subr.mxu0 0.0
    %2139 = vmatpush2.xpose.msra.mxu0 0.0
    %2140 = vmatprep.subr.mxu0 0.0
    %2141 = vmatpush2.xpose.msra.mxu0 0.0
    %2142 = vmatprep.subr.mxu0 0.0
    %2143 = vmatpush2.xpose.msra.mxu0 0.0
    %2144 = vmatprep.subr.mxu0 0.0
    %2145 = vmatpush2.xpose.msra.mxu0 0.0
    %2146 = vmatprep.subr.mxu0 0.0
    %2147 = vmatpush2.xpose.msra.mxu0 0.0
    %2148 = vmatprep.mubr.f32.mxu0 0.0
    %2149 = vmatmul.mubr.f32.gmra.mxu0 %v2078
    %v2150 = vpop.f32.mrf.mxu0
    %v2151 = vadd.f32 0.0, %v2150
    %v2152 = vpop.f32.mrf.mxu0
    %2153 = vdwg.mxu0
    %v2154 = vlaneseq
    %v2155 = vshrl.u32 %v2154, 7
    %v2156 = vsub.s32 0, %v2155
    %v2157 = vrot.slane %v2151, %v2156
    %v2158 = vadd.f32 %v2068, %v2157
    %v2159 = vadd.f32 %v2071, %v2157
    %vm2160 = vcmp.gt.f32.partialorder %v2158, 0.0
    %vm2161 = vcmp.gt.f32.partialorder %v2159, 0.0
    %v2162 = vmul.f32 %v2158, 0.2
    %v2163 = vmul.f32 %v2159, 0.2
    %v2164 = vsel %vm2160, %v2158, %v2162
    %v2165 = vsel %vm2161, %v2159, %v2163
    %v2166 = vsel %vm247, %v2164, -9e+15
    %v2167 = vsel %vm248, %v2165, -9e+15
    %v2168 = vsel %vm251, %v2166, -inf
    %2169 = vmax.xlane.f32.xlu0 %v2168
    %v2170 = vpop.xlane.xlu0 %2169
    %v2171 = vsel %vm251, %v2167, -inf
    %2172 = vmax.xlane.f32.xlu0 %v2171
    %v2173 = vpop.xlane.xlu0 %2172
    %v2174 = vsub.f32 %v2166, %v2170
    %v2175 = vsub.f32 %v2167, %v2173
    %v2176 = vmul.f32 %v2174, 1.442695
    %v2177 = vpow.pop %v2176
    %v2178 = vmul.f32 %v2175, 1.442695
    %v2179 = vpow.pop %v2178
    %v2180 = vsel %vm251, %v2177, 0.0
    %2181 = vadd.xlane.f32.xlu0 %v2180
    %v2182 = vpop.xlane.xlu0 %2181
    %v2183 = vsel %vm251, %v2179, 0.0
    %2184 = vadd.xlane.f32.xlu0 %v2183
    %v2185 = vpop.xlane.xlu0 %2184
    %v2186 = vrcp.pop %v2182
    %v2187 = vmul.f32 1.0, %v2186
    %v2188 = vrcp.pop %v2185
    %v2189 = vmul.f32 1.0, %v2188
    %v2193 = vsel %vm251, %v2177, 0
    %v2196 = vsel %vm251, %v2179, 0
    %2198 = vmatprep.subr.mxu0 0.0
    %2199 = vmatpush1.msra.mxu0 0.0
    %2200 = vmatprep.subr.mxu0 0.0
    %2201 = vmatpush1.msra.mxu0 0.0
    %2202 = vmatprep.subr.mxu0 0.0
    %2203 = vmatpush1.msra.mxu0 0.0
    %2204 = vmatprep.subr.mxu0 0.0
    %2205 = vmatpush1.msra.mxu0 0.0
    %2206 = vmatprep.subr.mxu0 0.0
    %2207 = vmatpush1.msra.mxu0 0.0
    %2208 = vmatprep.subr.mxu0 0.0
    %2209 = vmatpush1.msra.mxu0 0.0
    %2210 = vmatprep.subr.mxu0 0.0
    %2211 = vmatpush1.msra.mxu0 0.0
    %2212 = vmatprep.subr.mxu0 0.0
    %2213 = vmatpush1.msra.mxu0 0.0
    %2214 = vmatprep.subr.mxu0 0.0
    %2215 = vmatpush1.msra.mxu0 0.0
    %2216 = vmatprep.subr.mxu0 0.0
    %2217 = vmatpush1.msra.mxu0 0.0
    %2218 = vmatprep.subr.mxu0 0.0
    %2219 = vmatpush1.msra.mxu0 0.0
    %2220 = vmatprep.subr.mxu0 0.0
    %2221 = vmatpush1.msra.mxu0 0.0
    %2222 = vmatprep.subr.mxu0 0.0
    %2223 = vmatpush1.msra.mxu0 0.0
    %2224 = vmatprep.subr.mxu0 0.0
    %2225 = vmatpush1.msra.mxu0 0.0
    %2226 = vmatprep.subr.mxu0 0.0
    %2227 = vmatpush1.msra.mxu0 %v2077
    %2228 = vmatprep.subr.mxu0 0.0
    %2229 = vmatpush1.msra.mxu0 %v2075
    %2230 = vmatprep.subr.mxu0 0.0
    %2231 = vmatpush2.msra.mxu0 0.0
    %2232 = vmatprep.subr.mxu0 0.0
    %2233 = vmatpush2.msra.mxu0 0.0
    %2234 = vmatprep.subr.mxu0 0.0
    %2235 = vmatpush2.msra.mxu0 0.0
    %2236 = vmatprep.subr.mxu0 0.0
    %2237 = vmatpush2.msra.mxu0 0.0
    %2238 = vmatprep.subr.mxu0 0.0
    %2239 = vmatpush2.msra.mxu0 0.0
    %2240 = vmatprep.subr.mxu0 0.0
    %2241 = vmatpush2.msra.mxu0 0.0
    %2242 = vmatprep.subr.mxu0 0.0
    %2243 = vmatpush2.msra.mxu0 0.0
    %2244 = vmatprep.subr.mxu0 0.0
    %2245 = vmatpush2.msra.mxu0 0.0
    %2246 = vmatprep.subr.mxu0 0.0
    %2247 = vmatpush2.msra.mxu0 0.0
    %2248 = vmatprep.subr.mxu0 0.0
    %2249 = vmatpush2.msra.mxu0 0.0
    %2250 = vmatprep.subr.mxu0 0.0
    %2251 = vmatpush2.msra.mxu0 0.0
    %2252 = vmatprep.subr.mxu0 0.0
    %2253 = vmatpush2.msra.mxu0 0.0
    %2254 = vmatprep.subr.mxu0 0.0
    %2255 = vmatpush2.msra.mxu0 0.0
    %2256 = vmatprep.subr.mxu0 0.0
    %2257 = vmatpush2.msra.mxu0 0.0
    %2258 = vmatprep.subr.mxu0 0.0
    %2259 = vmatpush2.msra.mxu0 0.0
    %2260 = vmatprep.subr.mxu0 0.0
    %2261 = vmatpush2.msra.mxu0 0.0
    %2262 = vmatprep.mubr.f32.mxu0 0.0
    %2263 = vmatmul.mubr.f32.gmra.mxu0 %v2193
    %v2264 = vpop.f32.mrf.mxu0
    %v2265 = vadd.f32 0.0, %v2264
    %v2266 = vpop.f32.mrf.mxu0
    %2267 = vmatprep.mubr.f32.mxu0 0.0
    %2268 = vmatmul.mubr.f32.gmra.mxu0 %v2196
    %v2269 = vpop.f32.mrf.mxu0
    %v2270 = vadd.f32 0.0, %v2269
    %v2271 = vpop.f32.mrf.mxu0
    %2272 = vdwg.mxu0
    %v2273 = vmul.f32 %v2265, %v2187
    %v2274 = vmul.f32 %v2270, %v2189
    %vm2275 = vcmp.gt.f32.partialorder %v2273, 0.0
    %vm2276 = vcmp.gt.f32.partialorder %v2274, 0.0
    %v2277 = vmin.f32 %v2273, 0.0
    %v2278 = vmin.f32 %v2274, 0.0
    %v2279 = vmul.f32 %v2277, 1.442695
    %v2280 = vpow.pop %v2279
    %v2281 = vmul.f32 %v2278, 1.442695
    %v2282 = vpow.pop %v2281
    %v2283 = vsub.f32 %v2280, 1.0
    %v2284 = vsub.f32 %v2282, 1.0
    %v2285 = vsel %vm2275, %v2273, %v2283
    %v2286 = vsel %vm2276, %v2274, %v2284
    %2287 = vmatprep.subr.mxu0 0.0
    %2288 = vmatpush1.msra.mxu0 0.0
    %2289 = vmatprep.subr.mxu0 0.0
    %2290 = vmatpush1.msra.mxu0 0.0
    %2291 = vmatprep.subr.mxu0 0.0
    %2292 = vmatpush1.msra.mxu0 0.0
    %2293 = vmatprep.subr.mxu0 0.0
    %2294 = vmatpush1.msra.mxu0 0.0
    %2295 = vmatprep.subr.mxu0 0.0
    %2296 = vmatpush1.msra.mxu0 0.0
    %2297 = vmatprep.subr.mxu0 0.0
    %2298 = vmatpush1.msra.mxu0 0.0
    %2299 = vmatprep.subr.mxu0 0.0
    %2300 = vmatpush1.msra.mxu0 0.0
    %2301 = vmatprep.subr.mxu0 0.0
    %2302 = vmatpush1.msra.mxu0 0.0
    %2303 = vmatprep.subr.mxu0 0.0
    %2304 = vmatpush1.msra.mxu0 0.0
    %2305 = vmatprep.subr.mxu0 0.0
    %2306 = vmatpush1.msra.mxu0 0.0
    %2307 = vmatprep.subr.mxu0 0.0
    %2308 = vmatpush1.msra.mxu0 0.0
    %2309 = vmatprep.subr.mxu0 0.0
    %2310 = vmatpush1.msra.mxu0 0.0
    %2311 = vmatprep.subr.mxu0 0.0
    %2312 = vmatpush1.msra.mxu0 0.0
    %2313 = vmatprep.subr.mxu0 0.0
    %2314 = vmatpush1.msra.mxu0 0.0
    %2315 = vmatprep.subr.mxu0 0.0
    %2316 = vmatpush1.msra.mxu0 %v2286
    %2317 = vmatprep.subr.mxu0 0.0
    %2318 = vmatpush1.msra.mxu0 %v2285
    %2319 = vmatprep.subr.mxu0 0.0
    %2320 = vmatpush2.msra.mxu0 0.0
    %2321 = vmatprep.subr.mxu0 0.0
    %2322 = vmatpush2.msra.mxu0 0.0
    %2323 = vmatprep.subr.mxu0 0.0
    %2324 = vmatpush2.msra.mxu0 0.0
    %2325 = vmatprep.subr.mxu0 0.0
    %2326 = vmatpush2.msra.mxu0 0.0
    %2327 = vmatprep.subr.mxu0 0.0
    %2328 = vmatpush2.msra.mxu0 0.0
    %2329 = vmatprep.subr.mxu0 0.0
    %2330 = vmatpush2.msra.mxu0 0.0
    %2331 = vmatprep.subr.mxu0 0.0
    %2332 = vmatpush2.msra.mxu0 0.0
    %2333 = vmatprep.subr.mxu0 0.0
    %2334 = vmatpush2.msra.mxu0 0.0
    %2335 = vmatprep.subr.mxu0 0.0
    %2336 = vmatpush2.msra.mxu0 0.0
    %2337 = vmatprep.subr.mxu0 0.0
    %2338 = vmatpush2.msra.mxu0 0.0
    %2339 = vmatprep.subr.mxu0 0.0
    %2340 = vmatpush2.msra.mxu0 0.0
    %2341 = vmatprep.subr.mxu0 0.0
    %2342 = vmatpush2.msra.mxu0 0.0
    %2343 = vmatprep.subr.mxu0 0.0
    %2344 = vmatpush2.msra.mxu0 0.0
    %2345 = vmatprep.subr.mxu0 0.0
    %2346 = vmatpush2.msra.mxu0 0.0
    %2347 = vmatprep.subr.mxu0 0.0
    %2348 = vmatpush2.msra.mxu0 0.0
    %2349 = vmatprep.subr.mxu0 0.0
    %2350 = vmatpush2.msra.mxu0 0.0
    %2351 = vmatprep.mubr.f32.mxu0 0.0
    %2352 = vmatmul.mubr.f32.gmra.mxu0 %v370
    %v2353 = vpop.f32.mrf.mxu0
    %v2354 = vadd.f32 0.0, %v2353
    %v2355 = vpop.f32.mrf.mxu0
    %2356 = vmatprep.mubr.f32.mxu0 0.0
    %2357 = vmatmul.mubr.f32.gmra.mxu0 %v373
    %v2358 = vpop.f32.mrf.mxu0
    %v2359 = vadd.f32 0.0, %v2358
    %v2360 = vpop.f32.mrf.mxu0
    %2361 = vmatprep.mubr.f32.mxu0 0.0
    %2362 = vmatmul.mubr.f32.gmra.mxu0 %v376
    %v2363 = vpop.f32.mrf.mxu0
    %v2364 = vadd.f32 0.0, %v2363
    %v2365 = vpop.f32.mrf.mxu0
    %2366 = vmatprep.mubr.f32.mxu0 0.0
    %2367 = vmatmul.mubr.f32.gmra.mxu0 %v379
    %v2368 = vpop.f32.mrf.mxu0
    %v2369 = vadd.f32 0.0, %v2368
    %v2370 = vpop.f32.mrf.mxu0
    %2371 = vdwg.mxu0
    %v2372 = vmul.f32 %v2359, %v2359
    %v2373 = vadd.f32 %v2051, %v2372
    %v2374 = vmul.f32 %v2364, %v2364
    %v2375 = vadd.f32 %v2053, %v2374
    %v2376 = vmul.f32 %v2369, %v2369
    %v2377 = vadd.f32 %v2055, %v2376
    %v2378 = vmul.f32 %v2359, %v2364
    %v2379 = vadd.f32 %v2057, %v2378
    %v2380 = vmul.f32 %v2359, %v2369
    %v2381 = vadd.f32 %v2059, %v2380
    %v2383 = vsel %vm144, %v2354, 0
    %2385 = vmatprep.subr.mxu0 0.0
    %2386 = vmatpush1.xpose.msra.mxu0 0.0
    %2387 = vmatprep.subr.mxu0 0.0
    %2388 = vmatpush1.xpose.msra.mxu0 0.0
    %2389 = vmatprep.subr.mxu0 0.0
    %2390 = vmatpush1.xpose.msra.mxu0 0.0
    %2391 = vmatprep.subr.mxu0 0.0
    %2392 = vmatpush1.xpose.msra.mxu0 0.0
    %2393 = vmatprep.subr.mxu0 0.0
    %2394 = vmatpush1.xpose.msra.mxu0 0.0
    %2395 = vmatprep.subr.mxu0 0.0
    %2396 = vmatpush1.xpose.msra.mxu0 0.0
    %2397 = vmatprep.subr.mxu0 0.0
    %2398 = vmatpush1.xpose.msra.mxu0 0.0
    %2399 = vmatprep.subr.mxu0 0.0
    %2400 = vmatpush1.xpose.msra.mxu0 0.0
    %2401 = vmatprep.subr.mxu0 0.0
    %2402 = vmatpush1.xpose.msra.mxu0 0.0
    %2403 = vmatprep.subr.mxu0 0.0
    %2404 = vmatpush1.xpose.msra.mxu0 0.0
    %2405 = vmatprep.subr.mxu0 0.0
    %2406 = vmatpush1.xpose.msra.mxu0 0.0
    %2407 = vmatprep.subr.mxu0 0.0
    %2408 = vmatpush1.xpose.msra.mxu0 0.0
    %2409 = vmatprep.subr.mxu0 0.0
    %2410 = vmatpush1.xpose.msra.mxu0 0.0
    %2411 = vmatprep.subr.mxu0 0.0
    %2412 = vmatpush1.xpose.msra.mxu0 0.0
    %2413 = vmatprep.subr.mxu0 0.0
    %2414 = vmatpush1.xpose.msra.mxu0 0.0
    %2415 = vmatprep.subr.mxu0 0.0
    %2416 = vmatpush1.xpose.msra.mxu0 %v2383
    %2417 = vmatprep.subr.mxu0 0.0
    %2418 = vmatpush2.xpose.msra.mxu0 0.0
    %2419 = vmatprep.subr.mxu0 0.0
    %2420 = vmatpush2.xpose.msra.mxu0 0.0
    %2421 = vmatprep.subr.mxu0 0.0
    %2422 = vmatpush2.xpose.msra.mxu0 0.0
    %2423 = vmatprep.subr.mxu0 0.0
    %2424 = vmatpush2.xpose.msra.mxu0 0.0
    %2425 = vmatprep.subr.mxu0 0.0
    %2426 = vmatpush2.xpose.msra.mxu0 0.0
    %2427 = vmatprep.subr.mxu0 0.0
    %2428 = vmatpush2.xpose.msra.mxu0 0.0
    %2429 = vmatprep.subr.mxu0 0.0
    %2430 = vmatpush2.xpose.msra.mxu0 0.0
    %2431 = vmatprep.subr.mxu0 0.0
    %2432 = vmatpush2.xpose.msra.mxu0 0.0
    %2433 = vmatprep.subr.mxu0 0.0
    %2434 = vmatpush2.xpose.msra.mxu0 0.0
    %2435 = vmatprep.subr.mxu0 0.0
    %2436 = vmatpush2.xpose.msra.mxu0 0.0
    %2437 = vmatprep.subr.mxu0 0.0
    %2438 = vmatpush2.xpose.msra.mxu0 0.0
    %2439 = vmatprep.subr.mxu0 0.0
    %2440 = vmatpush2.xpose.msra.mxu0 0.0
    %2441 = vmatprep.subr.mxu0 0.0
    %2442 = vmatpush2.xpose.msra.mxu0 0.0
    %2443 = vmatprep.subr.mxu0 0.0
    %2444 = vmatpush2.xpose.msra.mxu0 0.0
    %2445 = vmatprep.subr.mxu0 0.0
    %2446 = vmatpush2.xpose.msra.mxu0 0.0
    %2447 = vmatprep.subr.mxu0 0.0
    %2448 = vmatpush2.xpose.msra.mxu0 0.0
    %2449 = vmatprep.mubr.f32.mxu0 0.0
    %2450 = vmatmul.mubr.f32.gmra.mxu0 %v2383
    %v2451 = vpop.f32.mrf.mxu0
    %v2452 = vadd.f32 0.0, %v2451
    %v2453 = vpop.f32.mrf.mxu0
    %2454 = vdwg.mxu0
    %v2456 = vsel %vm144, %v2032, 0
    %2458 = vmatprep.subr.mxu0 0.0
    %2459 = vmatpush1.xpose.msra.mxu0 0.0
    %2460 = vmatprep.subr.mxu0 0.0
    %2461 = vmatpush1.xpose.msra.mxu0 0.0
    %2462 = vmatprep.subr.mxu0 0.0
    %2463 = vmatpush1.xpose.msra.mxu0 0.0
    %2464 = vmatprep.subr.mxu0 0.0
    %2465 = vmatpush1.xpose.msra.mxu0 0.0
    %2466 = vmatprep.subr.mxu0 0.0
    %2467 = vmatpush1.xpose.msra.mxu0 0.0
    %2468 = vmatprep.subr.mxu0 0.0
    %2469 = vmatpush1.xpose.msra.mxu0 0.0
    %2470 = vmatprep.subr.mxu0 0.0
    %2471 = vmatpush1.xpose.msra.mxu0 0.0
    %2472 = vmatprep.subr.mxu0 0.0
    %2473 = vmatpush1.xpose.msra.mxu0 0.0
    %2474 = vmatprep.subr.mxu0 0.0
    %2475 = vmatpush1.xpose.msra.mxu0 0.0
    %2476 = vmatprep.subr.mxu0 0.0
    %2477 = vmatpush1.xpose.msra.mxu0 0.0
    %2478 = vmatprep.subr.mxu0 0.0
    %2479 = vmatpush1.xpose.msra.mxu0 0.0
    %2480 = vmatprep.subr.mxu0 0.0
    %2481 = vmatpush1.xpose.msra.mxu0 0.0
    %2482 = vmatprep.subr.mxu0 0.0
    %2483 = vmatpush1.xpose.msra.mxu0 0.0
    %2484 = vmatprep.subr.mxu0 0.0
    %2485 = vmatpush1.xpose.msra.mxu0 0.0
    %2486 = vmatprep.subr.mxu0 0.0
    %2487 = vmatpush1.xpose.msra.mxu0 0.0
    %2488 = vmatprep.subr.mxu0 0.0
    %2489 = vmatpush1.xpose.msra.mxu0 %v2456
    %2490 = vmatprep.subr.mxu0 0.0
    %2491 = vmatpush2.xpose.msra.mxu0 0.0
    %2492 = vmatprep.subr.mxu0 0.0
    %2493 = vmatpush2.xpose.msra.mxu0 0.0
    %2494 = vmatprep.subr.mxu0 0.0
    %2495 = vmatpush2.xpose.msra.mxu0 0.0
    %2496 = vmatprep.subr.mxu0 0.0
    %2497 = vmatpush2.xpose.msra.mxu0 0.0
    %2498 = vmatprep.subr.mxu0 0.0
    %2499 = vmatpush2.xpose.msra.mxu0 0.0
    %2500 = vmatprep.subr.mxu0 0.0
    %2501 = vmatpush2.xpose.msra.mxu0 0.0
    %2502 = vmatprep.subr.mxu0 0.0
    %2503 = vmatpush2.xpose.msra.mxu0 0.0
    %2504 = vmatprep.subr.mxu0 0.0
    %2505 = vmatpush2.xpose.msra.mxu0 0.0
    %2506 = vmatprep.subr.mxu0 0.0
    %2507 = vmatpush2.xpose.msra.mxu0 0.0
    %2508 = vmatprep.subr.mxu0 0.0
    %2509 = vmatpush2.xpose.msra.mxu0 0.0
    %2510 = vmatprep.subr.mxu0 0.0
    %2511 = vmatpush2.xpose.msra.mxu0 0.0
    %2512 = vmatprep.subr.mxu0 0.0
    %2513 = vmatpush2.xpose.msra.mxu0 0.0
    %2514 = vmatprep.subr.mxu0 0.0
    %2515 = vmatpush2.xpose.msra.mxu0 0.0
    %2516 = vmatprep.subr.mxu0 0.0
    %2517 = vmatpush2.xpose.msra.mxu0 0.0
    %2518 = vmatprep.subr.mxu0 0.0
    %2519 = vmatpush2.xpose.msra.mxu0 0.0
    %2520 = vmatprep.subr.mxu0 0.0
    %2521 = vmatpush2.xpose.msra.mxu0 0.0
    %2522 = vmatprep.mubr.f32.mxu0 0.0
    %2523 = vmatmul.mubr.f32.gmra.mxu0 %v2456
    %v2524 = vpop.f32.mrf.mxu0
    %v2525 = vadd.f32 %v2452, %v2524
    %v2526 = vpop.f32.mrf.mxu0
    %2527 = vdwg.mxu0
    %2528 = vmatprep.subr.mxu0 0.0
    %2529 = vmatpush1.msra.mxu0 0.0
    %2530 = vmatprep.subr.mxu0 0.0
    %2531 = vmatpush1.msra.mxu0 0.0
    %2532 = vmatprep.subr.mxu0 0.0
    %2533 = vmatpush1.msra.mxu0 0.0
    %2534 = vmatprep.subr.mxu0 0.0
    %2535 = vmatpush1.msra.mxu0 0.0
    %2536 = vmatprep.subr.mxu0 0.0
    %2537 = vmatpush1.msra.mxu0 0.0
    %2538 = vmatprep.subr.mxu0 0.0
    %2539 = vmatpush1.msra.mxu0 0.0
    %2540 = vmatprep.subr.mxu0 0.0
    %2541 = vmatpush1.msra.mxu0 0.0
    %2542 = vmatprep.subr.mxu0 0.0
    %2543 = vmatpush1.msra.mxu0 0.0
    %2544 = vmatprep.subr.mxu0 0.0
    %2545 = vmatpush1.msra.mxu0 0.0
    %2546 = vmatprep.subr.mxu0 0.0
    %2547 = vmatpush1.msra.mxu0 0.0
    %2548 = vmatprep.subr.mxu0 0.0
    %2549 = vmatpush1.msra.mxu0 0.0
    %2550 = vmatprep.subr.mxu0 0.0
    %2551 = vmatpush1.msra.mxu0 0.0
    %2552 = vmatprep.subr.mxu0 0.0
    %2553 = vmatpush1.msra.mxu0 0.0
    %2554 = vmatprep.subr.mxu0 0.0
    %2555 = vmatpush1.msra.mxu0 0.0
    %2556 = vmatprep.subr.mxu0 0.0
    %2557 = vmatpush1.msra.mxu0 0.0
    %2558 = vmatprep.subr.mxu0 0.0
    %2559 = vmatpush1.msra.mxu0 %v49
    %2560 = vmatprep.subr.mxu0 0.0
    %2561 = vmatpush2.msra.mxu0 0.0
    %2562 = vmatprep.subr.mxu0 0.0
    %2563 = vmatpush2.msra.mxu0 0.0
    %2564 = vmatprep.subr.mxu0 0.0
    %2565 = vmatpush2.msra.mxu0 0.0
    %2566 = vmatprep.subr.mxu0 0.0
    %2567 = vmatpush2.msra.mxu0 0.0
    %2568 = vmatprep.subr.mxu0 0.0
    %2569 = vmatpush2.msra.mxu0 0.0
    %2570 = vmatprep.subr.mxu0 0.0
    %2571 = vmatpush2.msra.mxu0 0.0
    %2572 = vmatprep.subr.mxu0 0.0
    %2573 = vmatpush2.msra.mxu0 0.0
    %2574 = vmatprep.subr.mxu0 0.0
    %2575 = vmatpush2.msra.mxu0 0.0
    %2576 = vmatprep.subr.mxu0 0.0
    %2577 = vmatpush2.msra.mxu0 0.0
    %2578 = vmatprep.subr.mxu0 0.0
    %2579 = vmatpush2.msra.mxu0 0.0
    %2580 = vmatprep.subr.mxu0 0.0
    %2581 = vmatpush2.msra.mxu0 0.0
    %2582 = vmatprep.subr.mxu0 0.0
    %2583 = vmatpush2.msra.mxu0 0.0
    %2584 = vmatprep.subr.mxu0 0.0
    %2585 = vmatpush2.msra.mxu0 0.0
    %2586 = vmatprep.subr.mxu0 0.0
    %2587 = vmatpush2.msra.mxu0 0.0
    %2588 = vmatprep.subr.mxu0 0.0
    %2589 = vmatpush2.msra.mxu0 0.0
    %2590 = vmatprep.subr.mxu0 0.0
    %2591 = vmatpush2.msra.mxu0 0.0
    %2592 = vmatprep.mubr.f32.mxu0 0.0
    %2593 = vmatmul.mubr.f32.gmra.mxu0 %v2383
    %v2594 = vpop.f32.mrf.mxu0
    %v2595 = vadd.f32 0.0, %v2594
    %v2596 = vpop.f32.mrf.mxu0
    %2597 = vdwg.mxu0
    %2598 = vmatprep.subr.mxu0 0.0
    %2599 = vmatpush1.msra.mxu0 0.0
    %2600 = vmatprep.subr.mxu0 0.0
    %2601 = vmatpush1.msra.mxu0 0.0
    %2602 = vmatprep.subr.mxu0 0.0
    %2603 = vmatpush1.msra.mxu0 0.0
    %2604 = vmatprep.subr.mxu0 0.0
    %2605 = vmatpush1.msra.mxu0 0.0
    %2606 = vmatprep.subr.mxu0 0.0
    %2607 = vmatpush1.msra.mxu0 0.0
    %2608 = vmatprep.subr.mxu0 0.0
    %2609 = vmatpush1.msra.mxu0 0.0
    %2610 = vmatprep.subr.mxu0 0.0
    %2611 = vmatpush1.msra.mxu0 0.0
    %2612 = vmatprep.subr.mxu0 0.0
    %2613 = vmatpush1.msra.mxu0 0.0
    %2614 = vmatprep.subr.mxu0 0.0
    %2615 = vmatpush1.msra.mxu0 0.0
    %2616 = vmatprep.subr.mxu0 0.0
    %2617 = vmatpush1.msra.mxu0 0.0
    %2618 = vmatprep.subr.mxu0 0.0
    %2619 = vmatpush1.msra.mxu0 0.0
    %2620 = vmatprep.subr.mxu0 0.0
    %2621 = vmatpush1.msra.mxu0 0.0
    %2622 = vmatprep.subr.mxu0 0.0
    %2623 = vmatpush1.msra.mxu0 0.0
    %2624 = vmatprep.subr.mxu0 0.0
    %2625 = vmatpush1.msra.mxu0 0.0
    %2626 = vmatprep.subr.mxu0 0.0
    %2627 = vmatpush1.msra.mxu0 0.0
    %2628 = vmatprep.subr.mxu0 0.0
    %2629 = vmatpush1.msra.mxu0 %v48
    %2630 = vmatprep.subr.mxu0 0.0
    %2631 = vmatpush2.msra.mxu0 0.0
    %2632 = vmatprep.subr.mxu0 0.0
    %2633 = vmatpush2.msra.mxu0 0.0
    %2634 = vmatprep.subr.mxu0 0.0
    %2635 = vmatpush2.msra.mxu0 0.0
    %2636 = vmatprep.subr.mxu0 0.0
    %2637 = vmatpush2.msra.mxu0 0.0
    %2638 = vmatprep.subr.mxu0 0.0
    %2639 = vmatpush2.msra.mxu0 0.0
    %2640 = vmatprep.subr.mxu0 0.0
    %2641 = vmatpush2.msra.mxu0 0.0
    %2642 = vmatprep.subr.mxu0 0.0
    %2643 = vmatpush2.msra.mxu0 0.0
    %2644 = vmatprep.subr.mxu0 0.0
    %2645 = vmatpush2.msra.mxu0 0.0
    %2646 = vmatprep.subr.mxu0 0.0
    %2647 = vmatpush2.msra.mxu0 0.0
    %2648 = vmatprep.subr.mxu0 0.0
    %2649 = vmatpush2.msra.mxu0 0.0
    %2650 = vmatprep.subr.mxu0 0.0
    %2651 = vmatpush2.msra.mxu0 0.0
    %2652 = vmatprep.subr.mxu0 0.0
    %2653 = vmatpush2.msra.mxu0 0.0
    %2654 = vmatprep.subr.mxu0 0.0
    %2655 = vmatpush2.msra.mxu0 0.0
    %2656 = vmatprep.subr.mxu0 0.0
    %2657 = vmatpush2.msra.mxu0 0.0
    %2658 = vmatprep.subr.mxu0 0.0
    %2659 = vmatpush2.msra.mxu0 0.0
    %2660 = vmatprep.subr.mxu0 0.0
    %2661 = vmatpush2.msra.mxu0 0.0
    %2662 = vmatprep.mubr.f32.mxu0 0.0
    %2663 = vmatmul.mubr.f32.gmra.mxu0 %v2456
    %v2664 = vpop.f32.mrf.mxu0
    %v2665 = vadd.f32 %v2595, %v2664
    %v2666 = vpop.f32.mrf.mxu0
    %2667 = vdwg.mxu0
    %2668 = vrot.lane.b32.xlu0 %v142, 80
    %v2669 = vpop.permute.xlu0 %2668
    %2670 = vrot.lane.b32.xlu0 %v143, 80
    %v2671 = vpop.permute.xlu0 %2670
    %v2674 = vsel %vm144, %v2669, 0.0
    %2675 = vadd.xlane.f32.xlu0 %v2674
    %v2676 = vpop.xlane.xlu0 %2675
    %v2677 = vsel %vm144, %v2671, 0.0
    %2678 = vadd.xlane.f32.xlu0 %v2677
    %v2679 = vpop.xlane.xlu0 %2678
    %2680 = vrot.lane.b32.xlu0 %v152, 80
    %v2681 = vpop.permute.xlu0 %2680
    %2682 = vrot.lane.b32.xlu0 %v130, 80
    %v2683 = vpop.permute.xlu0 %2682
    %2684 = vrot.lane.b32.xlu0 %v135, 80
    %v2685 = vpop.permute.xlu0 %2684
    %v2686 = vsel %vm144, %v2681, 0
    %v2688 = vsel %vm144, %v2683, 0
    %v2690 = vsel %vm144, %v2685, 0
    %2692 = vmatprep.subr.mxu0 0.0
    %2693 = vmatpush1.xpose.msra.mxu0 0.0
    %2694 = vmatprep.subr.mxu0 0.0
    %2695 = vmatpush1.xpose.msra.mxu0 0.0
    %2696 = vmatprep.subr.mxu0 0.0
    %2697 = vmatpush1.xpose.msra.mxu0 0.0
    %2698 = vmatprep.subr.mxu0 0.0
    %2699 = vmatpush1.xpose.msra.mxu0 0.0
    %2700 = vmatprep.subr.mxu0 0.0
    %2701 = vmatpush1.xpose.msra.mxu0 0.0
    %2702 = vmatprep.subr.mxu0 0.0
    %2703 = vmatpush1.xpose.msra.mxu0 0.0
    %2704 = vmatprep.subr.mxu0 0.0
    %2705 = vmatpush1.xpose.msra.mxu0 0.0
    %2706 = vmatprep.subr.mxu0 0.0
    %2707 = vmatpush1.xpose.msra.mxu0 0.0
    %2708 = vmatprep.subr.mxu0 0.0
    %2709 = vmatpush1.xpose.msra.mxu0 0.0
    %2710 = vmatprep.subr.mxu0 0.0
    %2711 = vmatpush1.xpose.msra.mxu0 0.0
    %2712 = vmatprep.subr.mxu0 0.0
    %2713 = vmatpush1.xpose.msra.mxu0 0.0
    %2714 = vmatprep.subr.mxu0 0.0
    %2715 = vmatpush1.xpose.msra.mxu0 0.0
    %2716 = vmatprep.subr.mxu0 0.0
    %2717 = vmatpush1.xpose.msra.mxu0 0.0
    %2718 = vmatprep.subr.mxu0 0.0
    %2719 = vmatpush1.xpose.msra.mxu0 0.0
    %2720 = vmatprep.subr.mxu0 0.0
    %2721 = vmatpush1.xpose.msra.mxu0 %v2690
    %2722 = vmatprep.subr.mxu0 0.0
    %2723 = vmatpush1.xpose.msra.mxu0 %v2688
    %2724 = vmatprep.subr.mxu0 0.0
    %2725 = vmatpush2.xpose.msra.mxu0 0.0
    %2726 = vmatprep.subr.mxu0 0.0
    %2727 = vmatpush2.xpose.msra.mxu0 0.0
    %2728 = vmatprep.subr.mxu0 0.0
    %2729 = vmatpush2.xpose.msra.mxu0 0.0
    %2730 = vmatprep.subr.mxu0 0.0
    %2731 = vmatpush2.xpose.msra.mxu0 0.0
    %2732 = vmatprep.subr.mxu0 0.0
    %2733 = vmatpush2.xpose.msra.mxu0 0.0
    %2734 = vmatprep.subr.mxu0 0.0
    %2735 = vmatpush2.xpose.msra.mxu0 0.0
    %2736 = vmatprep.subr.mxu0 0.0
    %2737 = vmatpush2.xpose.msra.mxu0 0.0
    %2738 = vmatprep.subr.mxu0 0.0
    %2739 = vmatpush2.xpose.msra.mxu0 0.0
    %2740 = vmatprep.subr.mxu0 0.0
    %2741 = vmatpush2.xpose.msra.mxu0 0.0
    %2742 = vmatprep.subr.mxu0 0.0
    %2743 = vmatpush2.xpose.msra.mxu0 0.0
    %2744 = vmatprep.subr.mxu0 0.0
    %2745 = vmatpush2.xpose.msra.mxu0 0.0
    %2746 = vmatprep.subr.mxu0 0.0
    %2747 = vmatpush2.xpose.msra.mxu0 0.0
    %2748 = vmatprep.subr.mxu0 0.0
    %2749 = vmatpush2.xpose.msra.mxu0 0.0
    %2750 = vmatprep.subr.mxu0 0.0
    %2751 = vmatpush2.xpose.msra.mxu0 0.0
    %2752 = vmatprep.subr.mxu0 0.0
    %2753 = vmatpush2.xpose.msra.mxu0 0.0
    %2754 = vmatprep.subr.mxu0 0.0
    %2755 = vmatpush2.xpose.msra.mxu0 0.0
    %2756 = vmatprep.mubr.f32.mxu0 0.0
    %2757 = vmatmul.mubr.f32.gmra.mxu0 %v2686
    %v2758 = vpop.f32.mrf.mxu0
    %v2759 = vadd.f32 0.0, %v2758
    %v2760 = vpop.f32.mrf.mxu0
    %2761 = vdwg.mxu0
    %v2762 = vlaneseq
    %v2763 = vshrl.u32 %v2762, 7
    %v2764 = vsub.s32 0, %v2763
    %v2765 = vrot.slane %v2759, %v2764
    %v2766 = vadd.f32 %v2676, %v2765
    %v2767 = vadd.f32 %v2679, %v2765
    %vm2768 = vcmp.gt.f32.partialorder %v2766, 0.0
    %vm2769 = vcmp.gt.f32.partialorder %v2767, 0.0
    %v2770 = vmul.f32 %v2766, 0.2
    %v2771 = vmul.f32 %v2767, 0.2
    %v2772 = vsel %vm2768, %v2766, %v2770
    %v2773 = vsel %vm2769, %v2767, %v2771
    %v2774 = vsel %vm247, %v2772, -9e+15
    %v2775 = vsel %vm248, %v2773, -9e+15
    %v2776 = vsel %vm251, %v2774, -inf
    %2777 = vmax.xlane.f32.xlu0 %v2776
    %v2778 = vpop.xlane.xlu0 %2777
    %v2779 = vsel %vm251, %v2775, -inf
    %2780 = vmax.xlane.f32.xlu0 %v2779
    %v2781 = vpop.xlane.xlu0 %2780
    %v2782 = vsub.f32 %v2774, %v2778
    %v2783 = vsub.f32 %v2775, %v2781
    %v2784 = vmul.f32 %v2782, 1.442695
    %v2785 = vpow.pop %v2784
    %v2786 = vmul.f32 %v2783, 1.442695
    %v2787 = vpow.pop %v2786
    %v2788 = vsel %vm251, %v2785, 0.0
    %2789 = vadd.xlane.f32.xlu0 %v2788
    %v2790 = vpop.xlane.xlu0 %2789
    %v2791 = vsel %vm251, %v2787, 0.0
    %2792 = vadd.xlane.f32.xlu0 %v2791
    %v2793 = vpop.xlane.xlu0 %2792
    %v2794 = vrcp.pop %v2790
    %v2795 = vmul.f32 1.0, %v2794
    %v2796 = vrcp.pop %v2793
    %v2797 = vmul.f32 1.0, %v2796
    %v2801 = vsel %vm251, %v2785, 0
    %v2804 = vsel %vm251, %v2787, 0
    %2806 = vmatprep.subr.mxu0 0.0
    %2807 = vmatpush1.msra.mxu0 0.0
    %2808 = vmatprep.subr.mxu0 0.0
    %2809 = vmatpush1.msra.mxu0 0.0
    %2810 = vmatprep.subr.mxu0 0.0
    %2811 = vmatpush1.msra.mxu0 0.0
    %2812 = vmatprep.subr.mxu0 0.0
    %2813 = vmatpush1.msra.mxu0 0.0
    %2814 = vmatprep.subr.mxu0 0.0
    %2815 = vmatpush1.msra.mxu0 0.0
    %2816 = vmatprep.subr.mxu0 0.0
    %2817 = vmatpush1.msra.mxu0 0.0
    %2818 = vmatprep.subr.mxu0 0.0
    %2819 = vmatpush1.msra.mxu0 0.0
    %2820 = vmatprep.subr.mxu0 0.0
    %2821 = vmatpush1.msra.mxu0 0.0
    %2822 = vmatprep.subr.mxu0 0.0
    %2823 = vmatpush1.msra.mxu0 0.0
    %2824 = vmatprep.subr.mxu0 0.0
    %2825 = vmatpush1.msra.mxu0 0.0
    %2826 = vmatprep.subr.mxu0 0.0
    %2827 = vmatpush1.msra.mxu0 0.0
    %2828 = vmatprep.subr.mxu0 0.0
    %2829 = vmatpush1.msra.mxu0 0.0
    %2830 = vmatprep.subr.mxu0 0.0
    %2831 = vmatpush1.msra.mxu0 0.0
    %2832 = vmatprep.subr.mxu0 0.0
    %2833 = vmatpush1.msra.mxu0 0.0
    %2834 = vmatprep.subr.mxu0 0.0
    %2835 = vmatpush1.msra.mxu0 %v2685
    %2836 = vmatprep.subr.mxu0 0.0
    %2837 = vmatpush1.msra.mxu0 %v2683
    %2838 = vmatprep.subr.mxu0 0.0
    %2839 = vmatpush2.msra.mxu0 0.0
    %2840 = vmatprep.subr.mxu0 0.0
    %2841 = vmatpush2.msra.mxu0 0.0
    %2842 = vmatprep.subr.mxu0 0.0
    %2843 = vmatpush2.msra.mxu0 0.0
    %2844 = vmatprep.subr.mxu0 0.0
    %2845 = vmatpush2.msra.mxu0 0.0
    %2846 = vmatprep.subr.mxu0 0.0
    %2847 = vmatpush2.msra.mxu0 0.0
    %2848 = vmatprep.subr.mxu0 0.0
    %2849 = vmatpush2.msra.mxu0 0.0
    %2850 = vmatprep.subr.mxu0 0.0
    %2851 = vmatpush2.msra.mxu0 0.0
    %2852 = vmatprep.subr.mxu0 0.0
    %2853 = vmatpush2.msra.mxu0 0.0
    %2854 = vmatprep.subr.mxu0 0.0
    %2855 = vmatpush2.msra.mxu0 0.0
    %2856 = vmatprep.subr.mxu0 0.0
    %2857 = vmatpush2.msra.mxu0 0.0
    %2858 = vmatprep.subr.mxu0 0.0
    %2859 = vmatpush2.msra.mxu0 0.0
    %2860 = vmatprep.subr.mxu0 0.0
    %2861 = vmatpush2.msra.mxu0 0.0
    %2862 = vmatprep.subr.mxu0 0.0
    %2863 = vmatpush2.msra.mxu0 0.0
    %2864 = vmatprep.subr.mxu0 0.0
    %2865 = vmatpush2.msra.mxu0 0.0
    %2866 = vmatprep.subr.mxu0 0.0
    %2867 = vmatpush2.msra.mxu0 0.0
    %2868 = vmatprep.subr.mxu0 0.0
    %2869 = vmatpush2.msra.mxu0 0.0
    %2870 = vmatprep.mubr.f32.mxu0 0.0
    %2871 = vmatmul.mubr.f32.gmra.mxu0 %v2801
    %v2872 = vpop.f32.mrf.mxu0
    %v2873 = vadd.f32 0.0, %v2872
    %v2874 = vpop.f32.mrf.mxu0
    %2875 = vmatprep.mubr.f32.mxu0 0.0
    %2876 = vmatmul.mubr.f32.gmra.mxu0 %v2804
    %v2877 = vpop.f32.mrf.mxu0
    %v2878 = vadd.f32 0.0, %v2877
    %v2879 = vpop.f32.mrf.mxu0
    %2880 = vdwg.mxu0
    %v2881 = vmul.f32 %v2873, %v2795
    %v2882 = vmul.f32 %v2878, %v2797
    %vm2883 = vcmp.gt.f32.partialorder %v2881, 0.0
    %vm2884 = vcmp.gt.f32.partialorder %v2882, 0.0
    %v2885 = vmin.f32 %v2881, 0.0
    %v2886 = vmin.f32 %v2882, 0.0
    %v2887 = vmul.f32 %v2885, 1.442695
    %v2888 = vpow.pop %v2887
    %v2889 = vmul.f32 %v2886, 1.442695
    %v2890 = vpow.pop %v2889
    %v2891 = vsub.f32 %v2888, 1.0
    %v2892 = vsub.f32 %v2890, 1.0
    %v2893 = vsel %vm2883, %v2881, %v2891
    %v2894 = vsel %vm2884, %v2882, %v2892
    %2895 = vmatprep.subr.mxu0 0.0
    %2896 = vmatpush1.msra.mxu0 0.0
    %2897 = vmatprep.subr.mxu0 0.0
    %2898 = vmatpush1.msra.mxu0 0.0
    %2899 = vmatprep.subr.mxu0 0.0
    %2900 = vmatpush1.msra.mxu0 0.0
    %2901 = vmatprep.subr.mxu0 0.0
    %2902 = vmatpush1.msra.mxu0 0.0
    %2903 = vmatprep.subr.mxu0 0.0
    %2904 = vmatpush1.msra.mxu0 0.0
    %2905 = vmatprep.subr.mxu0 0.0
    %2906 = vmatpush1.msra.mxu0 0.0
    %2907 = vmatprep.subr.mxu0 0.0
    %2908 = vmatpush1.msra.mxu0 0.0
    %2909 = vmatprep.subr.mxu0 0.0
    %2910 = vmatpush1.msra.mxu0 0.0
    %2911 = vmatprep.subr.mxu0 0.0
    %2912 = vmatpush1.msra.mxu0 0.0
    %2913 = vmatprep.subr.mxu0 0.0
    %2914 = vmatpush1.msra.mxu0 0.0
    %2915 = vmatprep.subr.mxu0 0.0
    %2916 = vmatpush1.msra.mxu0 0.0
    %2917 = vmatprep.subr.mxu0 0.0
    %2918 = vmatpush1.msra.mxu0 0.0
    %2919 = vmatprep.subr.mxu0 0.0
    %2920 = vmatpush1.msra.mxu0 0.0
    %2921 = vmatprep.subr.mxu0 0.0
    %2922 = vmatpush1.msra.mxu0 0.0
    %2923 = vmatprep.subr.mxu0 0.0
    %2924 = vmatpush1.msra.mxu0 %v2894
    %2925 = vmatprep.subr.mxu0 0.0
    %2926 = vmatpush1.msra.mxu0 %v2893
    %2927 = vmatprep.subr.mxu0 0.0
    %2928 = vmatpush2.msra.mxu0 0.0
    %2929 = vmatprep.subr.mxu0 0.0
    %2930 = vmatpush2.msra.mxu0 0.0
    %2931 = vmatprep.subr.mxu0 0.0
    %2932 = vmatpush2.msra.mxu0 0.0
    %2933 = vmatprep.subr.mxu0 0.0
    %2934 = vmatpush2.msra.mxu0 0.0
    %2935 = vmatprep.subr.mxu0 0.0
    %2936 = vmatpush2.msra.mxu0 0.0
    %2937 = vmatprep.subr.mxu0 0.0
    %2938 = vmatpush2.msra.mxu0 0.0
    %2939 = vmatprep.subr.mxu0 0.0
    %2940 = vmatpush2.msra.mxu0 0.0
    %2941 = vmatprep.subr.mxu0 0.0
    %2942 = vmatpush2.msra.mxu0 0.0
    %2943 = vmatprep.subr.mxu0 0.0
    %2944 = vmatpush2.msra.mxu0 0.0
    %2945 = vmatprep.subr.mxu0 0.0
    %2946 = vmatpush2.msra.mxu0 0.0
    %2947 = vmatprep.subr.mxu0 0.0
    %2948 = vmatpush2.msra.mxu0 0.0
    %2949 = vmatprep.subr.mxu0 0.0
    %2950 = vmatpush2.msra.mxu0 0.0
    %2951 = vmatprep.subr.mxu0 0.0
    %2952 = vmatpush2.msra.mxu0 0.0
    %2953 = vmatprep.subr.mxu0 0.0
    %2954 = vmatpush2.msra.mxu0 0.0
    %2955 = vmatprep.subr.mxu0 0.0
    %2956 = vmatpush2.msra.mxu0 0.0
    %2957 = vmatprep.subr.mxu0 0.0
    %2958 = vmatpush2.msra.mxu0 0.0
    %2959 = vmatprep.mubr.f32.mxu0 0.0
    %2960 = vmatmul.mubr.f32.gmra.mxu0 %v370
    %v2961 = vpop.f32.mrf.mxu0
    %v2962 = vadd.f32 0.0, %v2961
    %v2963 = vpop.f32.mrf.mxu0
    %2964 = vmatprep.mubr.f32.mxu0 0.0
    %2965 = vmatmul.mubr.f32.gmra.mxu0 %v373
    %v2966 = vpop.f32.mrf.mxu0
    %v2967 = vadd.f32 0.0, %v2966
    %v2968 = vpop.f32.mrf.mxu0
    %2969 = vmatprep.mubr.f32.mxu0 0.0
    %2970 = vmatmul.mubr.f32.gmra.mxu0 %v376
    %v2971 = vpop.f32.mrf.mxu0
    %v2972 = vadd.f32 0.0, %v2971
    %v2973 = vpop.f32.mrf.mxu0
    %2974 = vmatprep.mubr.f32.mxu0 0.0
    %2975 = vmatmul.mubr.f32.gmra.mxu0 %v379
    %v2976 = vpop.f32.mrf.mxu0
    %v2977 = vadd.f32 0.0, %v2976
    %v2978 = vpop.f32.mrf.mxu0
    %2979 = vdwg.mxu0
    %v2980 = vmul.f32 %v2967, %v2967
    %v2981 = vadd.f32 %v2373, %v2980
    %v2982 = vmul.f32 %v2972, %v2972
    %v2983 = vadd.f32 %v2375, %v2982
    %v2984 = vmul.f32 %v2977, %v2977
    %v2985 = vadd.f32 %v2377, %v2984
    %v2986 = vmul.f32 %v2967, %v2972
    %v2987 = vadd.f32 %v2379, %v2986
    %v2988 = vmul.f32 %v2967, %v2977
    %v2989 = vadd.f32 %v2381, %v2988
    %v2991 = vsel %vm144, %v2962, 0
    %2993 = vmatprep.subr.mxu0 0.0
    %2994 = vmatpush1.xpose.msra.mxu0 0.0
    %2995 = vmatprep.subr.mxu0 0.0
    %2996 = vmatpush1.xpose.msra.mxu0 0.0
    %2997 = vmatprep.subr.mxu0 0.0
    %2998 = vmatpush1.xpose.msra.mxu0 0.0
    %2999 = vmatprep.subr.mxu0 0.0
    %3000 = vmatpush1.xpose.msra.mxu0 0.0
    %3001 = vmatprep.subr.mxu0 0.0
    %3002 = vmatpush1.xpose.msra.mxu0 0.0
    %3003 = vmatprep.subr.mxu0 0.0
    %3004 = vmatpush1.xpose.msra.mxu0 0.0
    %3005 = vmatprep.subr.mxu0 0.0
    %3006 = vmatpush1.xpose.msra.mxu0 0.0
    %3007 = vmatprep.subr.mxu0 0.0
    %3008 = vmatpush1.xpose.msra.mxu0 0.0
    %3009 = vmatprep.subr.mxu0 0.0
    %3010 = vmatpush1.xpose.msra.mxu0 0.0
    %3011 = vmatprep.subr.mxu0 0.0
    %3012 = vmatpush1.xpose.msra.mxu0 0.0
    %3013 = vmatprep.subr.mxu0 0.0
    %3014 = vmatpush1.xpose.msra.mxu0 0.0
    %3015 = vmatprep.subr.mxu0 0.0
    %3016 = vmatpush1.xpose.msra.mxu0 0.0
    %3017 = vmatprep.subr.mxu0 0.0
    %3018 = vmatpush1.xpose.msra.mxu0 0.0
    %3019 = vmatprep.subr.mxu0 0.0
    %3020 = vmatpush1.xpose.msra.mxu0 0.0
    %3021 = vmatprep.subr.mxu0 0.0
    %3022 = vmatpush1.xpose.msra.mxu0 0.0
    %3023 = vmatprep.subr.mxu0 0.0
    %3024 = vmatpush1.xpose.msra.mxu0 %v2991
    %3025 = vmatprep.subr.mxu0 0.0
    %3026 = vmatpush2.xpose.msra.mxu0 0.0
    %3027 = vmatprep.subr.mxu0 0.0
    %3028 = vmatpush2.xpose.msra.mxu0 0.0
    %3029 = vmatprep.subr.mxu0 0.0
    %3030 = vmatpush2.xpose.msra.mxu0 0.0
    %3031 = vmatprep.subr.mxu0 0.0
    %3032 = vmatpush2.xpose.msra.mxu0 0.0
    %3033 = vmatprep.subr.mxu0 0.0
    %3034 = vmatpush2.xpose.msra.mxu0 0.0
    %3035 = vmatprep.subr.mxu0 0.0
    %3036 = vmatpush2.xpose.msra.mxu0 0.0
    %3037 = vmatprep.subr.mxu0 0.0
    %3038 = vmatpush2.xpose.msra.mxu0 0.0
    %3039 = vmatprep.subr.mxu0 0.0
    %3040 = vmatpush2.xpose.msra.mxu0 0.0
    %3041 = vmatprep.subr.mxu0 0.0
    %3042 = vmatpush2.xpose.msra.mxu0 0.0
    %3043 = vmatprep.subr.mxu0 0.0
    %3044 = vmatpush2.xpose.msra.mxu0 0.0
    %3045 = vmatprep.subr.mxu0 0.0
    %3046 = vmatpush2.xpose.msra.mxu0 0.0
    %3047 = vmatprep.subr.mxu0 0.0
    %3048 = vmatpush2.xpose.msra.mxu0 0.0
    %3049 = vmatprep.subr.mxu0 0.0
    %3050 = vmatpush2.xpose.msra.mxu0 0.0
    %3051 = vmatprep.subr.mxu0 0.0
    %3052 = vmatpush2.xpose.msra.mxu0 0.0
    %3053 = vmatprep.subr.mxu0 0.0
    %3054 = vmatpush2.xpose.msra.mxu0 0.0
    %3055 = vmatprep.subr.mxu0 0.0
    %3056 = vmatpush2.xpose.msra.mxu0 0.0
    %3057 = vmatprep.mubr.f32.mxu0 0.0
    %3058 = vmatmul.mubr.f32.gmra.mxu0 %v2991
    %v3059 = vpop.f32.mrf.mxu0
    %v3060 = vadd.f32 0.0, %v3059
    %v3061 = vpop.f32.mrf.mxu0
    %3062 = vdwg.mxu0
    %v3063 = vadd.f32 %v2525, %v3060
    %3064 = vmatprep.subr.mxu0 0.0
    %3065 = vmatpush1.msra.mxu0 0.0
    %3066 = vmatprep.subr.mxu0 0.0
    %3067 = vmatpush1.msra.mxu0 0.0
    %3068 = vmatprep.subr.mxu0 0.0
    %3069 = vmatpush1.msra.mxu0 0.0
    %3070 = vmatprep.subr.mxu0 0.0
    %3071 = vmatpush1.msra.mxu0 0.0
    %3072 = vmatprep.subr.mxu0 0.0
    %3073 = vmatpush1.msra.mxu0 0.0
    %3074 = vmatprep.subr.mxu0 0.0
    %3075 = vmatpush1.msra.mxu0 0.0
    %3076 = vmatprep.subr.mxu0 0.0
    %3077 = vmatpush1.msra.mxu0 0.0
    %3078 = vmatprep.subr.mxu0 0.0
    %3079 = vmatpush1.msra.mxu0 0.0
    %3080 = vmatprep.subr.mxu0 0.0
    %3081 = vmatpush1.msra.mxu0 0.0
    %3082 = vmatprep.subr.mxu0 0.0
    %3083 = vmatpush1.msra.mxu0 0.0
    %3084 = vmatprep.subr.mxu0 0.0
    %3085 = vmatpush1.msra.mxu0 0.0
    %3086 = vmatprep.subr.mxu0 0.0
    %3087 = vmatpush1.msra.mxu0 0.0
    %3088 = vmatprep.subr.mxu0 0.0
    %3089 = vmatpush1.msra.mxu0 0.0
    %3090 = vmatprep.subr.mxu0 0.0
    %3091 = vmatpush1.msra.mxu0 0.0
    %3092 = vmatprep.subr.mxu0 0.0
    %3093 = vmatpush1.msra.mxu0 0.0
    %3094 = vmatprep.subr.mxu0 0.0
    %3095 = vmatpush1.msra.mxu0 %v50
    %3096 = vmatprep.subr.mxu0 0.0
    %3097 = vmatpush2.msra.mxu0 0.0
    %3098 = vmatprep.subr.mxu0 0.0
    %3099 = vmatpush2.msra.mxu0 0.0
    %3100 = vmatprep.subr.mxu0 0.0
    %3101 = vmatpush2.msra.mxu0 0.0
    %3102 = vmatprep.subr.mxu0 0.0
    %3103 = vmatpush2.msra.mxu0 0.0
    %3104 = vmatprep.subr.mxu0 0.0
    %3105 = vmatpush2.msra.mxu0 0.0
    %3106 = vmatprep.subr.mxu0 0.0
    %3107 = vmatpush2.msra.mxu0 0.0
    %3108 = vmatprep.subr.mxu0 0.0
    %3109 = vmatpush2.msra.mxu0 0.0
    %3110 = vmatprep.subr.mxu0 0.0
    %3111 = vmatpush2.msra.mxu0 0.0
    %3112 = vmatprep.subr.mxu0 0.0
    %3113 = vmatpush2.msra.mxu0 0.0
    %3114 = vmatprep.subr.mxu0 0.0
    %3115 = vmatpush2.msra.mxu0 0.0
    %3116 = vmatprep.subr.mxu0 0.0
    %3117 = vmatpush2.msra.mxu0 0.0
    %3118 = vmatprep.subr.mxu0 0.0
    %3119 = vmatpush2.msra.mxu0 0.0
    %3120 = vmatprep.subr.mxu0 0.0
    %3121 = vmatpush2.msra.mxu0 0.0
    %3122 = vmatprep.subr.mxu0 0.0
    %3123 = vmatpush2.msra.mxu0 0.0
    %3124 = vmatprep.subr.mxu0 0.0
    %3125 = vmatpush2.msra.mxu0 0.0
    %3126 = vmatprep.subr.mxu0 0.0
    %3127 = vmatpush2.msra.mxu0 0.0
    %3128 = vmatprep.mubr.f32.mxu0 0.0
    %3129 = vmatmul.mubr.f32.gmra.mxu0 %v2991
    %v3130 = vpop.f32.mrf.mxu0
    %v3131 = vadd.f32 0.0, %v3130
    %v3132 = vpop.f32.mrf.mxu0
    %3133 = vdwg.mxu0
    %v3134 = vadd.f32 %v2665, %v3131
    %3135 = vrot.lane.b32.xlu0 %v142, 72
    %v3136 = vpop.permute.xlu0 %3135
    %3137 = vrot.lane.b32.xlu0 %v143, 72
    %v3138 = vpop.permute.xlu0 %3137
    %v3141 = vsel %vm144, %v3136, 0.0
    %3142 = vadd.xlane.f32.xlu0 %v3141
    %v3143 = vpop.xlane.xlu0 %3142
    %v3144 = vsel %vm144, %v3138, 0.0
    %3145 = vadd.xlane.f32.xlu0 %v3144
    %v3146 = vpop.xlane.xlu0 %3145
    %3147 = vrot.lane.b32.xlu0 %v152, 72
    %v3148 = vpop.permute.xlu0 %3147
    %3149 = vrot.lane.b32.xlu0 %v130, 72
    %v3150 = vpop.permute.xlu0 %3149
    %3151 = vrot.lane.b32.xlu0 %v135, 72
    %v3152 = vpop.permute.xlu0 %3151
    %v3153 = vsel %vm144, %v3148, 0
    %v3155 = vsel %vm144, %v3150, 0
    %v3157 = vsel %vm144, %v3152, 0
    %3159 = vmatprep.subr.mxu0 0.0
    %3160 = vmatpush1.xpose.msra.mxu0 0.0
    %3161 = vmatprep.subr.mxu0 0.0
    %3162 = vmatpush1.xpose.msra.mxu0 0.0
    %3163 = vmatprep.subr.mxu0 0.0
    %3164 = vmatpush1.xpose.msra.mxu0 0.0
    %3165 = vmatprep.subr.mxu0 0.0
    %3166 = vmatpush1.xpose.msra.mxu0 0.0
    %3167 = vmatprep.subr.mxu0 0.0
    %3168 = vmatpush1.xpose.msra.mxu0 0.0
    %3169 = vmatprep.subr.mxu0 0.0
    %3170 = vmatpush1.xpose.msra.mxu0 0.0
    %3171 = vmatprep.subr.mxu0 0.0
    %3172 = vmatpush1.xpose.msra.mxu0 0.0
    %3173 = vmatprep.subr.mxu0 0.0
    %3174 = vmatpush1.xpose.msra.mxu0 0.0
    %3175 = vmatprep.subr.mxu0 0.0
    %3176 = vmatpush1.xpose.msra.mxu0 0.0
    %3177 = vmatprep.subr.mxu0 0.0
    %3178 = vmatpush1.xpose.msra.mxu0 0.0
    %3179 = vmatprep.subr.mxu0 0.0
    %3180 = vmatpush1.xpose.msra.mxu0 0.0
    %3181 = vmatprep.subr.mxu0 0.0
    %3182 = vmatpush1.xpose.msra.mxu0 0.0
    %3183 = vmatprep.subr.mxu0 0.0
    %3184 = vmatpush1.xpose.msra.mxu0 0.0
    %3185 = vmatprep.subr.mxu0 0.0
    %3186 = vmatpush1.xpose.msra.mxu0 0.0
    %3187 = vmatprep.subr.mxu0 0.0
    %3188 = vmatpush1.xpose.msra.mxu0 %v3157
    %3189 = vmatprep.subr.mxu0 0.0
    %3190 = vmatpush1.xpose.msra.mxu0 %v3155
    %3191 = vmatprep.subr.mxu0 0.0
    %3192 = vmatpush2.xpose.msra.mxu0 0.0
    %3193 = vmatprep.subr.mxu0 0.0
    %3194 = vmatpush2.xpose.msra.mxu0 0.0
    %3195 = vmatprep.subr.mxu0 0.0
    %3196 = vmatpush2.xpose.msra.mxu0 0.0
    %3197 = vmatprep.subr.mxu0 0.0
    %3198 = vmatpush2.xpose.msra.mxu0 0.0
    %3199 = vmatprep.subr.mxu0 0.0
    %3200 = vmatpush2.xpose.msra.mxu0 0.0
    %3201 = vmatprep.subr.mxu0 0.0
    %3202 = vmatpush2.xpose.msra.mxu0 0.0
    %3203 = vmatprep.subr.mxu0 0.0
    %3204 = vmatpush2.xpose.msra.mxu0 0.0
    %3205 = vmatprep.subr.mxu0 0.0
    %3206 = vmatpush2.xpose.msra.mxu0 0.0
    %3207 = vmatprep.subr.mxu0 0.0
    %3208 = vmatpush2.xpose.msra.mxu0 0.0
    %3209 = vmatprep.subr.mxu0 0.0
    %3210 = vmatpush2.xpose.msra.mxu0 0.0
    %3211 = vmatprep.subr.mxu0 0.0
    %3212 = vmatpush2.xpose.msra.mxu0 0.0
    %3213 = vmatprep.subr.mxu0 0.0
    %3214 = vmatpush2.xpose.msra.mxu0 0.0
    %3215 = vmatprep.subr.mxu0 0.0
    %3216 = vmatpush2.xpose.msra.mxu0 0.0
    %3217 = vmatprep.subr.mxu0 0.0
    %3218 = vmatpush2.xpose.msra.mxu0 0.0
    %3219 = vmatprep.subr.mxu0 0.0
    %3220 = vmatpush2.xpose.msra.mxu0 0.0
    %3221 = vmatprep.subr.mxu0 0.0
    %3222 = vmatpush2.xpose.msra.mxu0 0.0
    %3223 = vmatprep.mubr.f32.mxu0 0.0
    %3224 = vmatmul.mubr.f32.gmra.mxu0 %v3153
    %v3225 = vpop.f32.mrf.mxu0
    %v3226 = vadd.f32 0.0, %v3225
    %v3227 = vpop.f32.mrf.mxu0
    %3228 = vdwg.mxu0
    %v3229 = vlaneseq
    %v3230 = vshrl.u32 %v3229, 7
    %v3231 = vsub.s32 0, %v3230
    %v3232 = vrot.slane %v3226, %v3231
    %v3233 = vadd.f32 %v3143, %v3232
    %v3234 = vadd.f32 %v3146, %v3232
    %vm3235 = vcmp.gt.f32.partialorder %v3233, 0.0
    %vm3236 = vcmp.gt.f32.partialorder %v3234, 0.0
    %v3237 = vmul.f32 %v3233, 0.2
    %v3238 = vmul.f32 %v3234, 0.2
    %v3239 = vsel %vm3235, %v3233, %v3237
    %v3240 = vsel %vm3236, %v3234, %v3238
    %v3241 = vsel %vm247, %v3239, -9e+15
    %v3242 = vsel %vm248, %v3240, -9e+15
    %v3243 = vsel %vm251, %v3241, -inf
    %3244 = vmax.xlane.f32.xlu0 %v3243
    %v3245 = vpop.xlane.xlu0 %3244
    %v3246 = vsel %vm251, %v3242, -inf
    %3247 = vmax.xlane.f32.xlu0 %v3246
    %v3248 = vpop.xlane.xlu0 %3247
    %v3249 = vsub.f32 %v3241, %v3245
    %v3250 = vsub.f32 %v3242, %v3248
    %v3251 = vmul.f32 %v3249, 1.442695
    %v3252 = vpow.pop %v3251
    %v3253 = vmul.f32 %v3250, 1.442695
    %v3254 = vpow.pop %v3253
    %v3255 = vsel %vm251, %v3252, 0.0
    %3256 = vadd.xlane.f32.xlu0 %v3255
    %v3257 = vpop.xlane.xlu0 %3256
    %v3258 = vsel %vm251, %v3254, 0.0
    %3259 = vadd.xlane.f32.xlu0 %v3258
    %v3260 = vpop.xlane.xlu0 %3259
    %v3261 = vrcp.pop %v3257
    %v3262 = vmul.f32 1.0, %v3261
    %v3263 = vrcp.pop %v3260
    %v3264 = vmul.f32 1.0, %v3263
    %v3268 = vsel %vm251, %v3252, 0
    %v3271 = vsel %vm251, %v3254, 0
    %3273 = vmatprep.subr.mxu0 0.0
    %3274 = vmatpush1.msra.mxu0 0.0
    %3275 = vmatprep.subr.mxu0 0.0
    %3276 = vmatpush1.msra.mxu0 0.0
    %3277 = vmatprep.subr.mxu0 0.0
    %3278 = vmatpush1.msra.mxu0 0.0
    %3279 = vmatprep.subr.mxu0 0.0
    %3280 = vmatpush1.msra.mxu0 0.0
    %3281 = vmatprep.subr.mxu0 0.0
    %3282 = vmatpush1.msra.mxu0 0.0
    %3283 = vmatprep.subr.mxu0 0.0
    %3284 = vmatpush1.msra.mxu0 0.0
    %3285 = vmatprep.subr.mxu0 0.0
    %3286 = vmatpush1.msra.mxu0 0.0
    %3287 = vmatprep.subr.mxu0 0.0
    %3288 = vmatpush1.msra.mxu0 0.0
    %3289 = vmatprep.subr.mxu0 0.0
    %3290 = vmatpush1.msra.mxu0 0.0
    %3291 = vmatprep.subr.mxu0 0.0
    %3292 = vmatpush1.msra.mxu0 0.0
    %3293 = vmatprep.subr.mxu0 0.0
    %3294 = vmatpush1.msra.mxu0 0.0
    %3295 = vmatprep.subr.mxu0 0.0
    %3296 = vmatpush1.msra.mxu0 0.0
    %3297 = vmatprep.subr.mxu0 0.0
    %3298 = vmatpush1.msra.mxu0 0.0
    %3299 = vmatprep.subr.mxu0 0.0
    %3300 = vmatpush1.msra.mxu0 0.0
    %3301 = vmatprep.subr.mxu0 0.0
    %3302 = vmatpush1.msra.mxu0 %v3152
    %3303 = vmatprep.subr.mxu0 0.0
    %3304 = vmatpush1.msra.mxu0 %v3150
    %3305 = vmatprep.subr.mxu0 0.0
    %3306 = vmatpush2.msra.mxu0 0.0
    %3307 = vmatprep.subr.mxu0 0.0
    %3308 = vmatpush2.msra.mxu0 0.0
    %3309 = vmatprep.subr.mxu0 0.0
    %3310 = vmatpush2.msra.mxu0 0.0
    %3311 = vmatprep.subr.mxu0 0.0
    %3312 = vmatpush2.msra.mxu0 0.0
    %3313 = vmatprep.subr.mxu0 0.0
    %3314 = vmatpush2.msra.mxu0 0.0
    %3315 = vmatprep.subr.mxu0 0.0
    %3316 = vmatpush2.msra.mxu0 0.0
    %3317 = vmatprep.subr.mxu0 0.0
    %3318 = vmatpush2.msra.mxu0 0.0
    %3319 = vmatprep.subr.mxu0 0.0
    %3320 = vmatpush2.msra.mxu0 0.0
    %3321 = vmatprep.subr.mxu0 0.0
    %3322 = vmatpush2.msra.mxu0 0.0
    %3323 = vmatprep.subr.mxu0 0.0
    %3324 = vmatpush2.msra.mxu0 0.0
    %3325 = vmatprep.subr.mxu0 0.0
    %3326 = vmatpush2.msra.mxu0 0.0
    %3327 = vmatprep.subr.mxu0 0.0
    %3328 = vmatpush2.msra.mxu0 0.0
    %3329 = vmatprep.subr.mxu0 0.0
    %3330 = vmatpush2.msra.mxu0 0.0
    %3331 = vmatprep.subr.mxu0 0.0
    %3332 = vmatpush2.msra.mxu0 0.0
    %3333 = vmatprep.subr.mxu0 0.0
    %3334 = vmatpush2.msra.mxu0 0.0
    %3335 = vmatprep.subr.mxu0 0.0
    %3336 = vmatpush2.msra.mxu0 0.0
    %3337 = vmatprep.mubr.f32.mxu0 0.0
    %3338 = vmatmul.mubr.f32.gmra.mxu0 %v3268
    %v3339 = vpop.f32.mrf.mxu0
    %v3340 = vadd.f32 0.0, %v3339
    %v3341 = vpop.f32.mrf.mxu0
    %3342 = vmatprep.mubr.f32.mxu0 0.0
    %3343 = vmatmul.mubr.f32.gmra.mxu0 %v3271
    %v3344 = vpop.f32.mrf.mxu0
    %v3345 = vadd.f32 0.0, %v3344
    %v3346 = vpop.f32.mrf.mxu0
    %3347 = vdwg.mxu0
    %v3348 = vmul.f32 %v3340, %v3262
    %v3349 = vmul.f32 %v3345, %v3264
    %vm3350 = vcmp.gt.f32.partialorder %v3348, 0.0
    %vm3351 = vcmp.gt.f32.partialorder %v3349, 0.0
    %v3352 = vmin.f32 %v3348, 0.0
    %v3353 = vmin.f32 %v3349, 0.0
    %v3354 = vmul.f32 %v3352, 1.442695
    %v3355 = vpow.pop %v3354
    %v3356 = vmul.f32 %v3353, 1.442695
    %v3357 = vpow.pop %v3356
    %v3358 = vsub.f32 %v3355, 1.0
    %v3359 = vsub.f32 %v3357, 1.0
    %v3360 = vsel %vm3350, %v3348, %v3358
    %v3361 = vsel %vm3351, %v3349, %v3359
    %3362 = vmatprep.subr.mxu0 0.0
    %3363 = vmatpush1.msra.mxu0 0.0
    %3364 = vmatprep.subr.mxu0 0.0
    %3365 = vmatpush1.msra.mxu0 0.0
    %3366 = vmatprep.subr.mxu0 0.0
    %3367 = vmatpush1.msra.mxu0 0.0
    %3368 = vmatprep.subr.mxu0 0.0
    %3369 = vmatpush1.msra.mxu0 0.0
    %3370 = vmatprep.subr.mxu0 0.0
    %3371 = vmatpush1.msra.mxu0 0.0
    %3372 = vmatprep.subr.mxu0 0.0
    %3373 = vmatpush1.msra.mxu0 0.0
    %3374 = vmatprep.subr.mxu0 0.0
    %3375 = vmatpush1.msra.mxu0 0.0
    %3376 = vmatprep.subr.mxu0 0.0
    %3377 = vmatpush1.msra.mxu0 0.0
    %3378 = vmatprep.subr.mxu0 0.0
    %3379 = vmatpush1.msra.mxu0 0.0
    %3380 = vmatprep.subr.mxu0 0.0
    %3381 = vmatpush1.msra.mxu0 0.0
    %3382 = vmatprep.subr.mxu0 0.0
    %3383 = vmatpush1.msra.mxu0 0.0
    %3384 = vmatprep.subr.mxu0 0.0
    %3385 = vmatpush1.msra.mxu0 0.0
    %3386 = vmatprep.subr.mxu0 0.0
    %3387 = vmatpush1.msra.mxu0 0.0
    %3388 = vmatprep.subr.mxu0 0.0
    %3389 = vmatpush1.msra.mxu0 0.0
    %3390 = vmatprep.subr.mxu0 0.0
    %3391 = vmatpush1.msra.mxu0 %v3361
    %3392 = vmatprep.subr.mxu0 0.0
    %3393 = vmatpush1.msra.mxu0 %v3360
    %3394 = vmatprep.subr.mxu0 0.0
    %3395 = vmatpush2.msra.mxu0 0.0
    %3396 = vmatprep.subr.mxu0 0.0
    %3397 = vmatpush2.msra.mxu0 0.0
    %3398 = vmatprep.subr.mxu0 0.0
    %3399 = vmatpush2.msra.mxu0 0.0
    %3400 = vmatprep.subr.mxu0 0.0
    %3401 = vmatpush2.msra.mxu0 0.0
    %3402 = vmatprep.subr.mxu0 0.0
    %3403 = vmatpush2.msra.mxu0 0.0
    %3404 = vmatprep.subr.mxu0 0.0
    %3405 = vmatpush2.msra.mxu0 0.0
    %3406 = vmatprep.subr.mxu0 0.0
    %3407 = vmatpush2.msra.mxu0 0.0
    %3408 = vmatprep.subr.mxu0 0.0
    %3409 = vmatpush2.msra.mxu0 0.0
    %3410 = vmatprep.subr.mxu0 0.0
    %3411 = vmatpush2.msra.mxu0 0.0
    %3412 = vmatprep.subr.mxu0 0.0
    %3413 = vmatpush2.msra.mxu0 0.0
    %3414 = vmatprep.subr.mxu0 0.0
    %3415 = vmatpush2.msra.mxu0 0.0
    %3416 = vmatprep.subr.mxu0 0.0
    %3417 = vmatpush2.msra.mxu0 0.0
    %3418 = vmatprep.subr.mxu0 0.0
    %3419 = vmatpush2.msra.mxu0 0.0
    %3420 = vmatprep.subr.mxu0 0.0
    %3421 = vmatpush2.msra.mxu0 0.0
    %3422 = vmatprep.subr.mxu0 0.0
    %3423 = vmatpush2.msra.mxu0 0.0
    %3424 = vmatprep.subr.mxu0 0.0
    %3425 = vmatpush2.msra.mxu0 0.0
    %3426 = vmatprep.mubr.f32.mxu0 0.0
    %3427 = vmatmul.mubr.f32.gmra.mxu0 %v370
    %v3428 = vpop.f32.mrf.mxu0
    %v3429 = vadd.f32 0.0, %v3428
    %v3430 = vpop.f32.mrf.mxu0
    %3431 = vmatprep.mubr.f32.mxu0 0.0
    %3432 = vmatmul.mubr.f32.gmra.mxu0 %v373
    %v3433 = vpop.f32.mrf.mxu0
    %v3434 = vadd.f32 0.0, %v3433
    %v3435 = vpop.f32.mrf.mxu0
    %3436 = vmatprep.mubr.f32.mxu0 0.0
    %3437 = vmatmul.mubr.f32.gmra.mxu0 %v376
    %v3438 = vpop.f32.mrf.mxu0
    %v3439 = vadd.f32 0.0, %v3438
    %v3440 = vpop.f32.mrf.mxu0
    %3441 = vmatprep.mubr.f32.mxu0 0.0
    %3442 = vmatmul.mubr.f32.gmra.mxu0 %v379
    %v3443 = vpop.f32.mrf.mxu0
    %v3444 = vadd.f32 0.0, %v3443
    %v3445 = vpop.f32.mrf.mxu0
    %3446 = vdwg.mxu0
    %v3447 = vmul.f32 %v3434, %v3434
    %v3448 = vadd.f32 %v2981, %v3447
    %v3449 = vmul.f32 %v3439, %v3439
    %v3450 = vadd.f32 %v2983, %v3449
    %v3451 = vmul.f32 %v3444, %v3444
    %v3452 = vadd.f32 %v2985, %v3451
    %v3453 = vmul.f32 %v3434, %v3439
    %v3454 = vadd.f32 %v2987, %v3453
    %v3455 = vmul.f32 %v3434, %v3444
    %v3456 = vadd.f32 %v2989, %v3455
    %v3458 = vsel %vm144, %v3429, 0
    %3460 = vmatprep.subr.mxu0 0.0
    %3461 = vmatpush1.xpose.msra.mxu0 0.0
    %3462 = vmatprep.subr.mxu0 0.0
    %3463 = vmatpush1.xpose.msra.mxu0 0.0
    %3464 = vmatprep.subr.mxu0 0.0
    %3465 = vmatpush1.xpose.msra.mxu0 0.0
    %3466 = vmatprep.subr.mxu0 0.0
    %3467 = vmatpush1.xpose.msra.mxu0 0.0
    %3468 = vmatprep.subr.mxu0 0.0
    %3469 = vmatpush1.xpose.msra.mxu0 0.0
    %3470 = vmatprep.subr.mxu0 0.0
    %3471 = vmatpush1.xpose.msra.mxu0 0.0
    %3472 = vmatprep.subr.mxu0 0.0
    %3473 = vmatpush1.xpose.msra.mxu0 0.0
    %3474 = vmatprep.subr.mxu0 0.0
    %3475 = vmatpush1.xpose.msra.mxu0 0.0
    %3476 = vmatprep.subr.mxu0 0.0
    %3477 = vmatpush1.xpose.msra.mxu0 0.0
    %3478 = vmatprep.subr.mxu0 0.0
    %3479 = vmatpush1.xpose.msra.mxu0 0.0
    %3480 = vmatprep.subr.mxu0 0.0
    %3481 = vmatpush1.xpose.msra.mxu0 0.0
    %3482 = vmatprep.subr.mxu0 0.0
    %3483 = vmatpush1.xpose.msra.mxu0 0.0
    %3484 = vmatprep.subr.mxu0 0.0
    %3485 = vmatpush1.xpose.msra.mxu0 0.0
    %3486 = vmatprep.subr.mxu0 0.0
    %3487 = vmatpush1.xpose.msra.mxu0 0.0
    %3488 = vmatprep.subr.mxu0 0.0
    %3489 = vmatpush1.xpose.msra.mxu0 0.0
    %3490 = vmatprep.subr.mxu0 0.0
    %3491 = vmatpush1.xpose.msra.mxu0 %v3458
    %3492 = vmatprep.subr.mxu0 0.0
    %3493 = vmatpush2.xpose.msra.mxu0 0.0
    %3494 = vmatprep.subr.mxu0 0.0
    %3495 = vmatpush2.xpose.msra.mxu0 0.0
    %3496 = vmatprep.subr.mxu0 0.0
    %3497 = vmatpush2.xpose.msra.mxu0 0.0
    %3498 = vmatprep.subr.mxu0 0.0
    %3499 = vmatpush2.xpose.msra.mxu0 0.0
    %3500 = vmatprep.subr.mxu0 0.0
    %3501 = vmatpush2.xpose.msra.mxu0 0.0
    %3502 = vmatprep.subr.mxu0 0.0
    %3503 = vmatpush2.xpose.msra.mxu0 0.0
    %3504 = vmatprep.subr.mxu0 0.0
    %3505 = vmatpush2.xpose.msra.mxu0 0.0
    %3506 = vmatprep.subr.mxu0 0.0
    %3507 = vmatpush2.xpose.msra.mxu0 0.0
    %3508 = vmatprep.subr.mxu0 0.0
    %3509 = vmatpush2.xpose.msra.mxu0 0.0
    %3510 = vmatprep.subr.mxu0 0.0
    %3511 = vmatpush2.xpose.msra.mxu0 0.0
    %3512 = vmatprep.subr.mxu0 0.0
    %3513 = vmatpush2.xpose.msra.mxu0 0.0
    %3514 = vmatprep.subr.mxu0 0.0
    %3515 = vmatpush2.xpose.msra.mxu0 0.0
    %3516 = vmatprep.subr.mxu0 0.0
    %3517 = vmatpush2.xpose.msra.mxu0 0.0
    %3518 = vmatprep.subr.mxu0 0.0
    %3519 = vmatpush2.xpose.msra.mxu0 0.0
    %3520 = vmatprep.subr.mxu0 0.0
    %3521 = vmatpush2.xpose.msra.mxu0 0.0
    %3522 = vmatprep.subr.mxu0 0.0
    %3523 = vmatpush2.xpose.msra.mxu0 0.0
    %3524 = vmatprep.mubr.f32.mxu0 0.0
    %3525 = vmatmul.mubr.f32.gmra.mxu0 %v3458
    %v3526 = vpop.f32.mrf.mxu0
    %v3527 = vadd.f32 0.0, %v3526
    %v3528 = vpop.f32.mrf.mxu0
    %3529 = vdwg.mxu0
    %v3530 = vadd.f32 %v3063, %v3527
    %3531 = vmatprep.subr.mxu0 0.0
    %3532 = vmatpush1.msra.mxu0 0.0
    %3533 = vmatprep.subr.mxu0 0.0
    %3534 = vmatpush1.msra.mxu0 0.0
    %3535 = vmatprep.subr.mxu0 0.0
    %3536 = vmatpush1.msra.mxu0 0.0
    %3537 = vmatprep.subr.mxu0 0.0
    %3538 = vmatpush1.msra.mxu0 0.0
    %3539 = vmatprep.subr.mxu0 0.0
    %3540 = vmatpush1.msra.mxu0 0.0
    %3541 = vmatprep.subr.mxu0 0.0
    %3542 = vmatpush1.msra.mxu0 0.0
    %3543 = vmatprep.subr.mxu0 0.0
    %3544 = vmatpush1.msra.mxu0 0.0
    %3545 = vmatprep.subr.mxu0 0.0
    %3546 = vmatpush1.msra.mxu0 0.0
    %3547 = vmatprep.subr.mxu0 0.0
    %3548 = vmatpush1.msra.mxu0 0.0
    %3549 = vmatprep.subr.mxu0 0.0
    %3550 = vmatpush1.msra.mxu0 0.0
    %3551 = vmatprep.subr.mxu0 0.0
    %3552 = vmatpush1.msra.mxu0 0.0
    %3553 = vmatprep.subr.mxu0 0.0
    %3554 = vmatpush1.msra.mxu0 0.0
    %3555 = vmatprep.subr.mxu0 0.0
    %3556 = vmatpush1.msra.mxu0 0.0
    %3557 = vmatprep.subr.mxu0 0.0
    %3558 = vmatpush1.msra.mxu0 0.0
    %3559 = vmatprep.subr.mxu0 0.0
    %3560 = vmatpush1.msra.mxu0 0.0
    %3561 = vmatprep.subr.mxu0 0.0
    %3562 = vmatpush1.msra.mxu0 %v51
    %3563 = vmatprep.subr.mxu0 0.0
    %3564 = vmatpush2.msra.mxu0 0.0
    %3565 = vmatprep.subr.mxu0 0.0
    %3566 = vmatpush2.msra.mxu0 0.0
    %3567 = vmatprep.subr.mxu0 0.0
    %3568 = vmatpush2.msra.mxu0 0.0
    %3569 = vmatprep.subr.mxu0 0.0
    %3570 = vmatpush2.msra.mxu0 0.0
    %3571 = vmatprep.subr.mxu0 0.0
    %3572 = vmatpush2.msra.mxu0 0.0
    %3573 = vmatprep.subr.mxu0 0.0
    %3574 = vmatpush2.msra.mxu0 0.0
    %3575 = vmatprep.subr.mxu0 0.0
    %3576 = vmatpush2.msra.mxu0 0.0
    %3577 = vmatprep.subr.mxu0 0.0
    %3578 = vmatpush2.msra.mxu0 0.0
    %3579 = vmatprep.subr.mxu0 0.0
    %3580 = vmatpush2.msra.mxu0 0.0
    %3581 = vmatprep.subr.mxu0 0.0
    %3582 = vmatpush2.msra.mxu0 0.0
    %3583 = vmatprep.subr.mxu0 0.0
    %3584 = vmatpush2.msra.mxu0 0.0
    %3585 = vmatprep.subr.mxu0 0.0
    %3586 = vmatpush2.msra.mxu0 0.0
    %3587 = vmatprep.subr.mxu0 0.0
    %3588 = vmatpush2.msra.mxu0 0.0
    %3589 = vmatprep.subr.mxu0 0.0
    %3590 = vmatpush2.msra.mxu0 0.0
    %3591 = vmatprep.subr.mxu0 0.0
    %3592 = vmatpush2.msra.mxu0 0.0
    %3593 = vmatprep.subr.mxu0 0.0
    %3594 = vmatpush2.msra.mxu0 0.0
    %3595 = vmatprep.mubr.f32.mxu0 0.0
    %3596 = vmatmul.mubr.f32.gmra.mxu0 %v3458
    %v3597 = vpop.f32.mrf.mxu0
    %v3598 = vadd.f32 0.0, %v3597
    %v3599 = vpop.f32.mrf.mxu0
    %3600 = vdwg.mxu0
    %v3601 = vadd.f32 %v3134, %v3598
    %v3602 = vld [vmem:[%s5] sm:$0x1]
    %v3604 = vlaneseq
    %v3605 = vshrl.u32 %v3604, 7
    %v3606 = vsub.s32 0, %v3605
    %v3607 = vrot.slane %v3602, %v3606
    %v3609 = vadd.f32 %v3601, %v3607
    %v3610 = vxor.u32 %v3609, 2147483648
    %v3611 = vmul.f32 %v3610, 1.442695
    %v3612 = vpow.pop %v3611
    %v3613 = vadd.f32 %v3612, 1.0
    %v3614 = vrcp.pop %v3613
    %v3615 = vmul.f32 1.0, %v3614
    %vm3616 = vcmask 23552
    %v3617 = vsel %vm3616, %v3615, -inf
    %3618 = vmax.xlane.f32.xlu0 %v3617
    %v3619 = vpop.xlane.xlu0 %3618
    %v3620 = vsub.f32 %v3615, %v3619
    %v3621 = vmul.f32 %v3620, 1.442695
    %v3622 = vpow.pop %v3621
    %v3623 = vsel %vm3616, %v3622, 0.0
    %3624 = vadd.xlane.f32.xlu0 %v3623
    %v3625 = vpop.xlane.xlu0 %3624
    %v3626 = vrcp.pop %v3625
    %v3627 = vmul.f32 %v3622, %v3626
    %v3628 = vmul.f32 %v3627, 1.442695
    %v3629 = vpow.pop %v3628
    %v3630 = vsel %vm3616, %v3629, 0.0
    %3631 = vadd.xlane.f32.xlu0 %v3630
    %v3632 = vpop.xlane.xlu0 %3631
    %v3633 = vlog2.pop %v3632
    %v3634 = vmul.f32 %v3633, 0.6931472
    %v3635 = vlaneseq
    %v3636 = vand.u32 %v3635, 127
    %v3637 = vld [vmem:[%s7] sm:$0xff]
    %3638 = vset.pattern.permute.xlu0 0
    %3639 = vperm.xlu0 %3638, %v3637
    %v3640 = vpop.permute.xlu0 %3639
    %vm3641 = vcmp.eq.s32.totalorder %v3636, %v3640
    %v3642 = vsel %vm3641, 1, 0
    %v3643 = vcvt.s32.f32 %v3642
    %v3644 = vmul.f32 %v3643, %v3627
    %v3645 = vsel %vm3616, %v3644, 0.0
    %3646 = vadd.xlane.f32.xlu0 %v3645
    %v3647 = vpop.xlane.xlu0 %3646
    %v3648 = vlaneseq
    %v3649 = vshrl.u32 %v3648, 7
    %vm3650 = vcmp.lt.s32.totalorder %v3649, 6
    %v3651 = vsel %vm3650, 1, 0
    %v3652 = vcvt.s32.f32 %v3651
    %v3653 = vsub.f32 %v3634, %v3647
    %v3654 = vmul.f32 %v3653, %v3652
    %v3655 = vrot.slane %v3654, 4
    %v3656 = vadd.f32 %v3654, %v3655
    %v3657 = vrot.slane %v3656, 2
    %v3658 = vadd.f32 %v3656, %v3657
    %v3659 = vrot.slane %v3658, 1
    %v3660 = vadd.f32 %v3658, %v3659
    %v3661 = vmul.f32 %v3660, 0.16666667
    %vm3662 = vcmask 0
    %3663 = vst.msk [vmem:[#allocation2] sm:$0x1] %vm3662, %v3661
    %v3664 = vmul.f32 %v3530, %v1737
    %v3665 = vsel %vm144, %v3664, 0.0
    %3666 = vadd.xlane.f32.xlu0 %v3665
    %v3667 = vpop.xlane.xlu0 %3666
    %v3668 = vrot.slane %v3667, 4
    %v3669 = vadd.f32 %v3667, %v3668
    %v3670 = vrot.slane %v3669, 2
    %v3671 = vadd.f32 %v3669, %v3670
    %v3672 = vrot.slane %v3671, 1
    %v3673 = vadd.f32 %v3671, %v3672
    %3674 = vst.msk [vmem:[#allocation4] sm:$0x1] %vm3662, %v3673
    %v3675 = vsel %vm144, %v3448, 0.0
    %3676 = vadd.xlane.f32.xlu0 %v3675
    %v3677 = vpop.xlane.xlu0 %3676
    %v3678 = vsel %vm144, %v3450, 0.0
    %3679 = vadd.xlane.f32.xlu0 %v3678
    %v3680 = vpop.xlane.xlu0 %3679
    %v3681 = vsel %vm144, %v3452, 0.0
    %3682 = vadd.xlane.f32.xlu0 %v3681
    %v3683 = vpop.xlane.xlu0 %3682
    %v3684 = vsel %vm144, %v3454, 0.0
    %3685 = vadd.xlane.f32.xlu0 %v3684
    %v3686 = vpop.xlane.xlu0 %3685
    %v3687 = vsel %vm144, %v3456, 0.0
    %3688 = vadd.xlane.f32.xlu0 %v3687
    %v3689 = vpop.xlane.xlu0 %3688
    %v3690 = vadd.f32 %v3677, 1e-05
    %v3691 = vrsqrt.pop %v3690
    %v3692 = vmul.f32 %v3690, %v3691
    %vm3693 = vcmp.eq.f32.partialorder %v3690, inf
    %v3694 = vsel %vm3693, %v3690, %v3692
    %vm3695 = vcmp.eq.f32.partialorder %v3690, 0.0
    %v3696 = vand.u32 %v3690, 2147483648
    %v3697 = vsel %vm3695, %v3696, %v3694
    %v3698 = vadd.f32 %v3680, 1e-05
    %v3699 = vrsqrt.pop %v3698
    %v3700 = vmul.f32 %v3698, %v3699
    %vm3701 = vcmp.eq.f32.partialorder %v3698, inf
    %v3702 = vsel %vm3701, %v3698, %v3700
    %vm3703 = vcmp.eq.f32.partialorder %v3698, 0.0
    %v3704 = vand.u32 %v3698, 2147483648
    %v3705 = vsel %vm3703, %v3704, %v3702
    %v3706 = vadd.f32 %v3683, 1e-05
    %v3707 = vrsqrt.pop %v3706
    %v3708 = vmul.f32 %v3706, %v3707
    %vm3709 = vcmp.eq.f32.partialorder %v3706, inf
    %v3710 = vsel %vm3709, %v3706, %v3708
    %vm3711 = vcmp.eq.f32.partialorder %v3706, 0.0
    %v3712 = vand.u32 %v3706, 2147483648
    %v3713 = vsel %vm3711, %v3712, %v3710
    %v3714 = vmul.f32 %v3697, %v3705
    %v3715 = vrcp.pop %v3714
    %v3716 = vmul.f32 %v3686, %v3715
    %v3717 = vmul.f32 %v3697, %v3713
    %v3718 = vrcp.pop %v3717
    %v3719 = vmul.f32 %v3689, %v3718
    %v3720 = vsub.f32 %v3716, %v3719
    %vm3721 = vcmask 1024
    %3722 = vst.msk [vmem:[%s8] sm:$0x3] %vm3721, %v3720
    // Predicated region
    $region34: #{tpu_custom_call.1} parent=1 // pred_check
      _
    $region35: #{tpu_custom_call.1} parent=1 // pred_check_branch
      %3724 = sbr.rel (0) target = $region37
    $region36: #{tpu_custom_call.1} parent=1 // pred_region
      _
    $region37: #{tpu_custom_call.1} parent=1 // pred_fallthru
      _
    // Predicated region
    $region38: #{tpu_custom_call.1} parent=1 // pred_check
      _
    $region39: #{tpu_custom_call.1} parent=1 // pred_check_branch
      %3726 = sbr.rel (0) target = $region41
    $region40: #{tpu_custom_call.1} parent=1 // pred_region
      %s3728 = ssub.s32 16, 16
      %3729 = vsyncadd [#allocation3], %s3728
      %s3731 = sshll.u32 [#allocation2], 4
      %s3732 = int_to_ptr.vmem [resolvable:$true] %s3731
      %3734 = dma.vmem_to_hbm [thread:$0]  %s3732, 16, %s9, [#allocation3]
    $region41: #{tpu_custom_call.1} parent=1 // pred_fallthru
      _
    // Predicated region
    $region42: #{tpu_custom_call.1} parent=1 // pred_check
      _
    $region43: #{tpu_custom_call.1} parent=1 // pred_check_branch
      %3736 = sbr.rel (0) target = $region45
    $region44: #{tpu_custom_call.1} parent=1 // pred_region
      %s3738 = ssub.s32 16, 16
      %3739 = vsyncadd [#allocation5], %s3738
      %s3741 = sshll.u32 [#allocation4], 4
      %s3742 = int_to_ptr.vmem [resolvable:$true] %s3741
      %3744 = dma.vmem_to_hbm [thread:$0]  %s3742, 16, %s10, [#allocation5]
    $region45: #{tpu_custom_call.1} parent=1 // pred_fallthru
      _
    // Predicated region
    $region46: #{tpu_custom_call.1} parent=1 // pred_check
      _
    $region47: #{tpu_custom_call.1} parent=1 // pred_check_branch
      %3746 = sbr.rel (0) target = $region49
    $region48: #{tpu_custom_call.1} parent=1 // pred_region
      _
    $region49: #{tpu_custom_call.1} parent=1 // pred_fallthru
      _
    // Predicated region
    $region50: #{tpu_custom_call.1} parent=1 // pred_check
      _
    $region51: #{tpu_custom_call.1} parent=1 // pred_check_branch
      %3748 = sbr.rel (0) target = $region53
    $region52: #{tpu_custom_call.1} parent=1 // pred_region
      %3749 = dma.done [#allocation3], 16
    $region53: #{tpu_custom_call.1} parent=1 // pred_fallthru
      _
    // Predicated region
    $region54: #{tpu_custom_call.1} parent=1 // pred_check
      _
    $region55: #{tpu_custom_call.1} parent=1 // pred_check_branch
      %3751 = sbr.rel (0) target = $region57
    $region56: #{tpu_custom_call.1} parent=1 // pred_region
      %3752 = dma.done [#allocation5], 16
    $region57: #{tpu_custom_call.1} parent=1 // pred_fallthru
      _
    %3753 = vsyncpa [#allocation3], 1
    %3754 = vsyncpa [#allocation5], 1

</llo_original>
